<compile_context>
chip_gen: v7x
topology: tpu7x:2x2x1
jax: 0.10.0
libtpu: 0.0.40
codegen_flags: <defaults>
</compile_context>

<pallas_src>
import functools

import jax
import jax.numpy as jnp
from jax import lax
from jax.experimental import pallas as pl
from jax.experimental.pallas import tpu as pltpu

_EPS = 1e-5                       # LayerNorm eps for float32 (matches PyTorch)
_VMEM_LIMIT = 48 * 1024 * 1024    # below v7x's 64 MiB physical, raised vs default
_MXU_DTYPE = jnp.float32          # set to jnp.bfloat16 on v5e/v6e for faster MXU
                                  # (keep LN/softmax statistics in f32 regardless)


# ----------------------------------------------------------------------------
# Kernel 1: channel LayerNorm + packed q/k/v 1x1 projection, NCHW input,
#           three lane-dense (B, N, inner) outputs.
# ----------------------------------------------------------------------------
def _norm_qkv_kernel(x_ref, g_ref, w_ref, q_ref, k_ref, v_ref, *, inner):
    # x_ref: (1, C, tn) NCHW-major pixel tile; g_ref: (1, C); w_ref: (C, 3*inner)
    x = jnp.transpose(x_ref[0].astype(jnp.float32))            # (tn, C), XLU
    mean = jnp.mean(x, axis=-1, keepdims=True)
    var = jnp.mean(jnp.square(x - mean), axis=-1, keepdims=True)
    xn = (x - mean) * lax.rsqrt(var + _EPS) * g_ref[...].astype(jnp.float32)
    y = jnp.dot(xn.astype(_MXU_DTYPE), w_ref[...].astype(_MXU_DTYPE),
                preferred_element_type=jnp.float32)             # (tn, 3*inner)
    # 128-lane-aligned slices -> three lane-dense stores.
    q_ref[0] = y[:, :inner].astype(q_ref.dtype)
    k_ref[0] = y[:, inner:2 * inner].astype(k_ref.dtype)
    v_ref[0] = y[:, 2 * inner:].astype(v_ref.dtype)


def norm_qkv_proj(x_ncp, g, w_qkv, *, inner, tn=512):
    """x_ncp: (B, C, N) NCHW view, g: (C,), w_qkv: (C, 3*inner)
    -> q, k, v each (B, N, inner)."""
    B, C, N = x_ncp.shape
    if N <= tn:
        tn = N                       # full extent (handles N not %128)
    else:
        tn = (tn // 128) * 128       # last block dim must be a multiple of 128
    g2 = g.reshape(1, C)
    out_sds = jax.ShapeDtypeStruct((B, N, inner), x_ncp.dtype)

    def out_spec():
        return pl.BlockSpec((1, tn, inner), lambda b, i: (b, i, 0))

    return pl.pallas_call(
        functools.partial(_norm_qkv_kernel, inner=inner),
        out_shape=(out_sds, out_sds, out_sds),
        grid_spec=pltpu.PrefetchScalarGridSpec(
            num_scalar_prefetch=0,
            grid=(B, pl.cdiv(N, tn)),
            in_specs=[
                pl.BlockSpec((1, C, tn), lambda b, i: (b, 0, i)),
                pl.BlockSpec((1, C), lambda b, i: (0, 0)),
                pl.BlockSpec((C, 3 * inner), lambda b, i: (0, 0)),  # resident
            ],
            out_specs=[out_spec(), out_spec(), out_spec()],
        ),
        compiler_params=pltpu.CompilerParams(
            dimension_semantics=("parallel", "parallel"),
            vmem_limit_bytes=_VMEM_LIMIT,
        ),
    )(x_ncp, g2, w_qkv)


# ----------------------------------------------------------------------------
# Kernel 2 (fused): merged-head linear attention + SiLU + out 1x1 projection +
#                   final ChanLayerNorm, NCHW-major output.
# ----------------------------------------------------------------------------
def _attn_silu_out_kernel(q_ref, k_ref, v_ref, mask_ref, wo_ref, g_ref, o_ref,
                          *, scale):
    f32 = jnp.float32
    q = q_ref[0].astype(f32)                       # (N, inner) lane-dense
    k = k_ref[0].astype(f32)
    v = v_ref[0].astype(f32)
    mask = mask_ref[...]                           # (inner, inner) block-diag 0/1

    # q.softmax(dim=-1) per head.  Row-global max is constant within each head's
    # lane group, so the per-head softmax is identical; per-head sums come out
    # lane-dense from one MXU matmul against the block-diagonal mask.
    qe = jnp.exp(q - jnp.max(q, axis=-1, keepdims=True))
    qsum = jnp.dot(qe.astype(_MXU_DTYPE), mask.astype(_MXU_DTYPE),
                   preferred_element_type=f32)
    # approx=True would ride the EUP fast path; kept exact for tight numerics.
    qn = qe * (scale * pl.reciprocal(qsum, approx=False))

    # k.softmax(dim=-2): over the pixel axis, independent per channel.
    ke = jnp.exp(k - jnp.max(k, axis=0, keepdims=True))
    kn = ke * pl.reciprocal(jnp.sum(ke, axis=0, keepdims=True), approx=False)

    # Merged-head attention: two full-width MXU matmuls, cross-head blocks of
    # the (inner, inner) context zeroed by the block-diagonal mask.
    ctx = jnp.einsum("nd,ne->de", kn.astype(_MXU_DTYPE), v.astype(_MXU_DTYPE),
                     preferred_element_type=f32) * mask          # (inner, inner)
    out = jnp.dot(qn.astype(_MXU_DTYPE), ctx.astype(_MXU_DTYPE),
                  preferred_element_type=f32)                    # (N, inner)

    # Epilogue: SiLU + 1x1 out projection + channel LayerNorm.
    out = out * jax.nn.sigmoid(out)
    y = jnp.dot(out.astype(_MXU_DTYPE), wo_ref[...].astype(_MXU_DTYPE),
                preferred_element_type=f32)                      # (N, C)
    mean = jnp.mean(y, axis=-1, keepdims=True)
    var = jnp.mean(jnp.square(y - mean), axis=-1, keepdims=True)
    yn = (y - mean) * lax.rsqrt(var + _EPS) * g_ref[...].astype(f32)
    o_ref[0] = jnp.transpose(yn).astype(o_ref.dtype)             # (C, N) NCHW-major


def attn_silu_out_proj(q, k, v, mask, w_out_t, out_g, *, scale):
    """q/k/v: (B, N, inner); w_out_t: (inner, C); out_g: (C,) -> (B, C, N)."""
    B, N, inner = q.shape
    C = w_out_t.shape[1]
    g2 = out_g.reshape(1, C)

    def in_spec():
        return pl.BlockSpec((1, N, inner), lambda b: (b, 0, 0))

    return pl.pallas_call(
        functools.partial(_attn_silu_out_kernel, scale=scale),
        out_shape=jax.ShapeDtypeStruct((B, C, N), q.dtype),
        grid_spec=pltpu.PrefetchScalarGridSpec(
            num_scalar_prefetch=0,
            grid=(B,),
            in_specs=[
                in_spec(), in_spec(), in_spec(),
                pl.BlockSpec((inner, inner), lambda b: (0, 0)),  # resident mask
                pl.BlockSpec((inner, C), lambda b: (0, 0)),      # resident weight
                pl.BlockSpec((1, C), lambda b: (0, 0)),
            ],
            out_specs=pl.BlockSpec((1, C, N), lambda b: (b, 0, 0)),
        ),
        compiler_params=pltpu.CompilerParams(
            dimension_semantics=("parallel",),
            vmem_limit_bytes=_VMEM_LIMIT,
        ),
    )(q, k, v, mask, w_out_t, g2)


# ----------------------------------------------------------------------------
# Full forward pass
# ----------------------------------------------------------------------------
def linear_attention_forward(fmap, params, *, heads, dim_head):
    """fmap: (B, dim, H, W) NCHW -> (B, dim, H, W).  Inference (dropout = id)."""
    B, C, H, W = fmap.shape
    inner = heads * dim_head
    N = H * W
    scale = dim_head ** (-0.5)
    hp = lax.Precision.HIGHEST

    # Kernel 1 reads NCHW directly (no up-front transpose): free (B, C, N) view.
    x_ncp = fmap.reshape(B, C, N)

    # Packed q/k/v weight, output channel order = head*dim_head + c (matches
    # the PyTorch 'b (h c) x y' layout).
    # TODO(synk): nn.Dropout(0.05) is inference-mode identity here.
    w_qkv = jnp.concatenate(
        [params["wq1"].T, params["wk1"].T, params["wv1"].T], axis=1)  # (C, 3*inner)
    q, k, v = norm_qkv_proj(x_ncp, params["norm_g"], w_qkv, inner=inner)

    # Depthwise 3x3 convs (groups = inner), NHWC.
    # TODO(synk): depthwise 3x3 conv kept in XLA (spatial stencil, small cost).
    def dwconv(t, w):
        rhs = jnp.transpose(w, (1, 2, 0))[:, :, None, :]   # (3,3,1,inner) HWIO
        y = lax.conv_general_dilated(
            t.reshape(B, H, W, inner), rhs, (1, 1), ((1, 1), (1, 1)),
            dimension_numbers=("NHWC", "HWIO", "NHWC"),
            feature_group_count=inner, precision=hp)
        return y.reshape(B, N, inner)

    q = dwconv(q, params["wq_dw"])
    k = dwconv(k, params["wk_dw"])
    v = dwconv(v, params["wv_dw"])

    # Block-diagonal head mask: 1 where both channels belong to the same head.
    hid = jnp.arange(inner) // dim_head
    mask = (hid[:, None] == hid[None, :]).astype(jnp.float32)

    # Fused attention + SiLU + out projection + ChanLayerNorm, NCHW-major output.
    out = attn_silu_out_proj(q, k, v, mask, params["w_out"].T, params["out_g"],
                             scale=scale)                    # (B, C, N)
    return out.reshape(B, C, H, W)


# ----------------------------------------------------------------------------
# Parameters (deterministic synthetic init mirroring the module's layout)
# ----------------------------------------------------------------------------
def init_params(key, dim, heads, dim_head, dtype=jnp.float32):
    inner = heads * dim_head
    ks = jax.random.split(key, 7)

    def conv1x1(k, fan_in, out):
        bound = (1.0 / fan_in) ** 0.5
        return jax.random.uniform(k, (out, fan_in), dtype, -bound, bound)

    def dw3x3(k, ch):
        bound = (1.0 / 9.0) ** 0.5
        return jax.random.uniform(k, (ch, 3, 3), dtype, -bound, bound)

    return dict(
        norm_g=jnp.ones((dim,), dtype),          # ChanLayerNorm gain
        wq1=conv1x1(ks[0], dim, inner),          # (inner, dim)
        wk1=conv1x1(ks[1], dim, inner),
        wv1=conv1x1(ks[2], dim, inner),
        wq_dw=dw3x3(ks[3], inner),               # (inner, 3, 3) depthwise
        wk_dw=dw3x3(ks[4], inner),
        wv_dw=dw3x3(ks[5], inner),
        w_out=conv1x1(ks[6], inner, dim),        # (dim, inner)
        out_g=jnp.ones((dim,), dtype),           # final ChanLayerNorm gain
    )


# ----------------------------------------------------------------------------
# Pure-JAX reference (mirrors the PyTorch forward in NCHW)
# ----------------------------------------------------------------------------
def _reference(fmap, params, *, heads, dim_head):
    B, C, H, W = fmap.shape
    inner = heads * dim_head
    scale = dim_head ** (-0.5)
    hp = lax.Precision.HIGHEST

    def chan_ln(x, g):
        mean = jnp.mean(x, axis=1, keepdims=True)
        var = jnp.mean(jnp.square(x - mean), axis=1, keepdims=True)
        return (x - mean) * lax.rsqrt(var + _EPS) * g[None, :, None, None]

    x = chan_ln(fmap, params["norm_g"])

    def proj(t, w1, wdw):
        y = jnp.einsum("bchw,oc->bohw", t, w1, precision=hp)
        return lax.conv_general_dilated(
            y, wdw[:, None, :, :], (1, 1), ((1, 1), (1, 1)),
            dimension_numbers=("NCHW", "OIHW", "NCHW"),
            feature_group_count=inner, precision=hp)

    q = proj(x, params["wq1"], params["wq_dw"])
    k = proj(x, params["wk1"], params["wk_dw"])
    v = proj(x, params["wv1"], params["wv_dw"])

    def to_bhnc(t):
        t = t.reshape(B, heads, dim_head, H * W)
        return jnp.transpose(t, (0, 1, 3, 2)).reshape(B * heads, H * W, dim_head)

    q, k, v = map(to_bhnc, (q, k, v))
    q = jax.nn.softmax(q, axis=-1) * scale
    k = jax.nn.softmax(k, axis=-2)
    ctx = jnp.einsum("bnd,bne->bde", k, v, precision=hp)
    out = jnp.einsum("bnd,bde->bne", q, ctx, precision=hp)
    out = out.reshape(B, heads, H, W, dim_head)
    out = jnp.transpose(out, (0, 1, 4, 2, 3)).reshape(B, inner, H, W)
    out = out * jax.nn.sigmoid(out)
    out = jnp.einsum("bchw,oc->bohw", out, params["w_out"], precision=hp)
    return chan_ln(out, params["out_g"])


if __name__ == "__main__":
    key = jax.random.PRNGKey(0)
    k_p, k_x = jax.random.split(key)

    B, dim, H, W = 2, 32, 16, 16
    heads, dim_head = 4, 32          # inner_dim = 128 (lane-dense), 3*inner = 384

    params = init_params(k_p, dim, heads, dim_head)
    fmap = jax.random.normal(k_x, (B, dim, H, W), jnp.float32)

    fwd = jax.jit(functools.partial(linear_attention_forward,
                                    heads=heads, dim_head=dim_head))
    out = fwd(fmap, params)
    jax.block_until_ready(out)

    ref = _reference(fmap, params, heads=heads, dim_head=dim_head)
    assert out.shape == (B, dim, H, W)
    # Tolerance covers MXU vs XLA matmul-precision differences; structural bugs
    # would show up as O(1) errors.
    max_diff = float(jnp.max(jnp.abs(out - ref)))
    assert jnp.allclose(out, ref, atol=5e-3, rtol=5e-3), max_diff

    print("KERNEL_OK")
</pallas_src>

<mosaic_0001>
module attributes {stable_mosaic.version = 11 : i64} {
  func.func @_norm_qkv_kernel(%arg0: i32, %arg1: i32, %arg2: memref<1x32x256xf32, #tpu.memory_space<vmem>>, %arg3: memref<1x32xf32, #tpu.memory_space<vmem>>, %arg4: memref<32x384xf32, #tpu.memory_space<vmem>>, %arg5: memref<1x256x128xf32, #tpu.memory_space<vmem>>, %arg6: memref<1x256x128xf32, #tpu.memory_space<vmem>>, %arg7: memref<1x256x128xf32, #tpu.memory_space<vmem>>) attributes {dimension_semantics = [#tpu.dimension_semantics<parallel>, #tpu.dimension_semantics<parallel>], iteration_bounds = array<i64: 2, 1>, scalar_prefetch = 0 : i64, scratch_operands = 0 : i64, tpu.core_type = #tpu.core_type<tc>, window_params = [{transform_indices = @transform_0, window_bounds = array<i64: 1, 32, 256>}, {pipeline_mode = #tpu.pipeline_mode<synchronous>, transform_indices = @transform_1, window_bounds = array<i64: 1, 32>}, {pipeline_mode = #tpu.pipeline_mode<synchronous>, transform_indices = @transform_2, window_bounds = array<i64: 32, 384>}, {transform_indices = @transform_3, window_bounds = array<i64: 1, 256, 128>}, {transform_indices = @transform_4, window_bounds = array<i64: 1, 256, 128>}, {transform_indices = @transform_5, window_bounds = array<i64: 1, 256, 128>}]} {
    %c0 = arith.constant 0 : index
    %c0_0 = arith.constant 0 : index
    %c0_1 = arith.constant 0 : index
    %0 = vector.load %arg2[%c0, %c0_0, %c0_1] : memref<1x32x256xf32, #tpu.memory_space<vmem>>, vector<1x32x256xf32>
    %1 = vector.shape_cast %0 : vector<1x32x256xf32> to vector<32x256xf32>
    %2 = tpu.transpose %1, [1, 0] : vector<32x256xf32> -> vector<256x32xf32>
    %cst = arith.constant dense<0.000000e+00> : vector<256xf32>
    %3 = vector.multi_reduction <add>, %2, %cst [1] : vector<256x32xf32> to vector<256xf32>
    %4 = vector.shape_cast %3 : vector<256xf32> to vector<256x1xf32>
    %cst_2 = arith.constant 3.200000e+01 : f32
    %5 = vector.broadcast %cst_2 : f32 to vector<256x1xf32>
    %6 = arith.divf %4, %5 : vector<256x1xf32>
    %7 = vector.broadcast %6 : vector<256x1xf32> to vector<256x32xf32>
    %8 = arith.subf %2, %7 : vector<256x32xf32>
    %9 = arith.mulf %8, %8 : vector<256x32xf32>
    %cst_3 = arith.constant dense<0.000000e+00> : vector<256xf32>
    %10 = vector.multi_reduction <add>, %9, %cst_3 [1] : vector<256x32xf32> to vector<256xf32>
    %11 = vector.shape_cast %10 : vector<256xf32> to vector<256x1xf32>
    %cst_4 = arith.constant 3.200000e+01 : f32
    %12 = vector.broadcast %cst_4 : f32 to vector<256x1xf32>
    %13 = arith.divf %11, %12 : vector<256x1xf32>
    %14 = vector.broadcast %6 : vector<256x1xf32> to vector<256x32xf32>
    %15 = arith.subf %2, %14 : vector<256x32xf32>
    %cst_5 = arith.constant 9.99999974E-6 : f32
    %16 = vector.broadcast %cst_5 : f32 to vector<256x1xf32>
    %17 = arith.addf %13, %16 : vector<256x1xf32>
    %18 = math.rsqrt %17 : vector<256x1xf32>
    %19 = vector.broadcast %18 : vector<256x1xf32> to vector<256x32xf32>
    %20 = arith.mulf %15, %19 : vector<256x32xf32>
    %c0_6 = arith.constant 0 : index
    %c0_7 = arith.constant 0 : index
    %21 = vector.load %arg3[%c0_6, %c0_7] : memref<1x32xf32, #tpu.memory_space<vmem>>, vector<1x32xf32>
    %22 = vector.broadcast %21 : vector<1x32xf32> to vector<256x32xf32>
    %23 = arith.mulf %20, %22 : vector<256x32xf32>
    %c0_8 = arith.constant 0 : index
    %c0_9 = arith.constant 0 : index
    %24 = vector.load %arg4[%c0_8, %c0_9] : memref<32x384xf32, #tpu.memory_space<vmem>>, vector<32x384xf32>
    %cst_10 = arith.constant dense<0.000000e+00> : vector<256x384xf32>
    %25 = tpu.matmul %23, %24, %cst_10 {dimension_numbers = #tpu.dot_dimension_numbers<[1], [0], [0], [1], [0, 0, 1, 1], [], []>} : vector<256x32xf32>, vector<32x384xf32>, vector<256x384xf32> -> vector<256x384xf32>
    %26 = vector.extract_strided_slice %25 {offsets = [0, 0], sizes = [256, 128], strides = [1, 1]} : vector<256x384xf32> to vector<256x128xf32>
    %c0_11 = arith.constant 0 : index
    %c0_12 = arith.constant 0 : index
    %c0_13 = arith.constant 0 : index
    %27 = vector.load %arg5[%c0_11, %c0_12, %c0_13] : memref<1x256x128xf32, #tpu.memory_space<vmem>>, vector<1x256x128xf32>
    %28 = vector.shape_cast %27 : vector<1x256x128xf32> to vector<256x128xf32>
    %29 = vector.shape_cast %26 : vector<256x128xf32> to vector<1x256x128xf32>
    tpu.vector_store %arg5[%c0_11, %c0_12, %c0_13], %29 {strides = array<i32>} : memref<1x256x128xf32, #tpu.memory_space<vmem>>, vector<1x256x128xf32>,
    %30 = vector.extract_strided_slice %25 {offsets = [0, 128], sizes = [256, 128], strides = [1, 1]} : vector<256x384xf32> to vector<256x128xf32>
    %c0_14 = arith.constant 0 : index
    %c0_15 = arith.constant 0 : index
    %c0_16 = arith.constant 0 : index
    %31 = vector.load %arg6[%c0_14, %c0_15, %c0_16] : memref<1x256x128xf32, #tpu.memory_space<vmem>>, vector<1x256x128xf32>
    %32 = vector.shape_cast %31 : vector<1x256x128xf32> to vector<256x128xf32>
    %33 = vector.shape_cast %30 : vector<256x128xf32> to vector<1x256x128xf32>
    tpu.vector_store %arg6[%c0_14, %c0_15, %c0_16], %33 {strides = array<i32>} : memref<1x256x128xf32, #tpu.memory_space<vmem>>, vector<1x256x128xf32>,
    %34 = vector.extract_strided_slice %25 {offsets = [0, 256], sizes = [256, 128], strides = [1, 1]} : vector<256x384xf32> to vector<256x128xf32>
    %c0_17 = arith.constant 0 : index
    %c0_18 = arith.constant 0 : index
    %c0_19 = arith.constant 0 : index
    %35 = vector.load %arg7[%c0_17, %c0_18, %c0_19] : memref<1x256x128xf32, #tpu.memory_space<vmem>>, vector<1x256x128xf32>
    %36 = vector.shape_cast %35 : vector<1x256x128xf32> to vector<256x128xf32>
    %37 = vector.shape_cast %34 : vector<256x128xf32> to vector<1x256x128xf32>
    tpu.vector_store %arg7[%c0_17, %c0_18, %c0_19], %37 {strides = array<i32>} : memref<1x256x128xf32, #tpu.memory_space<vmem>>, vector<1x256x128xf32>,
    return
  }
  func.func @transform_0(%arg0: i32, %arg1: i32) -> (i32, i32, i32) {
    %c0_i32 = arith.constant 0 : i32
    %c0_i32_0 = arith.constant 0 : i32
    return %arg0, %c0_i32, %arg1 : i32, i32, i32
  }
  func.func @transform_1(%arg0: i32, %arg1: i32) -> (i32, i32) {
    %c0_i32 = arith.constant 0 : i32
    %c0_i32_0 = arith.constant 0 : i32
    %c0_i32_1 = arith.constant 0 : i32
    return %c0_i32, %c0_i32_0 : i32, i32
  }
  func.func @transform_2(%arg0: i32, %arg1: i32) -> (i32, i32) {
    %c0_i32 = arith.constant 0 : i32
    %c0_i32_0 = arith.constant 0 : i32
    %c0_i32_1 = arith.constant 0 : i32
    return %c0_i32, %c0_i32_0 : i32, i32
  }
  func.func @transform_3(%arg0: i32, %arg1: i32) -> (i32, i32, i32) {
    %c0_i32 = arith.constant 0 : i32
    %c0_i32_0 = arith.constant 0 : i32
    return %arg0, %arg1, %c0_i32 : i32, i32, i32
  }
  func.func @transform_4(%arg0: i32, %arg1: i32) -> (i32, i32, i32) {
    %c0_i32 = arith.constant 0 : i32
    %c0_i32_0 = arith.constant 0 : i32
    return %arg0, %arg1, %c0_i32 : i32, i32, i32
  }
  func.func @transform_5(%arg0: i32, %arg1: i32) -> (i32, i32, i32) {
    %c0_i32 = arith.constant 0 : i32
    %c0_i32_0 = arith.constant 0 : i32
    return %arg0, %arg1, %c0_i32 : i32, i32, i32
  }
}

module attributes {stable_mosaic.version = 11 : i64} {
  func.func @_attn_silu_out_kernel(%arg0: i32, %arg1: memref<1x256x128xf32, #tpu.memory_space<vmem>>, %arg2: memref<1x256x128xf32, #tpu.memory_space<vmem>>, %arg3: memref<1x256x128xf32, #tpu.memory_space<vmem>>, %arg4: memref<128x128xf32, #tpu.memory_space<vmem>>, %arg5: memref<128x32xf32, #tpu.memory_space<vmem>>, %arg6: memref<1x32xf32, #tpu.memory_space<vmem>>, %arg7: memref<1x32x256xf32, #tpu.memory_space<vmem>>) attributes {dimension_semantics = [#tpu.dimension_semantics<parallel>], iteration_bounds = array<i64: 2>, scalar_prefetch = 0 : i64, scratch_operands = 0 : i64, tpu.core_type = #tpu.core_type<tc>, window_params = [{transform_indices = @transform_0, window_bounds = array<i64: 1, 256, 128>}, {transform_indices = @transform_1, window_bounds = array<i64: 1, 256, 128>}, {transform_indices = @transform_2, window_bounds = array<i64: 1, 256, 128>}, {pipeline_mode = #tpu.pipeline_mode<synchronous>, transform_indices = @transform_3, window_bounds = array<i64: 128, 128>}, {pipeline_mode = #tpu.pipeline_mode<synchronous>, transform_indices = @transform_4, window_bounds = array<i64: 128, 32>}, {pipeline_mode = #tpu.pipeline_mode<synchronous>, transform_indices = @transform_5, window_bounds = array<i64: 1, 32>}, {transform_indices = @transform_6, window_bounds = array<i64: 1, 32, 256>}]} {
    %c0 = arith.constant 0 : index
    %c0_0 = arith.constant 0 : index
    %c0_1 = arith.constant 0 : index
    %0 = vector.load %arg1[%c0, %c0_0, %c0_1] : memref<1x256x128xf32, #tpu.memory_space<vmem>>, vector<1x256x128xf32>
    %1 = vector.shape_cast %0 : vector<1x256x128xf32> to vector<256x128xf32>
    %c0_2 = arith.constant 0 : index
    %c0_3 = arith.constant 0 : index
    %c0_4 = arith.constant 0 : index
    %2 = vector.load %arg2[%c0_2, %c0_3, %c0_4] : memref<1x256x128xf32, #tpu.memory_space<vmem>>, vector<1x256x128xf32>
    %3 = vector.shape_cast %2 : vector<1x256x128xf32> to vector<256x128xf32>
    %c0_5 = arith.constant 0 : index
    %c0_6 = arith.constant 0 : index
    %c0_7 = arith.constant 0 : index
    %4 = vector.load %arg3[%c0_5, %c0_6, %c0_7] : memref<1x256x128xf32, #tpu.memory_space<vmem>>, vector<1x256x128xf32>
    %5 = vector.shape_cast %4 : vector<1x256x128xf32> to vector<256x128xf32>
    %c0_8 = arith.constant 0 : index
    %c0_9 = arith.constant 0 : index
    %6 = vector.load %arg4[%c0_8, %c0_9] : memref<128x128xf32, #tpu.memory_space<vmem>>, vector<128x128xf32>
    %cst = arith.constant dense<0xFF800000> : vector<256xf32>
    %7 = vector.multi_reduction <maximumf>, %1, %cst [1] : vector<256x128xf32> to vector<256xf32>
    %8 = vector.shape_cast %7 : vector<256xf32> to vector<256x1xf32>
    %9 = vector.broadcast %8 : vector<256x1xf32> to vector<256x128xf32>
    %10 = arith.subf %1, %9 : vector<256x128xf32>
    %11 = math.exp %10 : vector<256x128xf32>
    %cst_10 = arith.constant dense<0.000000e+00> : vector<256x128xf32>
    %12 = tpu.matmul %11, %6, %cst_10 {dimension_numbers = #tpu.dot_dimension_numbers<[1], [0], [0], [1], [0, 0, 1, 1], [], []>} : vector<256x128xf32>, vector<128x128xf32>, vector<256x128xf32> -> vector<256x128xf32>
    %13 = tpu.reciprocal %12 : vector<256x128xf32> -> vector<256x128xf32>
    %cst_11 = arith.constant 0.176776692 : f32
    %14 = vector.broadcast %cst_11 : f32 to vector<256x128xf32>
    %15 = arith.mulf %14, %13 : vector<256x128xf32>
    %16 = arith.mulf %11, %15 : vector<256x128xf32>
    %cst_12 = arith.constant dense<0xFF800000> : vector<128xf32>
    %17 = vector.multi_reduction <maximumf>, %3, %cst_12 [0] : vector<256x128xf32> to vector<128xf32>
    %18 = vector.shape_cast %17 : vector<128xf32> to vector<1x128xf32>
    %19 = vector.broadcast %18 : vector<1x128xf32> to vector<256x128xf32>
    %20 = arith.subf %3, %19 : vector<256x128xf32>
    %21 = math.exp %20 : vector<256x128xf32>
    %cst_13 = arith.constant dense<0.000000e+00> : vector<128xf32>
    %22 = vector.multi_reduction <add>, %21, %cst_13 [0] : vector<256x128xf32> to vector<128xf32>
    %23 = vector.shape_cast %22 : vector<128xf32> to vector<1x128xf32>
    %24 = tpu.reciprocal %23 : vector<1x128xf32> -> vector<1x128xf32>
    %25 = vector.broadcast %24 : vector<1x128xf32> to vector<256x128xf32>
    %26 = arith.mulf %21, %25 : vector<256x128xf32>
    "tpu.trace_start"() <{level = 10 : i32, message = "nd,ne->de"}> : () -> ()
    %cst_14 = arith.constant dense<0.000000e+00> : vector<128x128xf32>
    %27 = tpu.matmul %26, %5, %cst_14 {dimension_numbers = #tpu.dot_dimension_numbers<[0], [0], [1], [1], [0, 1, 1, 1], [], []>} : vector<256x128xf32>, vector<256x128xf32>, vector<128x128xf32> -> vector<128x128xf32>
    "tpu.trace_stop"() : () -> ()
    %28 = arith.mulf %27, %6 : vector<128x128xf32>
    %cst_15 = arith.constant dense<0.000000e+00> : vector<256x128xf32>
    %29 = tpu.matmul %16, %28, %cst_15 {dimension_numbers = #tpu.dot_dimension_numbers<[1], [0], [0], [1], [0, 0, 1, 1], [], []>} : vector<256x128xf32>, vector<128x128xf32>, vector<256x128xf32> -> vector<256x128xf32>
    %30 = arith.negf %29 : vector<256x128xf32>
    %31 = math.exp %30 : vector<256x128xf32>
    %cst_16 = arith.constant 1.000000e+00 : f32
    %32 = vector.broadcast %cst_16 : f32 to vector<256x128xf32>
    %33 = arith.addf %32, %31 : vector<256x128xf32>
    %34 = arith.divf %32, %33 : vector<256x128xf32>
    %35 = arith.mulf %29, %34 : vector<256x128xf32>
    %c0_17 = arith.constant 0 : index
    %c0_18 = arith.constant 0 : index
    %36 = vector.load %arg5[%c0_17, %c0_18] : memref<128x32xf32, #tpu.memory_space<vmem>>, vector<128x32xf32>
    %cst_19 = arith.constant dense<0.000000e+00> : vector<256x32xf32>
    %37 = tpu.matmul %35, %36, %cst_19 {dimension_numbers = #tpu.dot_dimension_numbers<[1], [0], [0], [1], [0, 0, 1, 1], [], []>} : vector<256x128xf32>, vector<128x32xf32>, vector<256x32xf32> -> vector<256x32xf32>
    %cst_20 = arith.constant dense<0.000000e+00> : vector<256xf32>
    %38 = vector.multi_reduction <add>, %37, %cst_20 [1] : vector<256x32xf32> to vector<256xf32>
    %39 = vector.shape_cast %38 : vector<256xf32> to vector<256x1xf32>
    %cst_21 = arith.constant 3.200000e+01 : f32
    %40 = vector.broadcast %cst_21 : f32 to vector<256x1xf32>
    %41 = arith.divf %39, %40 : vector<256x1xf32>
    %42 = vector.broadcast %41 : vector<256x1xf32> to vector<256x32xf32>
    %43 = arith.subf %37, %42 : vector<256x32xf32>
    %44 = arith.mulf %43, %43 : vector<256x32xf32>
    %cst_22 = arith.constant dense<0.000000e+00> : vector<256xf32>
    %45 = vector.multi_reduction <add>, %44, %cst_22 [1] : vector<256x32xf32> to vector<256xf32>
    %46 = vector.shape_cast %45 : vector<256xf32> to vector<256x1xf32>
    %cst_23 = arith.constant 3.200000e+01 : f32
    %47 = vector.broadcast %cst_23 : f32 to vector<256x1xf32>
    %48 = arith.divf %46, %47 : vector<256x1xf32>
    %49 = vector.broadcast %41 : vector<256x1xf32> to vector<256x32xf32>
    %50 = arith.subf %37, %49 : vector<256x32xf32>
    %cst_24 = arith.constant 9.99999974E-6 : f32
    %51 = vector.broadcast %cst_24 : f32 to vector<256x1xf32>
    %52 = arith.addf %48, %51 : vector<256x1xf32>
    %53 = math.rsqrt %52 : vector<256x1xf32>
    %54 = vector.broadcast %53 : vector<256x1xf32> to vector<256x32xf32>
    %55 = arith.mulf %50, %54 : vector<256x32xf32>
    %c0_25 = arith.constant 0 : index
    %c0_26 = arith.constant 0 : index
    %56 = vector.load %arg6[%c0_25, %c0_26] : memref<1x32xf32, #tpu.memory_space<vmem>>, vector<1x32xf32>
    %57 = vector.broadcast %56 : vector<1x32xf32> to vector<256x32xf32>
    %58 = arith.mulf %55, %57 : vector<256x32xf32>
    %59 = tpu.transpose %58, [1, 0] : vector<256x32xf32> -> vector<32x256xf32>
    %c0_27 = arith.constant 0 : index
    %c0_28 = arith.constant 0 : index
    %c0_29 = arith.constant 0 : index
    %60 = vector.load %arg7[%c0_27, %c0_28, %c0_29] : memref<1x32x256xf32, #tpu.memory_space<vmem>>, vector<1x32x256xf32>
    %61 = vector.shape_cast %60 : vector<1x32x256xf32> to vector<32x256xf32>
    %62 = vector.shape_cast %59 : vector<32x256xf32> to vector<1x32x256xf32>
    tpu.vector_store %arg7[%c0_27, %c0_28, %c0_29], %62 {strides = array<i32>} : memref<1x32x256xf32, #tpu.memory_space<vmem>>, vector<1x32x256xf32>,
    return
  }
  func.func @transform_0(%arg0: i32) -> (i32, i32, i32) {
    %c0_i32 = arith.constant 0 : i32
    %c0_i32_0 = arith.constant 0 : i32
    %c0_i32_1 = arith.constant 0 : i32
    return %arg0, %c0_i32, %c0_i32_0 : i32, i32, i32
  }
  func.func @transform_1(%arg0: i32) -> (i32, i32, i32) {
    %c0_i32 = arith.constant 0 : i32
    %c0_i32_0 = arith.constant 0 : i32
    %c0_i32_1 = arith.constant 0 : i32
    return %arg0, %c0_i32, %c0_i32_0 : i32, i32, i32
  }
  func.func @transform_2(%arg0: i32) -> (i32, i32, i32) {
    %c0_i32 = arith.constant 0 : i32
    %c0_i32_0 = arith.constant 0 : i32
    %c0_i32_1 = arith.constant 0 : i32
    return %arg0, %c0_i32, %c0_i32_0 : i32, i32, i32
  }
  func.func @transform_3(%arg0: i32) -> (i32, i32) {
    %c0_i32 = arith.constant 0 : i32
    %c0_i32_0 = arith.constant 0 : i32
    %c0_i32_1 = arith.constant 0 : i32
    return %c0_i32, %c0_i32_0 : i32, i32
  }
  func.func @transform_4(%arg0: i32) -> (i32, i32) {
    %c0_i32 = arith.constant 0 : i32
    %c0_i32_0 = arith.constant 0 : i32
    %c0_i32_1 = arith.constant 0 : i32
    return %c0_i32, %c0_i32_0 : i32, i32
  }
  func.func @transform_5(%arg0: i32) -> (i32, i32) {
    %c0_i32 = arith.constant 0 : i32
    %c0_i32_0 = arith.constant 0 : i32
    %c0_i32_1 = arith.constant 0 : i32
    return %c0_i32, %c0_i32_0 : i32, i32
  }
  func.func @transform_6(%arg0: i32) -> (i32, i32, i32) {
    %c0_i32 = arith.constant 0 : i32
    %c0_i32_0 = arith.constant 0 : i32
    %c0_i32_1 = arith.constant 0 : i32
    return %arg0, %c0_i32, %c0_i32_0 : i32, i32, i32
  }
}

</mosaic_0001>

<llo_original>
// kernel: linear_attention_forward.2
$region0: #{linear_attention_forward.2}
  #allocation0 [shape = 'u32[]', space=smem, size = 0x4, offset = 0x4, fixed_abs, tag = 'smem constant byte address 0x4 - core index']
  #allocation1 [shape = 'u32[144,128]{1,0:T(1,128)}', space=vmem, size = 0x12000, scoped, tag = 'internal scratch']
  %s0 = inlined_call_operand.vmem [shape: f32[2,32,256], index: 0, kind: input, shape index: {}]
  %s1 = inlined_call_operand.vmem [shape: f32[1,32], index: 1, kind: input, shape index: {}]
  %s2 = inlined_call_operand.vmem [shape: f32[32,384], index: 2, kind: input, shape index: {}]
  %s3 = inlined_call_operand.vmem [shape: f32[2,256,128], index: 3, kind: output, shape index: {0}]
  %s4 = inlined_call_operand.vmem [shape: f32[2,256,128], index: 4, kind: output, shape index: {1}]
  %s5 = inlined_call_operand.vmem [shape: f32[2,256,128], index: 5, kind: output, shape index: {2}]
  %6 = xla_tuple %s3, %s4, %s5
  %s7 = sld [smem:[#allocation0]]
  $region61: #{linear_attention_forward.2} parent=0
    _
  %s9 = ssub.s32 1, %s7
  %s10 = scalar_select 0, %s9, %s7
  loop: start=0, step=1, limit=4
  $region2: #{linear_attention_forward.2} parent=0 // loop_pre_header
    _
  $region3: #{linear_attention_forward.2} parent=0 // loop_header
    %s12 = sphi 0, %s16
    %p13 = scmp.ge.s32.totalorder %s12, 4
    %s19 = sphi 0, %s31
    %s20 = sphi 0, %s27
    %s21 = sphi 0, %s19
    %s22 = sphi 0, %s20
    %s23 = sphi 0, %s21
    %s24 = sphi 0, %s22
    %s36 = sphi 0, %s38
    %s39 = sphi 0, %s36
    %s40 = sphi 0, %s39
    %s56 = sphi 0, %s40
    %s60 = sphi 0, %s60
    %s62 = sphi 0, %s60
    %s63 = sphi 0, %s62
    %s77 = sphi 0, %s63
    %s81 = sphi 0, %s81
    %s83 = sphi 0, %s81
    %s84 = sphi 0, %s83
    %s98 = sphi 0, %s84
    %s106 = sphi 0, %s108
    %s109 = sphi 0, %s106
    %s110 = sphi 0, %s109
    %s126 = sphi 0, %s110
    %s134 = sphi 0, %s136
    %s137 = sphi 0, %s134
    %s138 = sphi 0, %s137
    %s154 = sphi 0, %s138
    %s162 = sphi 0, %s164
    %s165 = sphi 0, %s162
    %s166 = sphi 0, %s165
    %s182 = sphi 0, %s166
  $region4: #{linear_attention_forward.2} parent=0 // loop_header_branch
    %15 = sbr.rel (%p13) target = $region8
  $region5: #{linear_attention_forward.2} parent=0 // loop_body
    %s17 = ssub.s32 %s12, 1
    %s18 = ssub.s32 %s12, 2
    %s25 = sadd.s32 1, %s20
    %p26 = scmp.ge.s32.totalorder %s25, 1
    %s27 = scalar_select %p26, 0, %s25
    %s28 = sadd.s32 1, %s19
    %s29 = scalar_select %p26, %s28, %s19
    %p30 = scmp.ge.s32.totalorder %s29, 2
    %s31 = scalar_select %p30, 0, %s29
    %s32 = ssub.s32 %s19, %s31
    %s33 = ssub.s32 %s20, %s27
    %s34 = sor.u32 %s32, %s33
    %p35 = scmp.eq.s32.totalorder %s34, 0
    %s37 = sadd.s32 %s36, 1
    %s38 = scalar_select %p35, %s36, %s37
    %p41 = pneg %p35
    %p42 = scmp.eq.s32.totalorder %s12, 1
    %p43 = por %p41, %p42
    %p44 = scmp.ne.s32.totalorder %s36, %s39
    %p45 = scmp.eq.s32.totalorder %s12, 0
    %p46 = por %p44, %p45
    %p47 = scmp.ne.s32.totalorder %s36, %s39
    %p48 = scmp.eq.s32.totalorder %s17, 1
    %p49 = por %p47, %p48
    %p50 = scmp.ne.s32.totalorder %s39, %s40
    %p51 = scmp.eq.s32.totalorder %s17, 0
    %p52 = por %p50, %p51
    %p53 = scmp.ne.s32.totalorder %s39, %s40
    %p54 = scmp.eq.s32.totalorder %s18, 1
    %p55 = por %p53, %p54
    %p57 = scmp.ne.s32.totalorder %s40, %s56
    %p58 = scmp.eq.s32.totalorder %s18, 0
    %p59 = por %p57, %p58
    %s61 = sadd.s32 %s60, 1
    %p64 = scmp.eq.s32.totalorder %s12, 1
    %p65 = scmp.ne.s32.totalorder %s60, %s62
    %p66 = scmp.eq.s32.totalorder %s12, 0
    %p67 = por %p65, %p66
    %p68 = scmp.ne.s32.totalorder %s60, %s62
    %p69 = scmp.eq.s32.totalorder %s17, 1
    %p70 = por %p68, %p69
    %p71 = scmp.ne.s32.totalorder %s62, %s63
    %p72 = scmp.eq.s32.totalorder %s17, 0
    %p73 = por %p71, %p72
    %p74 = scmp.ne.s32.totalorder %s62, %s63
    %p75 = scmp.eq.s32.totalorder %s18, 1
    %p76 = por %p74, %p75
    %p78 = scmp.ne.s32.totalorder %s63, %s77
    %p79 = scmp.eq.s32.totalorder %s18, 0
    %p80 = por %p78, %p79
    %s82 = sadd.s32 %s81, 1
    %p85 = scmp.eq.s32.totalorder %s12, 1
    %p86 = scmp.ne.s32.totalorder %s81, %s83
    %p87 = scmp.eq.s32.totalorder %s12, 0
    %p88 = por %p86, %p87
    %p89 = scmp.ne.s32.totalorder %s81, %s83
    %p90 = scmp.eq.s32.totalorder %s17, 1
    %p91 = por %p89, %p90
    %p92 = scmp.ne.s32.totalorder %s83, %s84
    %p93 = scmp.eq.s32.totalorder %s17, 0
    %p94 = por %p92, %p93
    %p95 = scmp.ne.s32.totalorder %s83, %s84
    %p96 = scmp.eq.s32.totalorder %s18, 1
    %p97 = por %p95, %p96
    %p99 = scmp.ne.s32.totalorder %s84, %s98
    %p100 = scmp.eq.s32.totalorder %s18, 0
    %p101 = por %p99, %p100
    %s102 = ssub.s32 %s19, %s31
    %s103 = ssub.s32 %s20, %s27
    %s104 = sor.u32 %s102, %s103
    %p105 = scmp.eq.s32.totalorder %s104, 0
    %s107 = sadd.s32 %s106, 1
    %s108 = scalar_select %p105, %s106, %s107
    %p111 = pneg %p105
    %p112 = scmp.eq.s32.totalorder %s12, 1
    %p113 = por %p111, %p112
    %p114 = scmp.ne.s32.totalorder %s106, %s109
    %p115 = scmp.eq.s32.totalorder %s12, 0
    %p116 = por %p114, %p115
    %p117 = scmp.ne.s32.totalorder %s106, %s109
    %p118 = scmp.eq.s32.totalorder %s17, 1
    %p119 = por %p117, %p118
    %p120 = scmp.ne.s32.totalorder %s109, %s110
    %p121 = scmp.eq.s32.totalorder %s17, 0
    %p122 = por %p120, %p121
    %p123 = scmp.ne.s32.totalorder %s109, %s110
    %p124 = scmp.eq.s32.totalorder %s18, 1
    %p125 = por %p123, %p124
    %p127 = scmp.ne.s32.totalorder %s110, %s126
    %p128 = scmp.eq.s32.totalorder %s18, 0
    %p129 = por %p127, %p128
    %s130 = ssub.s32 %s19, %s31
    %s131 = ssub.s32 %s20, %s27
    %s132 = sor.u32 %s130, %s131
    %p133 = scmp.eq.s32.totalorder %s132, 0
    %s135 = sadd.s32 %s134, 1
    %s136 = scalar_select %p133, %s134, %s135
    %p139 = pneg %p133
    %p140 = scmp.eq.s32.totalorder %s12, 1
    %p141 = por %p139, %p140
    %p142 = scmp.ne.s32.totalorder %s134, %s137
    %p143 = scmp.eq.s32.totalorder %s12, 0
    %p144 = por %p142, %p143
    %p145 = scmp.ne.s32.totalorder %s134, %s137
    %p146 = scmp.eq.s32.totalorder %s17, 1
    %p147 = por %p145, %p146
    %p148 = scmp.ne.s32.totalorder %s137, %s138
    %p149 = scmp.eq.s32.totalorder %s17, 0
    %p150 = por %p148, %p149
    %p151 = scmp.ne.s32.totalorder %s137, %s138
    %p152 = scmp.eq.s32.totalorder %s18, 1
    %p153 = por %p151, %p152
    %p155 = scmp.ne.s32.totalorder %s138, %s154
    %p156 = scmp.eq.s32.totalorder %s18, 0
    %p157 = por %p155, %p156
    %s158 = ssub.s32 %s19, %s31
    %s159 = ssub.s32 %s20, %s27
    %s160 = sor.u32 %s158, %s159
    %p161 = scmp.eq.s32.totalorder %s160, 0
    %s163 = sadd.s32 %s162, 1
    %s164 = scalar_select %p161, %s162, %s163
    %p167 = pneg %p161
    %p168 = scmp.eq.s32.totalorder %s12, 1
    %p169 = por %p167, %p168
    %p170 = scmp.ne.s32.totalorder %s162, %s165
    %p171 = scmp.eq.s32.totalorder %s12, 0
    %p172 = por %p170, %p171
    %p173 = scmp.ne.s32.totalorder %s162, %s165
    %p174 = scmp.eq.s32.totalorder %s17, 1
    %p175 = por %p173, %p174
    %p176 = scmp.ne.s32.totalorder %s165, %s166
    %p177 = scmp.eq.s32.totalorder %s17, 0
    %p178 = por %p176, %p177
    %p179 = scmp.ne.s32.totalorder %s165, %s166
    %p180 = scmp.eq.s32.totalorder %s18, 1
    %p181 = por %p179, %p180
    %p183 = scmp.ne.s32.totalorder %s166, %s182
    %p184 = scmp.eq.s32.totalorder %s18, 0
    %p185 = por %p183, %p184
    %p186 = scmp.le.s32.totalorder 1, %s12
    %p187 = scmp.lt.s32.totalorder %s12, 3
    %p188 = pnand %p186, %p187
    %p189 = pneg %p188
    // Predicated region
    $region9: #{linear_attention_forward.2} parent=5 // pred_check
      _
    $region10: #{linear_attention_forward.2} parent=5 // pred_check_branch
      %191 = sbr.rel (%p188) target = $region12
    $region11: #{linear_attention_forward.2} parent=5 // pred_region
      %s192 = ssub.s32 %s12, 1
      // Predicated region
      $region13: #{linear_attention_forward.2} parent=11 // pred_check
        %p193 = pneg %p73
      $region14: #{linear_attention_forward.2} parent=11 // pred_check_branch
        %195 = sbr.rel (%p193) target = $region16
      $region15: #{linear_attention_forward.2} parent=11 // pred_region
        _
      $region16: #{linear_attention_forward.2} parent=11 // pred_fallthru
        _
      // Predicated region
      $region17: #{linear_attention_forward.2} parent=11 // pred_check
        %p196 = pneg %p94
      $region18: #{linear_attention_forward.2} parent=11 // pred_check_branch
        %198 = sbr.rel (%p196) target = $region20
      $region19: #{linear_attention_forward.2} parent=11 // pred_region
        _
      $region20: #{linear_attention_forward.2} parent=11 // pred_fallthru
        _
    $region12: #{linear_attention_forward.2} parent=5 // pred_fallthru
      _
    %p199 = scmp.lt.s32.totalorder %s12, 2
    // Predicated region
    $region21: #{linear_attention_forward.2} parent=5 // pred_check
      %p200 = pneg %p199
    $region22: #{linear_attention_forward.2} parent=5 // pred_check_branch
      %202 = sbr.rel (%p200) target = $region24
    $region23: #{linear_attention_forward.2} parent=5 // pred_region
      // Predicated region
      $region25: #{linear_attention_forward.2} parent=23 // pred_check
        %p203 = pneg %p46
      $region26: #{linear_attention_forward.2} parent=23 // pred_check_branch
        %205 = sbr.rel (%p203) target = $region28
      $region27: #{linear_attention_forward.2} parent=23 // pred_region
        %s206 = smul.u32 2, %s20
        %p207 = scmp.lt.s32.totalorder %s19, 1
        %s208 = scalar_select %p207, %s19, 1
        %p209 = scmp.lt.s32.totalorder %s206, 1
        %s210 = scalar_select %p209, %s206, 1
        %s211 = smul.addr %s208, 8
        %s212 = sadd.s32 %s210, %s211
        %s213 = smul.addr %s212, 8
        %s214 = scalar_lea.vmem %s0, %s213
        %s215 = smul.u32 2, %s20
      $region28: #{linear_attention_forward.2} parent=23 // pred_fallthru
        _
    $region24: #{linear_attention_forward.2} parent=5 // pred_fallthru
      _
    %p216 = scmp.le.s32.totalorder 1, %s12
    %p217 = scmp.lt.s32.totalorder %s12, 3
    %p218 = pnand %p216, %p217
    %p219 = pneg %p218
    // Predicated region
    $region29: #{linear_attention_forward.2} parent=5 // pred_check
      _
    $region30: #{linear_attention_forward.2} parent=5 // pred_check_branch
      %221 = sbr.rel (%p218) target = $region32
    $region31: #{linear_attention_forward.2} parent=5 // pred_region
      %s222 = ssub.s32 %s12, 1
      %s223 = smul.u32 2, %s22
      %p224 = scmp.lt.s32.totalorder %s21, 1
      %s225 = scalar_select %p224, %s21, 1
      %p226 = scmp.lt.s32.totalorder %s223, 1
      %s227 = scalar_select %p226, %s223, 1
      %s228 = smul.addr %s225, 8
      %s229 = sadd.s32 %s227, %s228
      %s230 = smul.addr %s229, 8
      %s231 = scalar_lea.vmem %s0, %s230
      %p232 = pneg %p52
      %p233 = pneg %p49
      %p234 = pneg %p73
      %p235 = pneg %p70
      %p236 = pneg %p94
      %p237 = pneg %p91
      %p238 = pneg %p122
      %p239 = pneg %p119
      %s240 = smul.u32 32, %s22
      %p241 = scmp.lt.s32.totalorder %s21, 1
      %s242 = scalar_select %p241, %s21, 1
      %p243 = scmp.lt.s32.totalorder %s240, 31
      %s244 = scalar_select %p243, %s240, 31
      %s245 = smul.addr %s242, 32
      %s246 = sadd.s32 %s244, %s245
      %s247 = smul.addr %s246, 8
      %s248 = scalar_lea.vmem %s3, %s247
      %p249 = pneg %p150
      %p250 = pneg %p147
      %s251 = smul.u32 32, %s22
      %p252 = scmp.lt.s32.totalorder %s21, 1
      %s253 = scalar_select %p252, %s21, 1
      %p254 = scmp.lt.s32.totalorder %s251, 31
      %s255 = scalar_select %p254, %s251, 31
      %s256 = smul.addr %s253, 32
      %s257 = sadd.s32 %s255, %s256
      %s258 = smul.addr %s257, 8
      %s259 = scalar_lea.vmem %s4, %s258
      %p260 = pneg %p178
      %p261 = pneg %p175
      %s262 = smul.u32 32, %s22
      %p263 = scmp.lt.s32.totalorder %s21, 1
      %s264 = scalar_select %p263, %s21, 1
      %p265 = scmp.lt.s32.totalorder %s262, 31
      %s266 = scalar_select %p265, %s262, 31
      %s267 = smul.addr %s264, 32
      %s268 = sadd.s32 %s266, %s267
      %s269 = smul.addr %s268, 8
      %s270 = scalar_lea.vmem %s5, %s269
      %s271 = smul.u32 2, %s22
      %p272 = scmp.lt.s32.totalorder %s21, 1
      %s273 = scalar_select %p272, %s21, 1
      %p274 = scmp.lt.s32.totalorder %s271, 1
      %s275 = scalar_select %p274, %s271, 1
      %s276 = smul.addr %s273, 8
      %s277 = sadd.s32 %s275, %s276
      %s278 = smul.addr %s277, 8
      %s279 = scalar_lea.vmem %s0, %s278
      %s280 = smul.u32 2, %s22
      %s281 = smul.u32 32, %s22
      %p282 = scmp.lt.s32.totalorder %s21, 1
      %s283 = scalar_select %p282, %s21, 1
      %p284 = scmp.lt.s32.totalorder %s281, 31
      %s285 = scalar_select %p284, %s281, 31
      %s286 = smul.addr %s283, 32
      %s287 = sadd.s32 %s285, %s286
      %s288 = smul.addr %s287, 8
      %s289 = scalar_lea.vmem %s3, %s288
      %s290 = smul.u32 32, %s22
      %s291 = smul.u32 32, %s22
      %p292 = scmp.lt.s32.totalorder %s21, 1
      %s293 = scalar_select %p292, %s21, 1
      %p294 = scmp.lt.s32.totalorder %s291, 31
      %s295 = scalar_select %p294, %s291, 31
      %s296 = smul.addr %s293, 32
      %s297 = sadd.s32 %s295, %s296
      %s298 = smul.addr %s297, 8
      %s299 = scalar_lea.vmem %s4, %s298
      %s300 = smul.u32 32, %s22
      %s301 = smul.u32 32, %s22
      %p302 = scmp.lt.s32.totalorder %s21, 1
      %s303 = scalar_select %p302, %s21, 1
      %p304 = scmp.lt.s32.totalorder %s301, 31
      %s305 = scalar_select %p304, %s301, 31
      %s306 = smul.addr %s303, 32
      %s307 = sadd.s32 %s305, %s306
      %s308 = smul.addr %s307, 8
      %s309 = scalar_lea.vmem %s5, %s308
      %s310 = smul.u32 32, %s22
      %v311 = vld [vmem:[%s279] sm:$0xff]
      %v312 = vld [vmem:[%s279 + $0x8] sm:$0xff]
      %v313 = vld [vmem:[%s279 + $0x10] sm:$0xff]
      %v314 = vld [vmem:[%s279 + $0x18] sm:$0xff]
      %v315 = vld [vmem:[%s279 + $0x20] sm:$0xff]
      %v316 = vld [vmem:[%s279 + $0x28] sm:$0xff]
      %v317 = vld [vmem:[%s279 + $0x30] sm:$0xff]
      %v318 = vld [vmem:[%s279 + $0x38] sm:$0xff]
      %319 = vxpose.xlu0.b32.start [1/16] %v311, 128
      %320 = vxpose.xlu0.b32.cont [2/16] %v313, 128
      %321 = vxpose.xlu0.b32.cont [3/16] %v315, 128
      %322 = vxpose.xlu0.b32.cont [4/16] %v317, 128
      %323 = vxpose.xlu0.b32.cont [5/16] 0.0, 128
      %324 = vxpose.xlu0.b32.cont [6/16] 0.0, 128
      %325 = vxpose.xlu0.b32.cont [7/16] 0.0, 128
      %326 = vxpose.xlu0.b32.cont [8/16] 0.0, 128
      %327 = vxpose.xlu0.b32.cont [9/16] 0.0, 128
      %328 = vxpose.xlu0.b32.cont [10/16] 0.0, 128
      %329 = vxpose.xlu0.b32.cont [11/16] 0.0, 128
      %330 = vxpose.xlu0.b32.cont [12/16] 0.0, 128
      %331 = vxpose.xlu0.b32.cont [13/16] 0.0, 128
      %332 = vxpose.xlu0.b32.cont [14/16] 0.0, 128
      %333 = vxpose.xlu0.b32.cont [15/16] 0.0, 128
      %334 = vxpose.xlu0.b32.end [16/16] 0.0, 128
      %v335 = vpop.trf.xlu0
      %v336 = vpop.trf.xlu0
      %v337 = vpop.trf.xlu0
      %v338 = vpop.trf.xlu0
      %v339 = vpop.trf.xlu0
      %v340 = vpop.trf.xlu0
      %v341 = vpop.trf.xlu0
      %v342 = vpop.trf.xlu0
      %v343 = vpop.trf.xlu0
      %v344 = vpop.trf.xlu0
      %v345 = vpop.trf.xlu0
      %v346 = vpop.trf.xlu0
      %v347 = vpop.trf.xlu0
      %v348 = vpop.trf.xlu0
      %v349 = vpop.trf.xlu0
      %v350 = vpop.trf.xlu0
      %351 = vxpose.xlu0.b32.start [1/16] %v312, 128
      %352 = vxpose.xlu0.b32.cont [2/16] %v314, 128
      %353 = vxpose.xlu0.b32.cont [3/16] %v316, 128
      %354 = vxpose.xlu0.b32.cont [4/16] %v318, 128
      %355 = vxpose.xlu0.b32.cont [5/16] 0.0, 128
      %356 = vxpose.xlu0.b32.cont [6/16] 0.0, 128
      %357 = vxpose.xlu0.b32.cont [7/16] 0.0, 128
      %358 = vxpose.xlu0.b32.cont [8/16] 0.0, 128
      %359 = vxpose.xlu0.b32.cont [9/16] 0.0, 128
      %360 = vxpose.xlu0.b32.cont [10/16] 0.0, 128
      %361 = vxpose.xlu0.b32.cont [11/16] 0.0, 128
      %362 = vxpose.xlu0.b32.cont [12/16] 0.0, 128
      %363 = vxpose.xlu0.b32.cont [13/16] 0.0, 128
      %364 = vxpose.xlu0.b32.cont [14/16] 0.0, 128
      %365 = vxpose.xlu0.b32.cont [15/16] 0.0, 128
      %366 = vxpose.xlu0.b32.end [16/16] 0.0, 128
      %v367 = vpop.trf.xlu0
      %v368 = vpop.trf.xlu0
      %v369 = vpop.trf.xlu0
      %v370 = vpop.trf.xlu0
      %v371 = vpop.trf.xlu0
      %v372 = vpop.trf.xlu0
      %v373 = vpop.trf.xlu0
      %v374 = vpop.trf.xlu0
      %v375 = vpop.trf.xlu0
      %v376 = vpop.trf.xlu0
      %v377 = vpop.trf.xlu0
      %v378 = vpop.trf.xlu0
      %v379 = vpop.trf.xlu0
      %v380 = vpop.trf.xlu0
      %v381 = vpop.trf.xlu0
      %v382 = vpop.trf.xlu0
      %vm383 = vcmask 261120
      %v384 = vsel %vm383, %v335, 0.0
      %385 = vadd.xlane.f32.xlu0 %v384
      %v386 = vpop.xlane.xlu0 %385
      %v387 = vsel %vm383, %v336, 0.0
      %388 = vadd.xlane.f32.xlu0 %v387
      %v389 = vpop.xlane.xlu0 %388
      %v390 = vsel %vm383, %v337, 0.0
      %391 = vadd.xlane.f32.xlu0 %v390
      %v392 = vpop.xlane.xlu0 %391
      %v393 = vsel %vm383, %v338, 0.0
      %394 = vadd.xlane.f32.xlu0 %v393
      %v395 = vpop.xlane.xlu0 %394
      %v396 = vsel %vm383, %v339, 0.0
      %397 = vadd.xlane.f32.xlu0 %v396
      %v398 = vpop.xlane.xlu0 %397
      %v399 = vsel %vm383, %v340, 0.0
      %400 = vadd.xlane.f32.xlu0 %v399
      %v401 = vpop.xlane.xlu0 %400
      %v402 = vsel %vm383, %v341, 0.0
      %403 = vadd.xlane.f32.xlu0 %v402
      %v404 = vpop.xlane.xlu0 %403
      %v405 = vsel %vm383, %v342, 0.0
      %406 = vadd.xlane.f32.xlu0 %v405
      %v407 = vpop.xlane.xlu0 %406
      %v408 = vsel %vm383, %v343, 0.0
      %409 = vadd.xlane.f32.xlu0 %v408
      %v410 = vpop.xlane.xlu0 %409
      %v411 = vsel %vm383, %v344, 0.0
      %412 = vadd.xlane.f32.xlu0 %v411
      %v413 = vpop.xlane.xlu0 %412
      %v414 = vsel %vm383, %v345, 0.0
      %415 = vadd.xlane.f32.xlu0 %v414
      %v416 = vpop.xlane.xlu0 %415
      %v417 = vsel %vm383, %v346, 0.0
      %418 = vadd.xlane.f32.xlu0 %v417
      %v419 = vpop.xlane.xlu0 %418
      %v420 = vsel %vm383, %v347, 0.0
      %421 = vadd.xlane.f32.xlu0 %v420
      %v422 = vpop.xlane.xlu0 %421
      %v423 = vsel %vm383, %v348, 0.0
      %424 = vadd.xlane.f32.xlu0 %v423
      %v425 = vpop.xlane.xlu0 %424
      %v426 = vsel %vm383, %v349, 0.0
      %427 = vadd.xlane.f32.xlu0 %v426
      %v428 = vpop.xlane.xlu0 %427
      %v429 = vsel %vm383, %v350, 0.0
      %430 = vadd.xlane.f32.xlu0 %v429
      %v431 = vpop.xlane.xlu0 %430
      %v432 = vsel %vm383, %v367, 0.0
      %433 = vadd.xlane.f32.xlu0 %v432
      %v434 = vpop.xlane.xlu0 %433
      %v435 = vsel %vm383, %v368, 0.0
      %436 = vadd.xlane.f32.xlu0 %v435
      %v437 = vpop.xlane.xlu0 %436
      %v438 = vsel %vm383, %v369, 0.0
      %439 = vadd.xlane.f32.xlu0 %v438
      %v440 = vpop.xlane.xlu0 %439
      %v441 = vsel %vm383, %v370, 0.0
      %442 = vadd.xlane.f32.xlu0 %v441
      %v443 = vpop.xlane.xlu0 %442
      %v444 = vsel %vm383, %v371, 0.0
      %445 = vadd.xlane.f32.xlu0 %v444
      %v446 = vpop.xlane.xlu0 %445
      %v447 = vsel %vm383, %v372, 0.0
      %448 = vadd.xlane.f32.xlu0 %v447
      %v449 = vpop.xlane.xlu0 %448
      %v450 = vsel %vm383, %v373, 0.0
      %451 = vadd.xlane.f32.xlu0 %v450
      %v452 = vpop.xlane.xlu0 %451
      %v453 = vsel %vm383, %v374, 0.0
      %454 = vadd.xlane.f32.xlu0 %v453
      %v455 = vpop.xlane.xlu0 %454
      %v456 = vsel %vm383, %v375, 0.0
      %457 = vadd.xlane.f32.xlu0 %v456
      %v458 = vpop.xlane.xlu0 %457
      %v459 = vsel %vm383, %v376, 0.0
      %460 = vadd.xlane.f32.xlu0 %v459
      %v461 = vpop.xlane.xlu0 %460
      %v462 = vsel %vm383, %v377, 0.0
      %463 = vadd.xlane.f32.xlu0 %v462
      %v464 = vpop.xlane.xlu0 %463
      %v465 = vsel %vm383, %v378, 0.0
      %466 = vadd.xlane.f32.xlu0 %v465
      %v467 = vpop.xlane.xlu0 %466
      %v468 = vsel %vm383, %v379, 0.0
      %469 = vadd.xlane.f32.xlu0 %v468
      %v470 = vpop.xlane.xlu0 %469
      %v471 = vsel %vm383, %v380, 0.0
      %472 = vadd.xlane.f32.xlu0 %v471
      %v473 = vpop.xlane.xlu0 %472
      %v474 = vsel %vm383, %v381, 0.0
      %475 = vadd.xlane.f32.xlu0 %v474
      %v476 = vpop.xlane.xlu0 %475
      %v477 = vsel %vm383, %v382, 0.0
      %478 = vadd.xlane.f32.xlu0 %v477
      %v479 = vpop.xlane.xlu0 %478
      %v480 = vrcp.pop 32.0
      %v481 = vmul.f32 %v386, %v480
      %v482 = vmul.f32 %v389, %v480
      %v483 = vmul.f32 %v392, %v480
      %v484 = vmul.f32 %v395, %v480
      %v485 = vmul.f32 %v398, %v480
      %v486 = vmul.f32 %v401, %v480
      %v487 = vmul.f32 %v404, %v480
      %v488 = vmul.f32 %v407, %v480
      %v489 = vmul.f32 %v410, %v480
      %v490 = vmul.f32 %v413, %v480
      %v491 = vmul.f32 %v416, %v480
      %v492 = vmul.f32 %v419, %v480
      %v493 = vmul.f32 %v422, %v480
      %v494 = vmul.f32 %v425, %v480
      %v495 = vmul.f32 %v428, %v480
      %v496 = vmul.f32 %v431, %v480
      %v497 = vmul.f32 %v434, %v480
      %v498 = vmul.f32 %v437, %v480
      %v499 = vmul.f32 %v440, %v480
      %v500 = vmul.f32 %v443, %v480
      %v501 = vmul.f32 %v446, %v480
      %v502 = vmul.f32 %v449, %v480
      %v503 = vmul.f32 %v452, %v480
      %v504 = vmul.f32 %v455, %v480
      %v505 = vmul.f32 %v458, %v480
      %v506 = vmul.f32 %v461, %v480
      %v507 = vmul.f32 %v464, %v480
      %v508 = vmul.f32 %v467, %v480
      %v509 = vmul.f32 %v470, %v480
      %v510 = vmul.f32 %v473, %v480
      %v511 = vmul.f32 %v476, %v480
      %v512 = vmul.f32 %v479, %v480
      %v513 = vsub.f32 %v335, %v481
      %v514 = vsub.f32 %v336, %v482
      %v515 = vsub.f32 %v337, %v483
      %v516 = vsub.f32 %v338, %v484
      %v517 = vsub.f32 %v339, %v485
      %v518 = vsub.f32 %v340, %v486
      %v519 = vsub.f32 %v341, %v487
      %v520 = vsub.f32 %v342, %v488
      %v521 = vsub.f32 %v343, %v489
      %v522 = vsub.f32 %v344, %v490
      %v523 = vsub.f32 %v345, %v491
      %v524 = vsub.f32 %v346, %v492
      %v525 = vsub.f32 %v347, %v493
      %v526 = vsub.f32 %v348, %v494
      %v527 = vsub.f32 %v349, %v495
      %v528 = vsub.f32 %v350, %v496
      %v529 = vsub.f32 %v367, %v497
      %v530 = vsub.f32 %v368, %v498
      %v531 = vsub.f32 %v369, %v499
      %v532 = vsub.f32 %v370, %v500
      %v533 = vsub.f32 %v371, %v501
      %v534 = vsub.f32 %v372, %v502
      %v535 = vsub.f32 %v373, %v503
      %v536 = vsub.f32 %v374, %v504
      %v537 = vsub.f32 %v375, %v505
      %v538 = vsub.f32 %v376, %v506
      %v539 = vsub.f32 %v377, %v507
      %v540 = vsub.f32 %v378, %v508
      %v541 = vsub.f32 %v379, %v509
      %v542 = vsub.f32 %v380, %v510
      %v543 = vsub.f32 %v381, %v511
      %v544 = vsub.f32 %v382, %v512
      %v545 = vmul.f32 %v513, %v513
      %v546 = vmul.f32 %v514, %v514
      %v547 = vmul.f32 %v515, %v515
      %v548 = vmul.f32 %v516, %v516
      %v549 = vmul.f32 %v517, %v517
      %v550 = vmul.f32 %v518, %v518
      %v551 = vmul.f32 %v519, %v519
      %v552 = vmul.f32 %v520, %v520
      %v553 = vmul.f32 %v521, %v521
      %v554 = vmul.f32 %v522, %v522
      %v555 = vmul.f32 %v523, %v523
      %v556 = vmul.f32 %v524, %v524
      %v557 = vmul.f32 %v525, %v525
      %v558 = vmul.f32 %v526, %v526
      %v559 = vmul.f32 %v527, %v527
      %v560 = vmul.f32 %v528, %v528
      %v561 = vmul.f32 %v529, %v529
      %v562 = vmul.f32 %v530, %v530
      %v563 = vmul.f32 %v531, %v531
      %v564 = vmul.f32 %v532, %v532
      %v565 = vmul.f32 %v533, %v533
      %v566 = vmul.f32 %v534, %v534
      %v567 = vmul.f32 %v535, %v535
      %v568 = vmul.f32 %v536, %v536
      %v569 = vmul.f32 %v537, %v537
      %v570 = vmul.f32 %v538, %v538
      %v571 = vmul.f32 %v539, %v539
      %v572 = vmul.f32 %v540, %v540
      %v573 = vmul.f32 %v541, %v541
      %v574 = vmul.f32 %v542, %v542
      %v575 = vmul.f32 %v543, %v543
      %v576 = vmul.f32 %v544, %v544
      %v577 = vsel %vm383, %v545, 0.0
      %578 = vadd.xlane.f32.xlu0 %v577
      %v579 = vpop.xlane.xlu0 %578
      %v580 = vsel %vm383, %v546, 0.0
      %581 = vadd.xlane.f32.xlu0 %v580
      %v582 = vpop.xlane.xlu0 %581
      %v583 = vsel %vm383, %v547, 0.0
      %584 = vadd.xlane.f32.xlu0 %v583
      %v585 = vpop.xlane.xlu0 %584
      %v586 = vsel %vm383, %v548, 0.0
      %587 = vadd.xlane.f32.xlu0 %v586
      %v588 = vpop.xlane.xlu0 %587
      %v589 = vsel %vm383, %v549, 0.0
      %590 = vadd.xlane.f32.xlu0 %v589
      %v591 = vpop.xlane.xlu0 %590
      %v592 = vsel %vm383, %v550, 0.0
      %593 = vadd.xlane.f32.xlu0 %v592
      %v594 = vpop.xlane.xlu0 %593
      %v595 = vsel %vm383, %v551, 0.0
      %596 = vadd.xlane.f32.xlu0 %v595
      %v597 = vpop.xlane.xlu0 %596
      %v598 = vsel %vm383, %v552, 0.0
      %599 = vadd.xlane.f32.xlu0 %v598
      %v600 = vpop.xlane.xlu0 %599
      %v601 = vsel %vm383, %v553, 0.0
      %602 = vadd.xlane.f32.xlu0 %v601
      %v603 = vpop.xlane.xlu0 %602
      %v604 = vsel %vm383, %v554, 0.0
      %605 = vadd.xlane.f32.xlu0 %v604
      %v606 = vpop.xlane.xlu0 %605
      %v607 = vsel %vm383, %v555, 0.0
      %608 = vadd.xlane.f32.xlu0 %v607
      %v609 = vpop.xlane.xlu0 %608
      %v610 = vsel %vm383, %v556, 0.0
      %611 = vadd.xlane.f32.xlu0 %v610
      %v612 = vpop.xlane.xlu0 %611
      %v613 = vsel %vm383, %v557, 0.0
      %614 = vadd.xlane.f32.xlu0 %v613
      %v615 = vpop.xlane.xlu0 %614
      %v616 = vsel %vm383, %v558, 0.0
      %617 = vadd.xlane.f32.xlu0 %v616
      %v618 = vpop.xlane.xlu0 %617
      %v619 = vsel %vm383, %v559, 0.0
      %620 = vadd.xlane.f32.xlu0 %v619
      %v621 = vpop.xlane.xlu0 %620
      %v622 = vsel %vm383, %v560, 0.0
      %623 = vadd.xlane.f32.xlu0 %v622
      %v624 = vpop.xlane.xlu0 %623
      %v625 = vsel %vm383, %v561, 0.0
      %626 = vadd.xlane.f32.xlu0 %v625
      %v627 = vpop.xlane.xlu0 %626
      %v628 = vsel %vm383, %v562, 0.0
      %629 = vadd.xlane.f32.xlu0 %v628
      %v630 = vpop.xlane.xlu0 %629
      %v631 = vsel %vm383, %v563, 0.0
      %632 = vadd.xlane.f32.xlu0 %v631
      %v633 = vpop.xlane.xlu0 %632
      %v634 = vsel %vm383, %v564, 0.0
      %635 = vadd.xlane.f32.xlu0 %v634
      %v636 = vpop.xlane.xlu0 %635
      %v637 = vsel %vm383, %v565, 0.0
      %638 = vadd.xlane.f32.xlu0 %v637
      %v639 = vpop.xlane.xlu0 %638
      %v640 = vsel %vm383, %v566, 0.0
      %641 = vadd.xlane.f32.xlu0 %v640
      %v642 = vpop.xlane.xlu0 %641
      %v643 = vsel %vm383, %v567, 0.0
      %644 = vadd.xlane.f32.xlu0 %v643
      %v645 = vpop.xlane.xlu0 %644
      %v646 = vsel %vm383, %v568, 0.0
      %647 = vadd.xlane.f32.xlu0 %v646
      %v648 = vpop.xlane.xlu0 %647
      %v649 = vsel %vm383, %v569, 0.0
      %650 = vadd.xlane.f32.xlu0 %v649
      %v651 = vpop.xlane.xlu0 %650
      %v652 = vsel %vm383, %v570, 0.0
      %653 = vadd.xlane.f32.xlu0 %v652
      %v654 = vpop.xlane.xlu0 %653
      %v655 = vsel %vm383, %v571, 0.0
      %656 = vadd.xlane.f32.xlu0 %v655
      %v657 = vpop.xlane.xlu0 %656
      %v658 = vsel %vm383, %v572, 0.0
      %659 = vadd.xlane.f32.xlu0 %v658
      %v660 = vpop.xlane.xlu0 %659
      %v661 = vsel %vm383, %v573, 0.0
      %662 = vadd.xlane.f32.xlu0 %v661
      %v663 = vpop.xlane.xlu0 %662
      %v664 = vsel %vm383, %v574, 0.0
      %665 = vadd.xlane.f32.xlu0 %v664
      %v666 = vpop.xlane.xlu0 %665
      %v667 = vsel %vm383, %v575, 0.0
      %668 = vadd.xlane.f32.xlu0 %v667
      %v669 = vpop.xlane.xlu0 %668
      %v670 = vsel %vm383, %v576, 0.0
      %671 = vadd.xlane.f32.xlu0 %v670
      %v672 = vpop.xlane.xlu0 %671
      %v673 = vmul.f32 %v579, %v480
      %v674 = vmul.f32 %v582, %v480
      %v675 = vmul.f32 %v585, %v480
      %v676 = vmul.f32 %v588, %v480
      %v677 = vmul.f32 %v591, %v480
      %v678 = vmul.f32 %v594, %v480
      %v679 = vmul.f32 %v597, %v480
      %v680 = vmul.f32 %v600, %v480
      %v681 = vmul.f32 %v603, %v480
      %v682 = vmul.f32 %v606, %v480
      %v683 = vmul.f32 %v609, %v480
      %v684 = vmul.f32 %v612, %v480
      %v685 = vmul.f32 %v615, %v480
      %v686 = vmul.f32 %v618, %v480
      %v687 = vmul.f32 %v621, %v480
      %v688 = vmul.f32 %v624, %v480
      %v689 = vmul.f32 %v627, %v480
      %v690 = vmul.f32 %v630, %v480
      %v691 = vmul.f32 %v633, %v480
      %v692 = vmul.f32 %v636, %v480
      %v693 = vmul.f32 %v639, %v480
      %v694 = vmul.f32 %v642, %v480
      %v695 = vmul.f32 %v645, %v480
      %v696 = vmul.f32 %v648, %v480
      %v697 = vmul.f32 %v651, %v480
      %v698 = vmul.f32 %v654, %v480
      %v699 = vmul.f32 %v657, %v480
      %v700 = vmul.f32 %v660, %v480
      %v701 = vmul.f32 %v663, %v480
      %v702 = vmul.f32 %v666, %v480
      %v703 = vmul.f32 %v669, %v480
      %v704 = vmul.f32 %v672, %v480
      %v705 = vadd.f32 %v673, 1e-05
      %v706 = vadd.f32 %v674, 1e-05
      %v707 = vadd.f32 %v675, 1e-05
      %v708 = vadd.f32 %v676, 1e-05
      %v709 = vadd.f32 %v677, 1e-05
      %v710 = vadd.f32 %v678, 1e-05
      %v711 = vadd.f32 %v679, 1e-05
      %v712 = vadd.f32 %v680, 1e-05
      %v713 = vadd.f32 %v681, 1e-05
      %v714 = vadd.f32 %v682, 1e-05
      %v715 = vadd.f32 %v683, 1e-05
      %v716 = vadd.f32 %v684, 1e-05
      %v717 = vadd.f32 %v685, 1e-05
      %v718 = vadd.f32 %v686, 1e-05
      %v719 = vadd.f32 %v687, 1e-05
      %v720 = vadd.f32 %v688, 1e-05
      %v721 = vadd.f32 %v689, 1e-05
      %v722 = vadd.f32 %v690, 1e-05
      %v723 = vadd.f32 %v691, 1e-05
      %v724 = vadd.f32 %v692, 1e-05
      %v725 = vadd.f32 %v693, 1e-05
      %v726 = vadd.f32 %v694, 1e-05
      %v727 = vadd.f32 %v695, 1e-05
      %v728 = vadd.f32 %v696, 1e-05
      %v729 = vadd.f32 %v697, 1e-05
      %v730 = vadd.f32 %v698, 1e-05
      %v731 = vadd.f32 %v699, 1e-05
      %v732 = vadd.f32 %v700, 1e-05
      %v733 = vadd.f32 %v701, 1e-05
      %v734 = vadd.f32 %v702, 1e-05
      %v735 = vadd.f32 %v703, 1e-05
      %v736 = vadd.f32 %v704, 1e-05
      %v737 = vrsqrt.pop %v705
      %v738 = vrsqrt.pop %v706
      %v739 = vrsqrt.pop %v707
      %v740 = vrsqrt.pop %v708
      %v741 = vrsqrt.pop %v709
      %v742 = vrsqrt.pop %v710
      %v743 = vrsqrt.pop %v711
      %v744 = vrsqrt.pop %v712
      %v745 = vrsqrt.pop %v713
      %v746 = vrsqrt.pop %v714
      %v747 = vrsqrt.pop %v715
      %v748 = vrsqrt.pop %v716
      %v749 = vrsqrt.pop %v717
      %v750 = vrsqrt.pop %v718
      %v751 = vrsqrt.pop %v719
      %v752 = vrsqrt.pop %v720
      %v753 = vrsqrt.pop %v721
      %v754 = vrsqrt.pop %v722
      %v755 = vrsqrt.pop %v723
      %v756 = vrsqrt.pop %v724
      %v757 = vrsqrt.pop %v725
      %v758 = vrsqrt.pop %v726
      %v759 = vrsqrt.pop %v727
      %v760 = vrsqrt.pop %v728
      %v761 = vrsqrt.pop %v729
      %v762 = vrsqrt.pop %v730
      %v763 = vrsqrt.pop %v731
      %v764 = vrsqrt.pop %v732
      %v765 = vrsqrt.pop %v733
      %v766 = vrsqrt.pop %v734
      %v767 = vrsqrt.pop %v735
      %v768 = vrsqrt.pop %v736
      %v769 = vmul.f32 %v513, %v737
      %v770 = vmul.f32 %v514, %v738
      %v771 = vmul.f32 %v515, %v739
      %v772 = vmul.f32 %v516, %v740
      %v773 = vmul.f32 %v517, %v741
      %v774 = vmul.f32 %v518, %v742
      %v775 = vmul.f32 %v519, %v743
      %v776 = vmul.f32 %v520, %v744
      %v777 = vmul.f32 %v521, %v745
      %v778 = vmul.f32 %v522, %v746
      %v779 = vmul.f32 %v523, %v747
      %v780 = vmul.f32 %v524, %v748
      %v781 = vmul.f32 %v525, %v749
      %v782 = vmul.f32 %v526, %v750
      %v783 = vmul.f32 %v527, %v751
      %v784 = vmul.f32 %v528, %v752
      %v785 = vmul.f32 %v529, %v753
      %v786 = vmul.f32 %v530, %v754
      %v787 = vmul.f32 %v531, %v755
      %v788 = vmul.f32 %v532, %v756
      %v789 = vmul.f32 %v533, %v757
      %v790 = vmul.f32 %v534, %v758
      %v791 = vmul.f32 %v535, %v759
      %v792 = vmul.f32 %v536, %v760
      %v793 = vmul.f32 %v537, %v761
      %v794 = vmul.f32 %v538, %v762
      %v795 = vmul.f32 %v539, %v763
      %v796 = vmul.f32 %v540, %v764
      %v797 = vmul.f32 %v541, %v765
      %v798 = vmul.f32 %v542, %v766
      %v799 = vmul.f32 %v543, %v767
      %v800 = vmul.f32 %v544, %v768
      %v801 = vld [vmem:[%s1] sm:$0x1]
      %v803 = vlaneseq
      %v804 = vshrl.u32 %v803, 7
      %v805 = vsub.s32 0, %v804
      %v806 = vrot.slane %v801, %v805
      %v808 = vmul.f32 %v769, %v806
      %v809 = vmul.f32 %v770, %v806
      %v810 = vmul.f32 %v771, %v806
      %v811 = vmul.f32 %v772, %v806
      %v812 = vmul.f32 %v773, %v806
      %v813 = vmul.f32 %v774, %v806
      %v814 = vmul.f32 %v775, %v806
      %v815 = vmul.f32 %v776, %v806
      %v816 = vmul.f32 %v777, %v806
      %v817 = vmul.f32 %v778, %v806
      %v818 = vmul.f32 %v779, %v806
      %v819 = vmul.f32 %v780, %v806
      %v820 = vmul.f32 %v781, %v806
      %v821 = vmul.f32 %v782, %v806
      %v822 = vmul.f32 %v783, %v806
      %v823 = vmul.f32 %v784, %v806
      %v824 = vmul.f32 %v785, %v806
      %v825 = vmul.f32 %v786, %v806
      %v826 = vmul.f32 %v787, %v806
      %v827 = vmul.f32 %v788, %v806
      %v828 = vmul.f32 %v789, %v806
      %v829 = vmul.f32 %v790, %v806
      %v830 = vmul.f32 %v791, %v806
      %v831 = vmul.f32 %v792, %v806
      %v832 = vmul.f32 %v793, %v806
      %v833 = vmul.f32 %v794, %v806
      %v834 = vmul.f32 %v795, %v806
      %v835 = vmul.f32 %v796, %v806
      %v836 = vmul.f32 %v797, %v806
      %v837 = vmul.f32 %v798, %v806
      %v838 = vmul.f32 %v799, %v806
      %v839 = vmul.f32 %v800, %v806
      %v840 = vld [vmem:[%s2] sm:$0xff]
      %v841 = vld [vmem:[%s2 + $0x8] sm:$0xff]
      %v842 = vld [vmem:[%s2 + $0x10] sm:$0xff]
      %v843 = vld [vmem:[%s2 + $0x18] sm:$0xff]
      %v844 = vld [vmem:[%s2 + $0x20] sm:$0xff]
      %v845 = vld [vmem:[%s2 + $0x28] sm:$0xff]
      %v846 = vld [vmem:[%s2 + $0x30] sm:$0xff]
      %v847 = vld [vmem:[%s2 + $0x38] sm:$0xff]
      %v848 = vld [vmem:[%s2 + $0x40] sm:$0xff]
      %v849 = vld [vmem:[%s2 + $0x48] sm:$0xff]
      %v850 = vld [vmem:[%s2 + $0x50] sm:$0xff]
      %v851 = vld [vmem:[%s2 + $0x58] sm:$0xff]
      %v853 = vsel %vm383, %v808, 0
      %v856 = vsel %vm383, %v809, 0
      %v859 = vsel %vm383, %v810, 0
      %v862 = vsel %vm383, %v811, 0
      %v865 = vsel %vm383, %v812, 0
      %v868 = vsel %vm383, %v813, 0
      %v871 = vsel %vm383, %v814, 0
      %v874 = vsel %vm383, %v815, 0
      %v877 = vsel %vm383, %v816, 0
      %v880 = vsel %vm383, %v817, 0
      %v883 = vsel %vm383, %v818, 0
      %v886 = vsel %vm383, %v819, 0
      %v889 = vsel %vm383, %v820, 0
      %v892 = vsel %vm383, %v821, 0
      %v895 = vsel %vm383, %v822, 0
      %v898 = vsel %vm383, %v823, 0
      %v901 = vsel %vm383, %v824, 0
      %v904 = vsel %vm383, %v825, 0
      %v907 = vsel %vm383, %v826, 0
      %v910 = vsel %vm383, %v827, 0
      %v913 = vsel %vm383, %v828, 0
      %v916 = vsel %vm383, %v829, 0
      %v919 = vsel %vm383, %v830, 0
      %v922 = vsel %vm383, %v831, 0
      %v925 = vsel %vm383, %v832, 0
      %v928 = vsel %vm383, %v833, 0
      %v931 = vsel %vm383, %v834, 0
      %v934 = vsel %vm383, %v835, 0
      %v937 = vsel %vm383, %v836, 0
      %v940 = vsel %vm383, %v837, 0
      %v943 = vsel %vm383, %v838, 0
      %v946 = vsel %vm383, %v839, 0
      %948 = vmatprep.subr.mxu0 %v841
      %949 = vmatpush1.msra.mxu0 %v840
      %950 = vmatprep.subr.mxu0 %v844
      %951 = vmatpush1.msra.mxu0 %v843
      %952 = vmatprep.subr.mxu0 %v847
      %953 = vmatpush1.msra.mxu0 %v846
      %954 = vmatprep.subr.mxu0 %v850
      %955 = vmatpush1.msra.mxu0 %v849
      %956 = vmatprep.subr.mxu0 0.0
      %957 = vmatpush1.msra.mxu0 0.0
      %958 = vmatprep.subr.mxu0 0.0
      %959 = vmatpush1.msra.mxu0 0.0
      %960 = vmatprep.subr.mxu0 0.0
      %961 = vmatpush1.msra.mxu0 0.0
      %962 = vmatprep.subr.mxu0 0.0
      %963 = vmatpush1.msra.mxu0 0.0
      %964 = vmatprep.subr.mxu0 0.0
      %965 = vmatpush1.msra.mxu0 0.0
      %966 = vmatprep.subr.mxu0 0.0
      %967 = vmatpush1.msra.mxu0 0.0
      %968 = vmatprep.subr.mxu0 0.0
      %969 = vmatpush1.msra.mxu0 0.0
      %970 = vmatprep.subr.mxu0 0.0
      %971 = vmatpush1.msra.mxu0 0.0
      %972 = vmatprep.subr.mxu0 0.0
      %973 = vmatpush1.msra.mxu0 0.0
      %974 = vmatprep.subr.mxu0 0.0
      %975 = vmatpush1.msra.mxu0 0.0
      %976 = vmatprep.subr.mxu0 0.0
      %977 = vmatpush1.msra.mxu0 0.0
      %978 = vmatprep.subr.mxu0 0.0
      %979 = vmatpush1.msra.mxu0 0.0
      %980 = vmatprep.subr.mxu0 0.0
      %981 = vmatpush1.msra.mxu0 0.0
      %982 = vmatprep.subr.mxu0 0.0
      %983 = vmatpush1.msra.mxu0 0.0
      %984 = vmatprep.subr.mxu0 0.0
      %985 = vmatpush1.msra.mxu0 0.0
      %986 = vmatprep.subr.mxu0 0.0
      %987 = vmatpush1.msra.mxu0 0.0
      %988 = vmatprep.subr.mxu0 0.0
      %989 = vmatpush1.msra.mxu0 0.0
      %990 = vmatprep.subr.mxu0 0.0
      %991 = vmatpush1.msra.mxu0 0.0
      %992 = vmatprep.subr.mxu0 0.0
      %993 = vmatpush1.msra.mxu0 0.0
      %994 = vmatprep.subr.mxu0 0.0
      %995 = vmatpush1.msra.mxu0 0.0
      %996 = vmatprep.subr.mxu0 0.0
      %997 = vmatpush1.msra.mxu0 0.0
      %998 = vmatprep.subr.mxu0 0.0
      %999 = vmatpush1.msra.mxu0 0.0
      %1000 = vmatprep.subr.mxu0 0.0
      %1001 = vmatpush1.msra.mxu0 0.0
      %1002 = vmatprep.subr.mxu0 0.0
      %1003 = vmatpush1.msra.mxu0 0.0
      %1004 = vmatprep.subr.mxu0 0.0
      %1005 = vmatpush1.msra.mxu0 0.0
      %1006 = vmatprep.subr.mxu0 0.0
      %1007 = vmatpush1.msra.mxu0 0.0
      %1008 = vmatprep.subr.mxu0 0.0
      %1009 = vmatpush1.msra.mxu0 0.0
      %1010 = vmatprep.subr.mxu0 0.0
      %1011 = vmatpush1.msra.mxu0 0.0
      %1012 = vmatprep.mubr.f32.mxu0 0.0
      %1013 = vmatmul.mubr.f32.gmra.mrb[0].mxu0 %v853
      %v1014 = vpop.f32.mrb[0].mxu0
      %v1015 = vadd.f32 0.0, %v1014
      %v1016 = vpop.f32.mrb[0].mxu0
      %v1017 = vadd.f32 0.0, %v1016
      %1018 = vmatprep.mubr.f32.mxu0 0.0
      %1019 = vmatmul.mubr.f32.gmra.mrb[0].mxu0 %v856
      %v1020 = vpop.f32.mrb[0].mxu0
      %v1021 = vadd.f32 0.0, %v1020
      %v1022 = vpop.f32.mrb[0].mxu0
      %v1023 = vadd.f32 0.0, %v1022
      %1024 = vmatprep.mubr.f32.mxu0 0.0
      %1025 = vmatmul.mubr.f32.gmra.mrb[0].mxu0 %v859
      %v1026 = vpop.f32.mrb[0].mxu0
      %v1027 = vadd.f32 0.0, %v1026
      %v1028 = vpop.f32.mrb[0].mxu0
      %v1029 = vadd.f32 0.0, %v1028
      %1030 = vmatprep.mubr.f32.mxu0 0.0
      %1031 = vmatmul.mubr.f32.gmra.mrb[0].mxu0 %v862
      %v1032 = vpop.f32.mrb[0].mxu0
      %v1033 = vadd.f32 0.0, %v1032
      %v1034 = vpop.f32.mrb[0].mxu0
      %v1035 = vadd.f32 0.0, %v1034
      %1036 = vmatprep.mubr.f32.mxu0 0.0
      %1037 = vmatmul.mubr.f32.gmra.mrb[0].mxu0 %v865
      %v1038 = vpop.f32.mrb[0].mxu0
      %v1039 = vadd.f32 0.0, %v1038
      %v1040 = vpop.f32.mrb[0].mxu0
      %v1041 = vadd.f32 0.0, %v1040
      %1042 = vmatprep.mubr.f32.mxu0 0.0
      %1043 = vmatmul.mubr.f32.gmra.mrb[0].mxu0 %v868
      %v1044 = vpop.f32.mrb[0].mxu0
      %v1045 = vadd.f32 0.0, %v1044
      %v1046 = vpop.f32.mrb[0].mxu0
      %v1047 = vadd.f32 0.0, %v1046
      %1048 = vmatprep.mubr.f32.mxu0 0.0
      %1049 = vmatmul.mubr.f32.gmra.mrb[0].mxu0 %v871
      %v1050 = vpop.f32.mrb[0].mxu0
      %v1051 = vadd.f32 0.0, %v1050
      %v1052 = vpop.f32.mrb[0].mxu0
      %v1053 = vadd.f32 0.0, %v1052
      %1054 = vmatprep.mubr.f32.mxu0 0.0
      %1055 = vmatmul.mubr.f32.gmra.mrb[0].mxu0 %v874
      %v1056 = vpop.f32.mrb[0].mxu0
      %v1057 = vadd.f32 0.0, %v1056
      %v1058 = vpop.f32.mrb[0].mxu0
      %v1059 = vadd.f32 0.0, %v1058
      %1060 = vmatprep.mubr.f32.mxu0 0.0
      %1061 = vmatmul.mubr.f32.gmra.mrb[0].mxu0 %v877
      %v1062 = vpop.f32.mrb[0].mxu0
      %v1063 = vadd.f32 0.0, %v1062
      %v1064 = vpop.f32.mrb[0].mxu0
      %v1065 = vadd.f32 0.0, %v1064
      %1066 = vmatprep.mubr.f32.mxu0 0.0
      %1067 = vmatmul.mubr.f32.gmra.mrb[0].mxu0 %v880
      %v1068 = vpop.f32.mrb[0].mxu0
      %v1069 = vadd.f32 0.0, %v1068
      %v1070 = vpop.f32.mrb[0].mxu0
      %v1071 = vadd.f32 0.0, %v1070
      %1072 = vmatprep.mubr.f32.mxu0 0.0
      %1073 = vmatmul.mubr.f32.gmra.mrb[0].mxu0 %v883
      %v1074 = vpop.f32.mrb[0].mxu0
      %v1075 = vadd.f32 0.0, %v1074
      %v1076 = vpop.f32.mrb[0].mxu0
      %v1077 = vadd.f32 0.0, %v1076
      %1078 = vmatprep.mubr.f32.mxu0 0.0
      %1079 = vmatmul.mubr.f32.gmra.mrb[0].mxu0 %v886
      %v1080 = vpop.f32.mrb[0].mxu0
      %v1081 = vadd.f32 0.0, %v1080
      %v1082 = vpop.f32.mrb[0].mxu0
      %v1083 = vadd.f32 0.0, %v1082
      %1084 = vmatprep.mubr.f32.mxu0 0.0
      %1085 = vmatmul.mubr.f32.gmra.mrb[0].mxu0 %v889
      %v1086 = vpop.f32.mrb[0].mxu0
      %v1087 = vadd.f32 0.0, %v1086
      %v1088 = vpop.f32.mrb[0].mxu0
      %v1089 = vadd.f32 0.0, %v1088
      %1090 = vmatprep.mubr.f32.mxu0 0.0
      %1091 = vmatmul.mubr.f32.gmra.mrb[0].mxu0 %v892
      %v1092 = vpop.f32.mrb[0].mxu0
      %v1093 = vadd.f32 0.0, %v1092
      %v1094 = vpop.f32.mrb[0].mxu0
      %v1095 = vadd.f32 0.0, %v1094
      %1096 = vmatprep.mubr.f32.mxu0 0.0
      %1097 = vmatmul.mubr.f32.gmra.mrb[0].mxu0 %v895
      %v1098 = vpop.f32.mrb[0].mxu0
      %v1099 = vadd.f32 0.0, %v1098
      %v1100 = vpop.f32.mrb[0].mxu0
      %v1101 = vadd.f32 0.0, %v1100
      %1102 = vmatprep.mubr.f32.mxu0 0.0
      %1103 = vmatmul.mubr.f32.gmra.mrb[0].mxu0 %v898
      %v1104 = vpop.f32.mrb[0].mxu0
      %v1105 = vadd.f32 0.0, %v1104
      %v1106 = vpop.f32.mrb[0].mxu0
      %v1107 = vadd.f32 0.0, %v1106
      %1108 = vmatprep.mubr.f32.mxu0 0.0
      %1109 = vmatmul.mubr.f32.gmra.mrb[0].mxu0 %v901
      %v1110 = vpop.f32.mrb[0].mxu0
      %v1111 = vadd.f32 0.0, %v1110
      %v1112 = vpop.f32.mrb[0].mxu0
      %v1113 = vadd.f32 0.0, %v1112
      %1114 = vmatprep.mubr.f32.mxu0 0.0
      %1115 = vmatmul.mubr.f32.gmra.mrb[0].mxu0 %v904
      %v1116 = vpop.f32.mrb[0].mxu0
      %v1117 = vadd.f32 0.0, %v1116
      %v1118 = vpop.f32.mrb[0].mxu0
      %v1119 = vadd.f32 0.0, %v1118
      %1120 = vmatprep.mubr.f32.mxu0 0.0
      %1121 = vmatmul.mubr.f32.gmra.mrb[0].mxu0 %v907
      %v1122 = vpop.f32.mrb[0].mxu0
      %v1123 = vadd.f32 0.0, %v1122
      %v1124 = vpop.f32.mrb[0].mxu0
      %v1125 = vadd.f32 0.0, %v1124
      %1126 = vmatprep.mubr.f32.mxu0 0.0
      %1127 = vmatmul.mubr.f32.gmra.mrb[0].mxu0 %v910
      %v1128 = vpop.f32.mrb[0].mxu0
      %v1129 = vadd.f32 0.0, %v1128
      %v1130 = vpop.f32.mrb[0].mxu0
      %v1131 = vadd.f32 0.0, %v1130
      %1132 = vmatprep.mubr.f32.mxu0 0.0
      %1133 = vmatmul.mubr.f32.gmra.mrb[0].mxu0 %v913
      %v1134 = vpop.f32.mrb[0].mxu0
      %v1135 = vadd.f32 0.0, %v1134
      %v1136 = vpop.f32.mrb[0].mxu0
      %v1137 = vadd.f32 0.0, %v1136
      %1138 = vmatprep.mubr.f32.mxu0 0.0
      %1139 = vmatmul.mubr.f32.gmra.mrb[0].mxu0 %v916
      %v1140 = vpop.f32.mrb[0].mxu0
      %v1141 = vadd.f32 0.0, %v1140
      %v1142 = vpop.f32.mrb[0].mxu0
      %v1143 = vadd.f32 0.0, %v1142
      %1144 = vmatprep.mubr.f32.mxu0 0.0
      %1145 = vmatmul.mubr.f32.gmra.mrb[0].mxu0 %v919
      %v1146 = vpop.f32.mrb[0].mxu0
      %v1147 = vadd.f32 0.0, %v1146
      %v1148 = vpop.f32.mrb[0].mxu0
      %v1149 = vadd.f32 0.0, %v1148
      %1150 = vmatprep.mubr.f32.mxu0 0.0
      %1151 = vmatmul.mubr.f32.gmra.mrb[0].mxu0 %v922
      %v1152 = vpop.f32.mrb[0].mxu0
      %v1153 = vadd.f32 0.0, %v1152
      %v1154 = vpop.f32.mrb[0].mxu0
      %v1155 = vadd.f32 0.0, %v1154
      %1156 = vmatprep.mubr.f32.mxu0 0.0
      %1157 = vmatmul.mubr.f32.gmra.mrb[0].mxu0 %v925
      %v1158 = vpop.f32.mrb[0].mxu0
      %v1159 = vadd.f32 0.0, %v1158
      %v1160 = vpop.f32.mrb[0].mxu0
      %v1161 = vadd.f32 0.0, %v1160
      %1162 = vmatprep.mubr.f32.mxu0 0.0
      %1163 = vmatmul.mubr.f32.gmra.mrb[0].mxu0 %v928
      %v1164 = vpop.f32.mrb[0].mxu0
      %v1165 = vadd.f32 0.0, %v1164
      %v1166 = vpop.f32.mrb[0].mxu0
      %v1167 = vadd.f32 0.0, %v1166
      %1168 = vmatprep.mubr.f32.mxu0 0.0
      %1169 = vmatmul.mubr.f32.gmra.mrb[0].mxu0 %v931
      %v1170 = vpop.f32.mrb[0].mxu0
      %v1171 = vadd.f32 0.0, %v1170
      %v1172 = vpop.f32.mrb[0].mxu0
      %v1173 = vadd.f32 0.0, %v1172
      %1174 = vmatprep.mubr.f32.mxu0 0.0
      %1175 = vmatmul.mubr.f32.gmra.mrb[0].mxu0 %v934
      %v1176 = vpop.f32.mrb[0].mxu0
      %v1177 = vadd.f32 0.0, %v1176
      %v1178 = vpop.f32.mrb[0].mxu0
      %v1179 = vadd.f32 0.0, %v1178
      %1180 = vmatprep.mubr.f32.mxu0 0.0
      %1181 = vmatmul.mubr.f32.gmra.mrb[0].mxu0 %v937
      %v1182 = vpop.f32.mrb[0].mxu0
      %v1183 = vadd.f32 0.0, %v1182
      %v1184 = vpop.f32.mrb[0].mxu0
      %v1185 = vadd.f32 0.0, %v1184
      %1186 = vmatprep.mubr.f32.mxu0 0.0
      %1187 = vmatmul.mubr.f32.gmra.mrb[0].mxu0 %v940
      %v1188 = vpop.f32.mrb[0].mxu0
      %v1189 = vadd.f32 0.0, %v1188
      %v1190 = vpop.f32.mrb[0].mxu0
      %v1191 = vadd.f32 0.0, %v1190
      %1192 = vmatprep.mubr.f32.mxu0 0.0
      %1193 = vmatmul.mubr.f32.gmra.mrb[0].mxu0 %v943
      %v1194 = vpop.f32.mrb[0].mxu0
      %v1195 = vadd.f32 0.0, %v1194
      %v1196 = vpop.f32.mrb[0].mxu0
      %v1197 = vadd.f32 0.0, %v1196
      %1198 = vmatprep.mubr.f32.mxu0 0.0
      %1199 = vmatmul.mubr.f32.gmra.mrb[0].mxu0 %v946
      %v1200 = vpop.f32.mrb[0].mxu0
      %v1201 = vadd.f32 0.0, %v1200
      %v1202 = vpop.f32.mrb[0].mxu0
      %v1203 = vadd.f32 0.0, %v1202
      %1204 = vdwg.mxu0
      %1205 = vmatprep.subr.mxu0 0.0
      %1206 = vmatpush1.msra.mxu0 %v842
      %1207 = vmatprep.subr.mxu0 0.0
      %1208 = vmatpush1.msra.mxu0 %v845
      %1209 = vmatprep.subr.mxu0 0.0
      %1210 = vmatpush1.msra.mxu0 %v848
      %1211 = vmatprep.subr.mxu0 0.0
      %1212 = vmatpush1.msra.mxu0 %v851
      %1213 = vmatprep.subr.mxu0 0.0
      %1214 = vmatpush1.msra.mxu0 0.0
      %1215 = vmatprep.subr.mxu0 0.0
      %1216 = vmatpush1.msra.mxu0 0.0
      %1217 = vmatprep.subr.mxu0 0.0
      %1218 = vmatpush1.msra.mxu0 0.0
      %1219 = vmatprep.subr.mxu0 0.0
      %1220 = vmatpush1.msra.mxu0 0.0
      %1221 = vmatprep.subr.mxu0 0.0
      %1222 = vmatpush1.msra.mxu0 0.0
      %1223 = vmatprep.subr.mxu0 0.0
      %1224 = vmatpush1.msra.mxu0 0.0
      %1225 = vmatprep.subr.mxu0 0.0
      %1226 = vmatpush1.msra.mxu0 0.0
      %1227 = vmatprep.subr.mxu0 0.0
      %1228 = vmatpush1.msra.mxu0 0.0
      %1229 = vmatprep.subr.mxu0 0.0
      %1230 = vmatpush1.msra.mxu0 0.0
      %1231 = vmatprep.subr.mxu0 0.0
      %1232 = vmatpush1.msra.mxu0 0.0
      %1233 = vmatprep.subr.mxu0 0.0
      %1234 = vmatpush1.msra.mxu0 0.0
      %1235 = vmatprep.subr.mxu0 0.0
      %1236 = vmatpush1.msra.mxu0 0.0
      %1237 = vmatprep.subr.mxu0 0.0
      %1238 = vmatpush1.msra.mxu0 0.0
      %1239 = vmatprep.subr.mxu0 0.0
      %1240 = vmatpush1.msra.mxu0 0.0
      %1241 = vmatprep.subr.mxu0 0.0
      %1242 = vmatpush1.msra.mxu0 0.0
      %1243 = vmatprep.subr.mxu0 0.0
      %1244 = vmatpush1.msra.mxu0 0.0
      %1245 = vmatprep.subr.mxu0 0.0
      %1246 = vmatpush1.msra.mxu0 0.0
      %1247 = vmatprep.subr.mxu0 0.0
      %1248 = vmatpush1.msra.mxu0 0.0
      %1249 = vmatprep.subr.mxu0 0.0
      %1250 = vmatpush1.msra.mxu0 0.0
      %1251 = vmatprep.subr.mxu0 0.0
      %1252 = vmatpush1.msra.mxu0 0.0
      %1253 = vmatprep.subr.mxu0 0.0
      %1254 = vmatpush1.msra.mxu0 0.0
      %1255 = vmatprep.subr.mxu0 0.0
      %1256 = vmatpush1.msra.mxu0 0.0
      %1257 = vmatprep.subr.mxu0 0.0
      %1258 = vmatpush1.msra.mxu0 0.0
      %1259 = vmatprep.subr.mxu0 0.0
      %1260 = vmatpush1.msra.mxu0 0.0
      %1261 = vmatprep.subr.mxu0 0.0
      %1262 = vmatpush1.msra.mxu0 0.0
      %1263 = vmatprep.subr.mxu0 0.0
      %1264 = vmatpush1.msra.mxu0 0.0
      %1265 = vmatprep.subr.mxu0 0.0
      %1266 = vmatpush1.msra.mxu0 0.0
      %1267 = vmatprep.subr.mxu0 0.0
      %1268 = vmatpush1.msra.mxu0 0.0
      %1269 = vmatprep.mubr.f32.mxu0 0.0
      %1270 = vmatmul.mubr.f32.gmra.mrb[0].mxu0 %v853
      %v1271 = vpop.f32.mrb[0].mxu0
      %v1272 = vadd.f32 0.0, %v1271
      %v1273 = vpop.f32.mrb[0].mxu0
      %1274 = vmatprep.mubr.f32.mxu0 0.0
      %1275 = vmatmul.mubr.f32.gmra.mrb[0].mxu0 %v856
      %v1276 = vpop.f32.mrb[0].mxu0
      %v1277 = vadd.f32 0.0, %v1276
      %v1278 = vpop.f32.mrb[0].mxu0
      %1279 = vmatprep.mubr.f32.mxu0 0.0
      %1280 = vmatmul.mubr.f32.gmra.mrb[0].mxu0 %v859
      %v1281 = vpop.f32.mrb[0].mxu0
      %v1282 = vadd.f32 0.0, %v1281
      %v1283 = vpop.f32.mrb[0].mxu0
      %1284 = vmatprep.mubr.f32.mxu0 0.0
      %1285 = vmatmul.mubr.f32.gmra.mrb[0].mxu0 %v862
      %v1286 = vpop.f32.mrb[0].mxu0
      %v1287 = vadd.f32 0.0, %v1286
      %v1288 = vpop.f32.mrb[0].mxu0
      %1289 = vmatprep.mubr.f32.mxu0 0.0
      %1290 = vmatmul.mubr.f32.gmra.mrb[0].mxu0 %v865
      %v1291 = vpop.f32.mrb[0].mxu0
      %v1292 = vadd.f32 0.0, %v1291
      %v1293 = vpop.f32.mrb[0].mxu0
      %1294 = vmatprep.mubr.f32.mxu0 0.0
      %1295 = vmatmul.mubr.f32.gmra.mrb[0].mxu0 %v868
      %v1296 = vpop.f32.mrb[0].mxu0
      %v1297 = vadd.f32 0.0, %v1296
      %v1298 = vpop.f32.mrb[0].mxu0
      %1299 = vmatprep.mubr.f32.mxu0 0.0
      %1300 = vmatmul.mubr.f32.gmra.mrb[0].mxu0 %v871
      %v1301 = vpop.f32.mrb[0].mxu0
      %v1302 = vadd.f32 0.0, %v1301
      %v1303 = vpop.f32.mrb[0].mxu0
      %1304 = vmatprep.mubr.f32.mxu0 0.0
      %1305 = vmatmul.mubr.f32.gmra.mrb[0].mxu0 %v874
      %v1306 = vpop.f32.mrb[0].mxu0
      %v1307 = vadd.f32 0.0, %v1306
      %v1308 = vpop.f32.mrb[0].mxu0
      %1309 = vmatprep.mubr.f32.mxu0 0.0
      %1310 = vmatmul.mubr.f32.gmra.mrb[0].mxu0 %v877
      %v1311 = vpop.f32.mrb[0].mxu0
      %v1312 = vadd.f32 0.0, %v1311
      %v1313 = vpop.f32.mrb[0].mxu0
      %1314 = vmatprep.mubr.f32.mxu0 0.0
      %1315 = vmatmul.mubr.f32.gmra.mrb[0].mxu0 %v880
      %v1316 = vpop.f32.mrb[0].mxu0
      %v1317 = vadd.f32 0.0, %v1316
      %v1318 = vpop.f32.mrb[0].mxu0
      %1319 = vmatprep.mubr.f32.mxu0 0.0
      %1320 = vmatmul.mubr.f32.gmra.mrb[0].mxu0 %v883
      %v1321 = vpop.f32.mrb[0].mxu0
      %v1322 = vadd.f32 0.0, %v1321
      %v1323 = vpop.f32.mrb[0].mxu0
      %1324 = vmatprep.mubr.f32.mxu0 0.0
      %1325 = vmatmul.mubr.f32.gmra.mrb[0].mxu0 %v886
      %v1326 = vpop.f32.mrb[0].mxu0
      %v1327 = vadd.f32 0.0, %v1326
      %v1328 = vpop.f32.mrb[0].mxu0
      %1329 = vmatprep.mubr.f32.mxu0 0.0
      %1330 = vmatmul.mubr.f32.gmra.mrb[0].mxu0 %v889
      %v1331 = vpop.f32.mrb[0].mxu0
      %v1332 = vadd.f32 0.0, %v1331
      %v1333 = vpop.f32.mrb[0].mxu0
      %1334 = vmatprep.mubr.f32.mxu0 0.0
      %1335 = vmatmul.mubr.f32.gmra.mrb[0].mxu0 %v892
      %v1336 = vpop.f32.mrb[0].mxu0
      %v1337 = vadd.f32 0.0, %v1336
      %v1338 = vpop.f32.mrb[0].mxu0
      %1339 = vmatprep.mubr.f32.mxu0 0.0
      %1340 = vmatmul.mubr.f32.gmra.mrb[0].mxu0 %v895
      %v1341 = vpop.f32.mrb[0].mxu0
      %v1342 = vadd.f32 0.0, %v1341
      %v1343 = vpop.f32.mrb[0].mxu0
      %1344 = vmatprep.mubr.f32.mxu0 0.0
      %1345 = vmatmul.mubr.f32.gmra.mrb[0].mxu0 %v898
      %v1346 = vpop.f32.mrb[0].mxu0
      %v1347 = vadd.f32 0.0, %v1346
      %v1348 = vpop.f32.mrb[0].mxu0
      %1349 = vmatprep.mubr.f32.mxu0 0.0
      %1350 = vmatmul.mubr.f32.gmra.mrb[0].mxu0 %v901
      %v1351 = vpop.f32.mrb[0].mxu0
      %v1352 = vadd.f32 0.0, %v1351
      %v1353 = vpop.f32.mrb[0].mxu0
      %1354 = vmatprep.mubr.f32.mxu0 0.0
      %1355 = vmatmul.mubr.f32.gmra.mrb[0].mxu0 %v904
      %v1356 = vpop.f32.mrb[0].mxu0
      %v1357 = vadd.f32 0.0, %v1356
      %v1358 = vpop.f32.mrb[0].mxu0
      %1359 = vmatprep.mubr.f32.mxu0 0.0
      %1360 = vmatmul.mubr.f32.gmra.mrb[0].mxu0 %v907
      %v1361 = vpop.f32.mrb[0].mxu0
      %v1362 = vadd.f32 0.0, %v1361
      %v1363 = vpop.f32.mrb[0].mxu0
      %1364 = vmatprep.mubr.f32.mxu0 0.0
      %1365 = vmatmul.mubr.f32.gmra.mrb[0].mxu0 %v910
      %v1366 = vpop.f32.mrb[0].mxu0
      %v1367 = vadd.f32 0.0, %v1366
      %v1368 = vpop.f32.mrb[0].mxu0
      %1369 = vmatprep.mubr.f32.mxu0 0.0
      %1370 = vmatmul.mubr.f32.gmra.mrb[0].mxu0 %v913
      %v1371 = vpop.f32.mrb[0].mxu0
      %v1372 = vadd.f32 0.0, %v1371
      %v1373 = vpop.f32.mrb[0].mxu0
      %1374 = vmatprep.mubr.f32.mxu0 0.0
      %1375 = vmatmul.mubr.f32.gmra.mrb[0].mxu0 %v916
      %v1376 = vpop.f32.mrb[0].mxu0
      %v1377 = vadd.f32 0.0, %v1376
      %v1378 = vpop.f32.mrb[0].mxu0
      %1379 = vmatprep.mubr.f32.mxu0 0.0
      %1380 = vmatmul.mubr.f32.gmra.mrb[0].mxu0 %v919
      %v1381 = vpop.f32.mrb[0].mxu0
      %v1382 = vadd.f32 0.0, %v1381
      %v1383 = vpop.f32.mrb[0].mxu0
      %1384 = vmatprep.mubr.f32.mxu0 0.0
      %1385 = vmatmul.mubr.f32.gmra.mrb[0].mxu0 %v922
      %v1386 = vpop.f32.mrb[0].mxu0
      %v1387 = vadd.f32 0.0, %v1386
      %v1388 = vpop.f32.mrb[0].mxu0
      %1389 = vmatprep.mubr.f32.mxu0 0.0
      %1390 = vmatmul.mubr.f32.gmra.mrb[0].mxu0 %v925
      %v1391 = vpop.f32.mrb[0].mxu0
      %v1392 = vadd.f32 0.0, %v1391
      %v1393 = vpop.f32.mrb[0].mxu0
      %1394 = vmatprep.mubr.f32.mxu0 0.0
      %1395 = vmatmul.mubr.f32.gmra.mrb[0].mxu0 %v928
      %v1396 = vpop.f32.mrb[0].mxu0
      %v1397 = vadd.f32 0.0, %v1396
      %v1398 = vpop.f32.mrb[0].mxu0
      %1399 = vmatprep.mubr.f32.mxu0 0.0
      %1400 = vmatmul.mubr.f32.gmra.mrb[0].mxu0 %v931
      %v1401 = vpop.f32.mrb[0].mxu0
      %v1402 = vadd.f32 0.0, %v1401
      %v1403 = vpop.f32.mrb[0].mxu0
      %1404 = vmatprep.mubr.f32.mxu0 0.0
      %1405 = vmatmul.mubr.f32.gmra.mrb[0].mxu0 %v934
      %v1406 = vpop.f32.mrb[0].mxu0
      %v1407 = vadd.f32 0.0, %v1406
      %v1408 = vpop.f32.mrb[0].mxu0
      %1409 = vmatprep.mubr.f32.mxu0 0.0
      %1410 = vmatmul.mubr.f32.gmra.mrb[0].mxu0 %v937
      %v1411 = vpop.f32.mrb[0].mxu0
      %v1412 = vadd.f32 0.0, %v1411
      %v1413 = vpop.f32.mrb[0].mxu0
      %1414 = vmatprep.mubr.f32.mxu0 0.0
      %1415 = vmatmul.mubr.f32.gmra.mrb[0].mxu0 %v940
      %v1416 = vpop.f32.mrb[0].mxu0
      %v1417 = vadd.f32 0.0, %v1416
      %v1418 = vpop.f32.mrb[0].mxu0
      %1419 = vmatprep.mubr.f32.mxu0 0.0
      %1420 = vmatmul.mubr.f32.gmra.mrb[0].mxu0 %v943
      %v1421 = vpop.f32.mrb[0].mxu0
      %v1422 = vadd.f32 0.0, %v1421
      %v1423 = vpop.f32.mrb[0].mxu0
      %1424 = vmatprep.mubr.f32.mxu0 0.0
      %1425 = vmatmul.mubr.f32.gmra.mrb[0].mxu0 %v946
      %v1426 = vpop.f32.mrb[0].mxu0
      %v1427 = vadd.f32 0.0, %v1426
      %v1428 = vpop.f32.mrb[0].mxu0
      %1429 = vdwg.mxu0
      %1430 = vst [vmem:[%s289] sm:$0xff] %v1015
      %1431 = vst [vmem:[%s289 + $0x8] sm:$0xff] %v1021
      %1432 = vst [vmem:[%s289 + $0x10] sm:$0xff] %v1027
      %1433 = vst [vmem:[%s289 + $0x18] sm:$0xff] %v1033
      %1434 = vst [vmem:[%s289 + $0x20] sm:$0xff] %v1039
      %1435 = vst [vmem:[%s289 + $0x28] sm:$0xff] %v1045
      %1436 = vst [vmem:[%s289 + $0x30] sm:$0xff] %v1051
      %1437 = vst [vmem:[%s289 + $0x38] sm:$0xff] %v1057
      %1438 = vst [vmem:[%s289 + $0x40] sm:$0xff] %v1063
      %1439 = vst [vmem:[%s289 + $0x48] sm:$0xff] %v1069
      %1440 = vst [vmem:[%s289 + $0x50] sm:$0xff] %v1075
      %1441 = vst [vmem:[%s289 + $0x58] sm:$0xff] %v1081
      %1442 = vst [vmem:[%s289 + $0x60] sm:$0xff] %v1087
      %1443 = vst [vmem:[%s289 + $0x68] sm:$0xff] %v1093
      %1444 = vst [vmem:[%s289 + $0x70] sm:$0xff] %v1099
      %1445 = vst [vmem:[%s289 + $0x78] sm:$0xff] %v1105
      %1446 = vst [vmem:[%s289 + $0x80] sm:$0xff] %v1111
      %1447 = vst [vmem:[%s289 + $0x88] sm:$0xff] %v1117
      %1448 = vst [vmem:[%s289 + $0x90] sm:$0xff] %v1123
      %1449 = vst [vmem:[%s289 + $0x98] sm:$0xff] %v1129
      %1450 = vst [vmem:[%s289 + $0xa0] sm:$0xff] %v1135
      %1451 = vst [vmem:[%s289 + $0xa8] sm:$0xff] %v1141
      %1452 = vst [vmem:[%s289 + $0xb0] sm:$0xff] %v1147
      %1453 = vst [vmem:[%s289 + $0xb8] sm:$0xff] %v1153
      %1454 = vst [vmem:[%s289 + $0xc0] sm:$0xff] %v1159
      %1455 = vst [vmem:[%s289 + $0xc8] sm:$0xff] %v1165
      %1456 = vst [vmem:[%s289 + $0xd0] sm:$0xff] %v1171
      %1457 = vst [vmem:[%s289 + $0xd8] sm:$0xff] %v1177
      %1458 = vst [vmem:[%s289 + $0xe0] sm:$0xff] %v1183
      %1459 = vst [vmem:[%s289 + $0xe8] sm:$0xff] %v1189
      %1460 = vst [vmem:[%s289 + $0xf0] sm:$0xff] %v1195
      %1461 = vst [vmem:[%s289 + $0xf8] sm:$0xff] %v1201
      %1462 = vst [vmem:[%s299] sm:$0xff] %v1017
      %1463 = vst [vmem:[%s299 + $0x8] sm:$0xff] %v1023
      %1464 = vst [vmem:[%s299 + $0x10] sm:$0xff] %v1029
      %1465 = vst [vmem:[%s299 + $0x18] sm:$0xff] %v1035
      %1466 = vst [vmem:[%s299 + $0x20] sm:$0xff] %v1041
      %1467 = vst [vmem:[%s299 + $0x28] sm:$0xff] %v1047
      %1468 = vst [vmem:[%s299 + $0x30] sm:$0xff] %v1053
      %1469 = vst [vmem:[%s299 + $0x38] sm:$0xff] %v1059
      %1470 = vst [vmem:[%s299 + $0x40] sm:$0xff] %v1065
      %1471 = vst [vmem:[%s299 + $0x48] sm:$0xff] %v1071
      %1472 = vst [vmem:[%s299 + $0x50] sm:$0xff] %v1077
      %1473 = vst [vmem:[%s299 + $0x58] sm:$0xff] %v1083
      %1474 = vst [vmem:[%s299 + $0x60] sm:$0xff] %v1089
      %1475 = vst [vmem:[%s299 + $0x68] sm:$0xff] %v1095
      %1476 = vst [vmem:[%s299 + $0x70] sm:$0xff] %v1101
      %1477 = vst [vmem:[%s299 + $0x78] sm:$0xff] %v1107
      %1478 = vst [vmem:[%s299 + $0x80] sm:$0xff] %v1113
      %1479 = vst [vmem:[%s299 + $0x88] sm:$0xff] %v1119
      %1480 = vst [vmem:[%s299 + $0x90] sm:$0xff] %v1125
      %1481 = vst [vmem:[%s299 + $0x98] sm:$0xff] %v1131
      %1482 = vst [vmem:[%s299 + $0xa0] sm:$0xff] %v1137
      %1483 = vst [vmem:[%s299 + $0xa8] sm:$0xff] %v1143
      %1484 = vst [vmem:[%s299 + $0xb0] sm:$0xff] %v1149
      %1485 = vst [vmem:[%s299 + $0xb8] sm:$0xff] %v1155
      %1486 = vst [vmem:[%s299 + $0xc0] sm:$0xff] %v1161
      %1487 = vst [vmem:[%s299 + $0xc8] sm:$0xff] %v1167
      %1488 = vst [vmem:[%s299 + $0xd0] sm:$0xff] %v1173
      %1489 = vst [vmem:[%s299 + $0xd8] sm:$0xff] %v1179
      %1490 = vst [vmem:[%s299 + $0xe0] sm:$0xff] %v1185
      %1491 = vst [vmem:[%s299 + $0xe8] sm:$0xff] %v1191
      %1492 = vst [vmem:[%s299 + $0xf0] sm:$0xff] %v1197
      %1493 = vst [vmem:[%s299 + $0xf8] sm:$0xff] %v1203
      %1494 = vst [vmem:[%s309] sm:$0xff] %v1272
      %1495 = vst [vmem:[%s309 + $0x8] sm:$0xff] %v1277
      %1496 = vst [vmem:[%s309 + $0x10] sm:$0xff] %v1282
      %1497 = vst [vmem:[%s309 + $0x18] sm:$0xff] %v1287
      %1498 = vst [vmem:[%s309 + $0x20] sm:$0xff] %v1292
      %1499 = vst [vmem:[%s309 + $0x28] sm:$0xff] %v1297
      %1500 = vst [vmem:[%s309 + $0x30] sm:$0xff] %v1302
      %1501 = vst [vmem:[%s309 + $0x38] sm:$0xff] %v1307
      %1502 = vst [vmem:[%s309 + $0x40] sm:$0xff] %v1312
      %1503 = vst [vmem:[%s309 + $0x48] sm:$0xff] %v1317
      %1504 = vst [vmem:[%s309 + $0x50] sm:$0xff] %v1322
      %1505 = vst [vmem:[%s309 + $0x58] sm:$0xff] %v1327
      %1506 = vst [vmem:[%s309 + $0x60] sm:$0xff] %v1332
      %1507 = vst [vmem:[%s309 + $0x68] sm:$0xff] %v1337
      %1508 = vst [vmem:[%s309 + $0x70] sm:$0xff] %v1342
      %1509 = vst [vmem:[%s309 + $0x78] sm:$0xff] %v1347
      %1510 = vst [vmem:[%s309 + $0x80] sm:$0xff] %v1352
      %1511 = vst [vmem:[%s309 + $0x88] sm:$0xff] %v1357
      %1512 = vst [vmem:[%s309 + $0x90] sm:$0xff] %v1362
      %1513 = vst [vmem:[%s309 + $0x98] sm:$0xff] %v1367
      %1514 = vst [vmem:[%s309 + $0xa0] sm:$0xff] %v1372
      %1515 = vst [vmem:[%s309 + $0xa8] sm:$0xff] %v1377
      %1516 = vst [vmem:[%s309 + $0xb0] sm:$0xff] %v1382
      %1517 = vst [vmem:[%s309 + $0xb8] sm:$0xff] %v1387
      %1518 = vst [vmem:[%s309 + $0xc0] sm:$0xff] %v1392
      %1519 = vst [vmem:[%s309 + $0xc8] sm:$0xff] %v1397
      %1520 = vst [vmem:[%s309 + $0xd0] sm:$0xff] %v1402
      %1521 = vst [vmem:[%s309 + $0xd8] sm:$0xff] %v1407
      %1522 = vst [vmem:[%s309 + $0xe0] sm:$0xff] %v1412
      %1523 = vst [vmem:[%s309 + $0xe8] sm:$0xff] %v1417
      %1524 = vst [vmem:[%s309 + $0xf0] sm:$0xff] %v1422
      %1525 = vst [vmem:[%s309 + $0xf8] sm:$0xff] %v1427
      %s1526 = smul.u32 32, %s22
      %p1527 = scmp.lt.s32.totalorder %s21, 1
      %s1528 = scalar_select %p1527, %s21, 1
      %p1529 = scmp.lt.s32.totalorder %s1526, 31
      %s1530 = scalar_select %p1529, %s1526, 31
      %s1531 = smul.addr %s1528, 32
      %s1532 = sadd.s32 %s1530, %s1531
      %s1533 = smul.addr %s1532, 8
      %s1534 = scalar_lea.vmem %s3, %s1533
      %s1535 = smul.u32 32, %s22
      %p1536 = scmp.lt.s32.totalorder %s21, 1
      %s1537 = scalar_select %p1536, %s21, 1
      %p1538 = scmp.lt.s32.totalorder %s1535, 31
      %s1539 = scalar_select %p1538, %s1535, 31
      %s1540 = smul.addr %s1537, 32
      %s1541 = sadd.s32 %s1539, %s1540
      %s1542 = smul.addr %s1541, 8
      %s1543 = scalar_lea.vmem %s4, %s1542
      %s1544 = smul.u32 32, %s22
      %p1545 = scmp.lt.s32.totalorder %s21, 1
      %s1546 = scalar_select %p1545, %s21, 1
      %p1547 = scmp.lt.s32.totalorder %s1544, 31
      %s1548 = scalar_select %p1547, %s1544, 31
      %s1549 = smul.addr %s1546, 32
      %s1550 = sadd.s32 %s1548, %s1549
      %s1551 = smul.addr %s1550, 8
      %s1552 = scalar_lea.vmem %s5, %s1551
      // Predicated region
      $region33: #{linear_attention_forward.2} parent=31 // pred_check
        %p1553 = pneg %p119
      $region34: #{linear_attention_forward.2} parent=31 // pred_check_branch
        %1555 = sbr.rel (%p1553) target = $region36
      $region35: #{linear_attention_forward.2} parent=31 // pred_region
        %s1556 = smul.u32 32, %s22
      $region36: #{linear_attention_forward.2} parent=31 // pred_fallthru
        _
      // Predicated region
      $region37: #{linear_attention_forward.2} parent=31 // pred_check
        %p1557 = pneg %p147
      $region38: #{linear_attention_forward.2} parent=31 // pred_check_branch
        %1559 = sbr.rel (%p1557) target = $region40
      $region39: #{linear_attention_forward.2} parent=31 // pred_region
        %s1560 = smul.u32 32, %s22
      $region40: #{linear_attention_forward.2} parent=31 // pred_fallthru
        _
      // Predicated region
      $region41: #{linear_attention_forward.2} parent=31 // pred_check
        %p1561 = pneg %p175
      $region42: #{linear_attention_forward.2} parent=31 // pred_check_branch
        %1563 = sbr.rel (%p1561) target = $region44
      $region43: #{linear_attention_forward.2} parent=31 // pred_region
        %s1564 = smul.u32 32, %s22
      $region44: #{linear_attention_forward.2} parent=31 // pred_fallthru
        _
    $region32: #{linear_attention_forward.2} parent=5 // pred_fallthru
      _
    %p1565 = scmp.le.s32.totalorder 2, %s12
    // Predicated region
    $region45: #{linear_attention_forward.2} parent=5 // pred_check
      %p1566 = pneg %p1565
    $region46: #{linear_attention_forward.2} parent=5 // pred_check_branch
      %1568 = sbr.rel (%p1566) target = $region48
    $region47: #{linear_attention_forward.2} parent=5 // pred_region
      %s1569 = ssub.s32 %s12, 2
      // Predicated region
      $region49: #{linear_attention_forward.2} parent=47 // pred_check
        %p1570 = pneg %p125
      $region50: #{linear_attention_forward.2} parent=47 // pred_check_branch
        %1572 = sbr.rel (%p1570) target = $region52
      $region51: #{linear_attention_forward.2} parent=47 // pred_region
        %s1573 = smul.u32 32, %s24
        %p1574 = scmp.lt.s32.totalorder %s23, 1
        %s1575 = scalar_select %p1574, %s23, 1
        %p1576 = scmp.lt.s32.totalorder %s1573, 31
        %s1577 = scalar_select %p1576, %s1573, 31
        %s1578 = smul.addr %s1575, 32
        %s1579 = sadd.s32 %s1577, %s1578
        %s1580 = smul.addr %s1579, 8
        %s1581 = scalar_lea.vmem %s3, %s1580
      $region52: #{linear_attention_forward.2} parent=47 // pred_fallthru
        _
      // Predicated region
      $region53: #{linear_attention_forward.2} parent=47 // pred_check
        %p1582 = pneg %p153
      $region54: #{linear_attention_forward.2} parent=47 // pred_check_branch
        %1584 = sbr.rel (%p1582) target = $region56
      $region55: #{linear_attention_forward.2} parent=47 // pred_region
        %s1585 = smul.u32 32, %s24
        %p1586 = scmp.lt.s32.totalorder %s23, 1
        %s1587 = scalar_select %p1586, %s23, 1
        %p1588 = scmp.lt.s32.totalorder %s1585, 31
        %s1589 = scalar_select %p1588, %s1585, 31
        %s1590 = smul.addr %s1587, 32
        %s1591 = sadd.s32 %s1589, %s1590
        %s1592 = smul.addr %s1591, 8
        %s1593 = scalar_lea.vmem %s4, %s1592
      $region56: #{linear_attention_forward.2} parent=47 // pred_fallthru
        _
      // Predicated region
      $region57: #{linear_attention_forward.2} parent=47 // pred_check
        %p1594 = pneg %p181
      $region58: #{linear_attention_forward.2} parent=47 // pred_check_branch
        %1596 = sbr.rel (%p1594) target = $region60
      $region59: #{linear_attention_forward.2} parent=47 // pred_region
        %s1597 = smul.u32 32, %s24
        %p1598 = scmp.lt.s32.totalorder %s23, 1
        %s1599 = scalar_select %p1598, %s23, 1
        %p1600 = scmp.lt.s32.totalorder %s1597, 31
        %s1601 = scalar_select %p1600, %s1597, 31
        %s1602 = smul.addr %s1599, 32
        %s1603 = sadd.s32 %s1601, %s1602
        %s1604 = smul.addr %s1603, 8
        %s1605 = scalar_lea.vmem %s5, %s1604
      $region60: #{linear_attention_forward.2} parent=47 // pred_fallthru
        _
    $region48: #{linear_attention_forward.2} parent=5 // pred_fallthru
      _
  $region6: #{linear_attention_forward.2} parent=0 // loop_footer
    %s16 = sadd.s32 1, %s12
  $region7: #{linear_attention_forward.2} parent=0 // loop_footer_branch
    %11 = sbr.rel target = $region3
  $region8: #{linear_attention_forward.2} parent=0 // loop_exit
    _

// kernel: linear_attention_forward.3
$region0: #{linear_attention_forward.3}
  #allocation0 [shape = 'u32[]', space=smem, size = 0x4, offset = 0x4, fixed_abs, tag = 'smem constant byte address 0x4 - core index']
  #allocation1 [shape = 'u32[144,128]{1,0:T(1,128)}', space=vmem, size = 0x12000, scoped, tag = 'internal scratch']
  %s0 = inlined_call_operand.vmem [shape: f32[2,256,128], index: 0, kind: input, shape index: {}]
  %s1 = inlined_call_operand.vmem [shape: f32[2,256,128], index: 1, kind: input, shape index: {}]
  %s2 = inlined_call_operand.vmem [shape: f32[2,256,128], index: 2, kind: input, shape index: {}]
  %s3 = inlined_call_operand.vmem [shape: f32[128,128], index: 3, kind: input, shape index: {}]
  %s4 = inlined_call_operand.vmem [shape: f32[128,32], index: 4, kind: input, shape index: {}]
  %s5 = inlined_call_operand.vmem [shape: f32[1,32], index: 5, kind: input, shape index: {}]
  %s6 = inlined_call_operand.vmem [shape: f32[2,32,256], index: 6, kind: output, shape index: {}]
  %s7 = sld [smem:[#allocation0]]
  $region57: #{linear_attention_forward.3} parent=0
    _
  %s9 = ssub.s32 1, %s7
  %s10 = scalar_select 0, %s9, %s7
  loop: start=0, step=1, limit=4
  $region2: #{linear_attention_forward.3} parent=0 // loop_pre_header
    _
  $region3: #{linear_attention_forward.3} parent=0 // loop_header
    %s12 = sphi 0, %s16
    %p13 = scmp.ge.s32.totalorder %s12, 4
    %s22 = sphi 0, %s24
    %s25 = sphi 0, %s22
    %s26 = sphi 0, %s25
    %s42 = sphi 0, %s26
    %s48 = sphi 0, %s50
    %s51 = sphi 0, %s48
    %s52 = sphi 0, %s51
    %s68 = sphi 0, %s52
    %s74 = sphi 0, %s76
    %s77 = sphi 0, %s74
    %s78 = sphi 0, %s77
    %s94 = sphi 0, %s78
    %s98 = sphi 0, %s98
    %s100 = sphi 0, %s98
    %s101 = sphi 0, %s100
    %s115 = sphi 0, %s101
    %s119 = sphi 0, %s119
    %s121 = sphi 0, %s119
    %s122 = sphi 0, %s121
    %s136 = sphi 0, %s122
    %s140 = sphi 0, %s140
    %s142 = sphi 0, %s140
    %s143 = sphi 0, %s142
    %s157 = sphi 0, %s143
    %s163 = sphi 0, %s165
    %s166 = sphi 0, %s163
    %s167 = sphi 0, %s166
    %s183 = sphi 0, %s167
  $region4: #{linear_attention_forward.3} parent=0 // loop_header_branch
    %15 = sbr.rel (%p13) target = $region8
  $region5: #{linear_attention_forward.3} parent=0 // loop_body
    %s17 = ssub.s32 %s12, 1
    %s18 = ssub.s32 %s12, 2
    %s19 = sadd.s32 %s12, 1
    %s20 = ssub.s32 %s12, %s19
    %p21 = scmp.eq.s32.totalorder %s20, 0
    %s23 = sadd.s32 %s22, 1
    %s24 = scalar_select %p21, %s22, %s23
    %p27 = pneg %p21
    %p28 = scmp.eq.s32.totalorder %s12, 1
    %p29 = por %p27, %p28
    %p30 = scmp.ne.s32.totalorder %s22, %s25
    %p31 = scmp.eq.s32.totalorder %s12, 0
    %p32 = por %p30, %p31
    %p33 = scmp.ne.s32.totalorder %s22, %s25
    %p34 = scmp.eq.s32.totalorder %s17, 1
    %p35 = por %p33, %p34
    %p36 = scmp.ne.s32.totalorder %s25, %s26
    %p37 = scmp.eq.s32.totalorder %s17, 0
    %p38 = por %p36, %p37
    %p39 = scmp.ne.s32.totalorder %s25, %s26
    %p40 = scmp.eq.s32.totalorder %s18, 1
    %p41 = por %p39, %p40
    %p43 = scmp.ne.s32.totalorder %s26, %s42
    %p44 = scmp.eq.s32.totalorder %s18, 0
    %p45 = por %p43, %p44
    %s46 = ssub.s32 %s12, %s19
    %p47 = scmp.eq.s32.totalorder %s46, 0
    %s49 = sadd.s32 %s48, 1
    %s50 = scalar_select %p47, %s48, %s49
    %p53 = pneg %p47
    %p54 = scmp.eq.s32.totalorder %s12, 1
    %p55 = por %p53, %p54
    %p56 = scmp.ne.s32.totalorder %s48, %s51
    %p57 = scmp.eq.s32.totalorder %s12, 0
    %p58 = por %p56, %p57
    %p59 = scmp.ne.s32.totalorder %s48, %s51
    %p60 = scmp.eq.s32.totalorder %s17, 1
    %p61 = por %p59, %p60
    %p62 = scmp.ne.s32.totalorder %s51, %s52
    %p63 = scmp.eq.s32.totalorder %s17, 0
    %p64 = por %p62, %p63
    %p65 = scmp.ne.s32.totalorder %s51, %s52
    %p66 = scmp.eq.s32.totalorder %s18, 1
    %p67 = por %p65, %p66
    %p69 = scmp.ne.s32.totalorder %s52, %s68
    %p70 = scmp.eq.s32.totalorder %s18, 0
    %p71 = por %p69, %p70
    %s72 = ssub.s32 %s12, %s19
    %p73 = scmp.eq.s32.totalorder %s72, 0
    %s75 = sadd.s32 %s74, 1
    %s76 = scalar_select %p73, %s74, %s75
    %p79 = pneg %p73
    %p80 = scmp.eq.s32.totalorder %s12, 1
    %p81 = por %p79, %p80
    %p82 = scmp.ne.s32.totalorder %s74, %s77
    %p83 = scmp.eq.s32.totalorder %s12, 0
    %p84 = por %p82, %p83
    %p85 = scmp.ne.s32.totalorder %s74, %s77
    %p86 = scmp.eq.s32.totalorder %s17, 1
    %p87 = por %p85, %p86
    %p88 = scmp.ne.s32.totalorder %s77, %s78
    %p89 = scmp.eq.s32.totalorder %s17, 0
    %p90 = por %p88, %p89
    %p91 = scmp.ne.s32.totalorder %s77, %s78
    %p92 = scmp.eq.s32.totalorder %s18, 1
    %p93 = por %p91, %p92
    %p95 = scmp.ne.s32.totalorder %s78, %s94
    %p96 = scmp.eq.s32.totalorder %s18, 0
    %p97 = por %p95, %p96
    %s99 = sadd.s32 %s98, 1
    %p102 = scmp.eq.s32.totalorder %s12, 1
    %p103 = scmp.ne.s32.totalorder %s98, %s100
    %p104 = scmp.eq.s32.totalorder %s12, 0
    %p105 = por %p103, %p104
    %p106 = scmp.ne.s32.totalorder %s98, %s100
    %p107 = scmp.eq.s32.totalorder %s17, 1
    %p108 = por %p106, %p107
    %p109 = scmp.ne.s32.totalorder %s100, %s101
    %p110 = scmp.eq.s32.totalorder %s17, 0
    %p111 = por %p109, %p110
    %p112 = scmp.ne.s32.totalorder %s100, %s101
    %p113 = scmp.eq.s32.totalorder %s18, 1
    %p114 = por %p112, %p113
    %p116 = scmp.ne.s32.totalorder %s101, %s115
    %p117 = scmp.eq.s32.totalorder %s18, 0
    %p118 = por %p116, %p117
    %s120 = sadd.s32 %s119, 1
    %p123 = scmp.eq.s32.totalorder %s12, 1
    %p124 = scmp.ne.s32.totalorder %s119, %s121
    %p125 = scmp.eq.s32.totalorder %s12, 0
    %p126 = por %p124, %p125
    %p127 = scmp.ne.s32.totalorder %s119, %s121
    %p128 = scmp.eq.s32.totalorder %s17, 1
    %p129 = por %p127, %p128
    %p130 = scmp.ne.s32.totalorder %s121, %s122
    %p131 = scmp.eq.s32.totalorder %s17, 0
    %p132 = por %p130, %p131
    %p133 = scmp.ne.s32.totalorder %s121, %s122
    %p134 = scmp.eq.s32.totalorder %s18, 1
    %p135 = por %p133, %p134
    %p137 = scmp.ne.s32.totalorder %s122, %s136
    %p138 = scmp.eq.s32.totalorder %s18, 0
    %p139 = por %p137, %p138
    %s141 = sadd.s32 %s140, 1
    %p144 = scmp.eq.s32.totalorder %s12, 1
    %p145 = scmp.ne.s32.totalorder %s140, %s142
    %p146 = scmp.eq.s32.totalorder %s12, 0
    %p147 = por %p145, %p146
    %p148 = scmp.ne.s32.totalorder %s140, %s142
    %p149 = scmp.eq.s32.totalorder %s17, 1
    %p150 = por %p148, %p149
    %p151 = scmp.ne.s32.totalorder %s142, %s143
    %p152 = scmp.eq.s32.totalorder %s17, 0
    %p153 = por %p151, %p152
    %p154 = scmp.ne.s32.totalorder %s142, %s143
    %p155 = scmp.eq.s32.totalorder %s18, 1
    %p156 = por %p154, %p155
    %p158 = scmp.ne.s32.totalorder %s143, %s157
    %p159 = scmp.eq.s32.totalorder %s18, 0
    %p160 = por %p158, %p159
    %s161 = ssub.s32 %s12, %s19
    %p162 = scmp.eq.s32.totalorder %s161, 0
    %s164 = sadd.s32 %s163, 1
    %s165 = scalar_select %p162, %s163, %s164
    %p168 = pneg %p162
    %p169 = scmp.eq.s32.totalorder %s12, 1
    %p170 = por %p168, %p169
    %p171 = scmp.ne.s32.totalorder %s163, %s166
    %p172 = scmp.eq.s32.totalorder %s12, 0
    %p173 = por %p171, %p172
    %p174 = scmp.ne.s32.totalorder %s163, %s166
    %p175 = scmp.eq.s32.totalorder %s17, 1
    %p176 = por %p174, %p175
    %p177 = scmp.ne.s32.totalorder %s166, %s167
    %p178 = scmp.eq.s32.totalorder %s17, 0
    %p179 = por %p177, %p178
    %p180 = scmp.ne.s32.totalorder %s166, %s167
    %p181 = scmp.eq.s32.totalorder %s18, 1
    %p182 = por %p180, %p181
    %p184 = scmp.ne.s32.totalorder %s167, %s183
    %p185 = scmp.eq.s32.totalorder %s18, 0
    %p186 = por %p184, %p185
    %p187 = scmp.le.s32.totalorder 1, %s12
    %p188 = scmp.lt.s32.totalorder %s12, 3
    %p189 = pnand %p187, %p188
    %p190 = pneg %p189
    // Predicated region
    $region9: #{linear_attention_forward.3} parent=5 // pred_check
      _
    $region10: #{linear_attention_forward.3} parent=5 // pred_check_branch
      %192 = sbr.rel (%p189) target = $region12
    $region11: #{linear_attention_forward.3} parent=5 // pred_region
      %s193 = ssub.s32 %s12, 1
      // Predicated region
      $region13: #{linear_attention_forward.3} parent=11 // pred_check
        %p194 = pneg %p111
      $region14: #{linear_attention_forward.3} parent=11 // pred_check_branch
        %196 = sbr.rel (%p194) target = $region16
      $region15: #{linear_attention_forward.3} parent=11 // pred_region
        _
      $region16: #{linear_attention_forward.3} parent=11 // pred_fallthru
        _
      // Predicated region
      $region17: #{linear_attention_forward.3} parent=11 // pred_check
        %p197 = pneg %p132
      $region18: #{linear_attention_forward.3} parent=11 // pred_check_branch
        %199 = sbr.rel (%p197) target = $region20
      $region19: #{linear_attention_forward.3} parent=11 // pred_region
        _
      $region20: #{linear_attention_forward.3} parent=11 // pred_fallthru
        _
      // Predicated region
      $region21: #{linear_attention_forward.3} parent=11 // pred_check
        %p200 = pneg %p153
      $region22: #{linear_attention_forward.3} parent=11 // pred_check_branch
        %202 = sbr.rel (%p200) target = $region24
      $region23: #{linear_attention_forward.3} parent=11 // pred_region
        _
      $region24: #{linear_attention_forward.3} parent=11 // pred_fallthru
        _
    $region12: #{linear_attention_forward.3} parent=5 // pred_fallthru
      _
    %p203 = scmp.lt.s32.totalorder %s12, 2
    // Predicated region
    $region25: #{linear_attention_forward.3} parent=5 // pred_check
      %p204 = pneg %p203
    $region26: #{linear_attention_forward.3} parent=5 // pred_check_branch
      %206 = sbr.rel (%p204) target = $region28
    $region27: #{linear_attention_forward.3} parent=5 // pred_region
      // Predicated region
      $region29: #{linear_attention_forward.3} parent=27 // pred_check
        %p207 = pneg %p32
      $region30: #{linear_attention_forward.3} parent=27 // pred_check_branch
        %209 = sbr.rel (%p207) target = $region32
      $region31: #{linear_attention_forward.3} parent=27 // pred_region
        %p210 = scmp.lt.s32.totalorder %s12, 1
        %s211 = scalar_select %p210, %s12, 1
        %s212 = smul.addr %s211, 32
        %s213 = smul.addr %s212, 8
        %s214 = scalar_lea.vmem %s0, %s213
      $region32: #{linear_attention_forward.3} parent=27 // pred_fallthru
        _
      // Predicated region
      $region33: #{linear_attention_forward.3} parent=27 // pred_check
        %p215 = pneg %p58
      $region34: #{linear_attention_forward.3} parent=27 // pred_check_branch
        %217 = sbr.rel (%p215) target = $region36
      $region35: #{linear_attention_forward.3} parent=27 // pred_region
        %p218 = scmp.lt.s32.totalorder %s12, 1
        %s219 = scalar_select %p218, %s12, 1
        %s220 = smul.addr %s219, 32
        %s221 = smul.addr %s220, 8
        %s222 = scalar_lea.vmem %s1, %s221
      $region36: #{linear_attention_forward.3} parent=27 // pred_fallthru
        _
      // Predicated region
      $region37: #{linear_attention_forward.3} parent=27 // pred_check
        %p223 = pneg %p84
      $region38: #{linear_attention_forward.3} parent=27 // pred_check_branch
        %225 = sbr.rel (%p223) target = $region40
      $region39: #{linear_attention_forward.3} parent=27 // pred_region
        %p226 = scmp.lt.s32.totalorder %s12, 1
        %s227 = scalar_select %p226, %s12, 1
        %s228 = smul.addr %s227, 32
        %s229 = smul.addr %s228, 8
        %s230 = scalar_lea.vmem %s2, %s229
      $region40: #{linear_attention_forward.3} parent=27 // pred_fallthru
        _
    $region28: #{linear_attention_forward.3} parent=5 // pred_fallthru
      _
    %p231 = scmp.le.s32.totalorder 1, %s12
    %p232 = scmp.lt.s32.totalorder %s12, 3
    %p233 = pnand %p231, %p232
    %p234 = pneg %p233
    // Predicated region
    $region41: #{linear_attention_forward.3} parent=5 // pred_check
      _
    $region42: #{linear_attention_forward.3} parent=5 // pred_check_branch
      %236 = sbr.rel (%p233) target = $region44
    $region43: #{linear_attention_forward.3} parent=5 // pred_region
      %s237 = ssub.s32 %s12, 1
      %p238 = scmp.lt.s32.totalorder %s17, 1
      %s239 = scalar_select %p238, %s17, 1
      %s240 = smul.addr %s239, 32
      %s241 = smul.addr %s240, 8
      %s242 = scalar_lea.vmem %s0, %s241
      %p243 = pneg %p38
      %p244 = pneg %p35
      %p245 = scmp.lt.s32.totalorder %s17, 1
      %s246 = scalar_select %p245, %s17, 1
      %s247 = smul.addr %s246, 32
      %s248 = smul.addr %s247, 8
      %s249 = scalar_lea.vmem %s1, %s248
      %p250 = pneg %p64
      %p251 = pneg %p61
      %p252 = scmp.lt.s32.totalorder %s17, 1
      %s253 = scalar_select %p252, %s17, 1
      %s254 = smul.addr %s253, 32
      %s255 = smul.addr %s254, 8
      %s256 = scalar_lea.vmem %s2, %s255
      %p257 = pneg %p90
      %p258 = pneg %p87
      %p259 = pneg %p111
      %p260 = pneg %p108
      %p261 = pneg %p132
      %p262 = pneg %p129
      %p263 = pneg %p153
      %p264 = pneg %p150
      %p265 = pneg %p179
      %p266 = pneg %p176
      %p267 = scmp.lt.s32.totalorder %s17, 1
      %s268 = scalar_select %p267, %s17, 1
      %s269 = smul.addr %s268, 8
      %s270 = smul.addr %s269, 8
      %s271 = scalar_lea.vmem %s6, %s270
      %p272 = scmp.lt.s32.totalorder %s17, 1
      %s273 = scalar_select %p272, %s17, 1
      %s274 = smul.addr %s273, 32
      %s275 = smul.addr %s274, 8
      %s276 = scalar_lea.vmem %s0, %s275
      %p277 = scmp.lt.s32.totalorder %s17, 1
      %s278 = scalar_select %p277, %s17, 1
      %s279 = smul.addr %s278, 32
      %s280 = smul.addr %s279, 8
      %s281 = scalar_lea.vmem %s1, %s280
      %p282 = scmp.lt.s32.totalorder %s17, 1
      %s283 = scalar_select %p282, %s17, 1
      %s284 = smul.addr %s283, 32
      %s285 = smul.addr %s284, 8
      %s286 = scalar_lea.vmem %s2, %s285
      %p287 = scmp.lt.s32.totalorder %s17, 1
      %s288 = scalar_select %p287, %s17, 1
      %s289 = smul.addr %s288, 8
      %s290 = smul.addr %s289, 8
      %s291 = scalar_lea.vmem %s6, %s290
      %v292 = vld [vmem:[%s276] sm:$0xff]
      %v293 = vld [vmem:[%s276 + $0x8] sm:$0xff]
      %v294 = vld [vmem:[%s276 + $0x10] sm:$0xff]
      %v295 = vld [vmem:[%s276 + $0x18] sm:$0xff]
      %v296 = vld [vmem:[%s276 + $0x20] sm:$0xff]
      %v297 = vld [vmem:[%s276 + $0x28] sm:$0xff]
      %v298 = vld [vmem:[%s276 + $0x30] sm:$0xff]
      %v299 = vld [vmem:[%s276 + $0x38] sm:$0xff]
      %v300 = vld [vmem:[%s276 + $0x40] sm:$0xff]
      %v301 = vld [vmem:[%s276 + $0x48] sm:$0xff]
      %v302 = vld [vmem:[%s276 + $0x50] sm:$0xff]
      %v303 = vld [vmem:[%s276 + $0x58] sm:$0xff]
      %v304 = vld [vmem:[%s276 + $0x60] sm:$0xff]
      %v305 = vld [vmem:[%s276 + $0x68] sm:$0xff]
      %v306 = vld [vmem:[%s276 + $0x70] sm:$0xff]
      %v307 = vld [vmem:[%s276 + $0x78] sm:$0xff]
      %v308 = vld [vmem:[%s276 + $0x80] sm:$0xff]
      %v309 = vld [vmem:[%s276 + $0x88] sm:$0xff]
      %v310 = vld [vmem:[%s276 + $0x90] sm:$0xff]
      %v311 = vld [vmem:[%s276 + $0x98] sm:$0xff]
      %v312 = vld [vmem:[%s276 + $0xa0] sm:$0xff]
      %v313 = vld [vmem:[%s276 + $0xa8] sm:$0xff]
      %v314 = vld [vmem:[%s276 + $0xb0] sm:$0xff]
      %v315 = vld [vmem:[%s276 + $0xb8] sm:$0xff]
      %v316 = vld [vmem:[%s276 + $0xc0] sm:$0xff]
      %v317 = vld [vmem:[%s276 + $0xc8] sm:$0xff]
      %v318 = vld [vmem:[%s276 + $0xd0] sm:$0xff]
      %v319 = vld [vmem:[%s276 + $0xd8] sm:$0xff]
      %v320 = vld [vmem:[%s276 + $0xe0] sm:$0xff]
      %v321 = vld [vmem:[%s276 + $0xe8] sm:$0xff]
      %v322 = vld [vmem:[%s276 + $0xf0] sm:$0xff]
      %v323 = vld [vmem:[%s276 + $0xf8] sm:$0xff]
      %v324 = vld [vmem:[%s281] sm:$0xff]
      %v325 = vld [vmem:[%s281 + $0x8] sm:$0xff]
      %v326 = vld [vmem:[%s281 + $0x10] sm:$0xff]
      %v327 = vld [vmem:[%s281 + $0x18] sm:$0xff]
      %v328 = vld [vmem:[%s281 + $0x20] sm:$0xff]
      %v329 = vld [vmem:[%s281 + $0x28] sm:$0xff]
      %v330 = vld [vmem:[%s281 + $0x30] sm:$0xff]
      %v331 = vld [vmem:[%s281 + $0x38] sm:$0xff]
      %v332 = vld [vmem:[%s281 + $0x40] sm:$0xff]
      %v333 = vld [vmem:[%s281 + $0x48] sm:$0xff]
      %v334 = vld [vmem:[%s281 + $0x50] sm:$0xff]
      %v335 = vld [vmem:[%s281 + $0x58] sm:$0xff]
      %v336 = vld [vmem:[%s281 + $0x60] sm:$0xff]
      %v337 = vld [vmem:[%s281 + $0x68] sm:$0xff]
      %v338 = vld [vmem:[%s281 + $0x70] sm:$0xff]
      %v339 = vld [vmem:[%s281 + $0x78] sm:$0xff]
      %v340 = vld [vmem:[%s281 + $0x80] sm:$0xff]
      %v341 = vld [vmem:[%s281 + $0x88] sm:$0xff]
      %v342 = vld [vmem:[%s281 + $0x90] sm:$0xff]
      %v343 = vld [vmem:[%s281 + $0x98] sm:$0xff]
      %v344 = vld [vmem:[%s281 + $0xa0] sm:$0xff]
      %v345 = vld [vmem:[%s281 + $0xa8] sm:$0xff]
      %v346 = vld [vmem:[%s281 + $0xb0] sm:$0xff]
      %v347 = vld [vmem:[%s281 + $0xb8] sm:$0xff]
      %v348 = vld [vmem:[%s281 + $0xc0] sm:$0xff]
      %v349 = vld [vmem:[%s281 + $0xc8] sm:$0xff]
      %v350 = vld [vmem:[%s281 + $0xd0] sm:$0xff]
      %v351 = vld [vmem:[%s281 + $0xd8] sm:$0xff]
      %v352 = vld [vmem:[%s281 + $0xe0] sm:$0xff]
      %v353 = vld [vmem:[%s281 + $0xe8] sm:$0xff]
      %v354 = vld [vmem:[%s281 + $0xf0] sm:$0xff]
      %v355 = vld [vmem:[%s281 + $0xf8] sm:$0xff]
      %v356 = vld [vmem:[%s286] sm:$0xff]
      %v357 = vld [vmem:[%s286 + $0x8] sm:$0xff]
      %v358 = vld [vmem:[%s286 + $0x10] sm:$0xff]
      %v359 = vld [vmem:[%s286 + $0x18] sm:$0xff]
      %v360 = vld [vmem:[%s286 + $0x20] sm:$0xff]
      %v361 = vld [vmem:[%s286 + $0x28] sm:$0xff]
      %v362 = vld [vmem:[%s286 + $0x30] sm:$0xff]
      %v363 = vld [vmem:[%s286 + $0x38] sm:$0xff]
      %v364 = vld [vmem:[%s286 + $0x40] sm:$0xff]
      %v365 = vld [vmem:[%s286 + $0x48] sm:$0xff]
      %v366 = vld [vmem:[%s286 + $0x50] sm:$0xff]
      %v367 = vld [vmem:[%s286 + $0x58] sm:$0xff]
      %v368 = vld [vmem:[%s286 + $0x60] sm:$0xff]
      %v369 = vld [vmem:[%s286 + $0x68] sm:$0xff]
      %v370 = vld [vmem:[%s286 + $0x70] sm:$0xff]
      %v371 = vld [vmem:[%s286 + $0x78] sm:$0xff]
      %v372 = vld [vmem:[%s286 + $0x80] sm:$0xff]
      %v373 = vld [vmem:[%s286 + $0x88] sm:$0xff]
      %v374 = vld [vmem:[%s286 + $0x90] sm:$0xff]
      %v375 = vld [vmem:[%s286 + $0x98] sm:$0xff]
      %v376 = vld [vmem:[%s286 + $0xa0] sm:$0xff]
      %v377 = vld [vmem:[%s286 + $0xa8] sm:$0xff]
      %v378 = vld [vmem:[%s286 + $0xb0] sm:$0xff]
      %v379 = vld [vmem:[%s286 + $0xb8] sm:$0xff]
      %v380 = vld [vmem:[%s286 + $0xc0] sm:$0xff]
      %v381 = vld [vmem:[%s286 + $0xc8] sm:$0xff]
      %v382 = vld [vmem:[%s286 + $0xd0] sm:$0xff]
      %v383 = vld [vmem:[%s286 + $0xd8] sm:$0xff]
      %v384 = vld [vmem:[%s286 + $0xe0] sm:$0xff]
      %v385 = vld [vmem:[%s286 + $0xe8] sm:$0xff]
      %v386 = vld [vmem:[%s286 + $0xf0] sm:$0xff]
      %v387 = vld [vmem:[%s286 + $0xf8] sm:$0xff]
      %v388 = vld [vmem:[%s3] sm:$0xff]
      %v389 = vld [vmem:[%s3 + $0x8] sm:$0xff]
      %v390 = vld [vmem:[%s3 + $0x10] sm:$0xff]
      %v391 = vld [vmem:[%s3 + $0x18] sm:$0xff]
      %v392 = vld [vmem:[%s3 + $0x20] sm:$0xff]
      %v393 = vld [vmem:[%s3 + $0x28] sm:$0xff]
      %v394 = vld [vmem:[%s3 + $0x30] sm:$0xff]
      %v395 = vld [vmem:[%s3 + $0x38] sm:$0xff]
      %v396 = vld [vmem:[%s3 + $0x40] sm:$0xff]
      %v397 = vld [vmem:[%s3 + $0x48] sm:$0xff]
      %v398 = vld [vmem:[%s3 + $0x50] sm:$0xff]
      %v399 = vld [vmem:[%s3 + $0x58] sm:$0xff]
      %v400 = vld [vmem:[%s3 + $0x60] sm:$0xff]
      %v401 = vld [vmem:[%s3 + $0x68] sm:$0xff]
      %v402 = vld [vmem:[%s3 + $0x70] sm:$0xff]
      %v403 = vld [vmem:[%s3 + $0x78] sm:$0xff]
      %404 = vmax.xlane.f32.xlu0 %v292
      %v405 = vpop.xlane.xlu0 %404
      %406 = vmax.xlane.f32.xlu0 %v293
      %v407 = vpop.xlane.xlu0 %406
      %408 = vmax.xlane.f32.xlu0 %v294
      %v409 = vpop.xlane.xlu0 %408
      %410 = vmax.xlane.f32.xlu0 %v295
      %v411 = vpop.xlane.xlu0 %410
      %412 = vmax.xlane.f32.xlu0 %v296
      %v413 = vpop.xlane.xlu0 %412
      %414 = vmax.xlane.f32.xlu0 %v297
      %v415 = vpop.xlane.xlu0 %414
      %416 = vmax.xlane.f32.xlu0 %v298
      %v417 = vpop.xlane.xlu0 %416
      %418 = vmax.xlane.f32.xlu0 %v299
      %v419 = vpop.xlane.xlu0 %418
      %420 = vmax.xlane.f32.xlu0 %v300
      %v421 = vpop.xlane.xlu0 %420
      %422 = vmax.xlane.f32.xlu0 %v301
      %v423 = vpop.xlane.xlu0 %422
      %424 = vmax.xlane.f32.xlu0 %v302
      %v425 = vpop.xlane.xlu0 %424
      %426 = vmax.xlane.f32.xlu0 %v303
      %v427 = vpop.xlane.xlu0 %426
      %428 = vmax.xlane.f32.xlu0 %v304
      %v429 = vpop.xlane.xlu0 %428
      %430 = vmax.xlane.f32.xlu0 %v305
      %v431 = vpop.xlane.xlu0 %430
      %432 = vmax.xlane.f32.xlu0 %v306
      %v433 = vpop.xlane.xlu0 %432
      %434 = vmax.xlane.f32.xlu0 %v307
      %v435 = vpop.xlane.xlu0 %434
      %436 = vmax.xlane.f32.xlu0 %v308
      %v437 = vpop.xlane.xlu0 %436
      %438 = vmax.xlane.f32.xlu0 %v309
      %v439 = vpop.xlane.xlu0 %438
      %440 = vmax.xlane.f32.xlu0 %v310
      %v441 = vpop.xlane.xlu0 %440
      %442 = vmax.xlane.f32.xlu0 %v311
      %v443 = vpop.xlane.xlu0 %442
      %444 = vmax.xlane.f32.xlu0 %v312
      %v445 = vpop.xlane.xlu0 %444
      %446 = vmax.xlane.f32.xlu0 %v313
      %v447 = vpop.xlane.xlu0 %446
      %448 = vmax.xlane.f32.xlu0 %v314
      %v449 = vpop.xlane.xlu0 %448
      %450 = vmax.xlane.f32.xlu0 %v315
      %v451 = vpop.xlane.xlu0 %450
      %452 = vmax.xlane.f32.xlu0 %v316
      %v453 = vpop.xlane.xlu0 %452
      %454 = vmax.xlane.f32.xlu0 %v317
      %v455 = vpop.xlane.xlu0 %454
      %456 = vmax.xlane.f32.xlu0 %v318
      %v457 = vpop.xlane.xlu0 %456
      %458 = vmax.xlane.f32.xlu0 %v319
      %v459 = vpop.xlane.xlu0 %458
      %460 = vmax.xlane.f32.xlu0 %v320
      %v461 = vpop.xlane.xlu0 %460
      %462 = vmax.xlane.f32.xlu0 %v321
      %v463 = vpop.xlane.xlu0 %462
      %464 = vmax.xlane.f32.xlu0 %v322
      %v465 = vpop.xlane.xlu0 %464
      %466 = vmax.xlane.f32.xlu0 %v323
      %v467 = vpop.xlane.xlu0 %466
      %v468 = vsub.f32 %v292, %v405
      %v469 = vsub.f32 %v293, %v407
      %v470 = vsub.f32 %v294, %v409
      %v471 = vsub.f32 %v295, %v411
      %v472 = vsub.f32 %v296, %v413
      %v473 = vsub.f32 %v297, %v415
      %v474 = vsub.f32 %v298, %v417
      %v475 = vsub.f32 %v299, %v419
      %v476 = vsub.f32 %v300, %v421
      %v477 = vsub.f32 %v301, %v423
      %v478 = vsub.f32 %v302, %v425
      %v479 = vsub.f32 %v303, %v427
      %v480 = vsub.f32 %v304, %v429
      %v481 = vsub.f32 %v305, %v431
      %v482 = vsub.f32 %v306, %v433
      %v483 = vsub.f32 %v307, %v435
      %v484 = vsub.f32 %v308, %v437
      %v485 = vsub.f32 %v309, %v439
      %v486 = vsub.f32 %v310, %v441
      %v487 = vsub.f32 %v311, %v443
      %v488 = vsub.f32 %v312, %v445
      %v489 = vsub.f32 %v313, %v447
      %v490 = vsub.f32 %v314, %v449
      %v491 = vsub.f32 %v315, %v451
      %v492 = vsub.f32 %v316, %v453
      %v493 = vsub.f32 %v317, %v455
      %v494 = vsub.f32 %v318, %v457
      %v495 = vsub.f32 %v319, %v459
      %v496 = vsub.f32 %v320, %v461
      %v497 = vsub.f32 %v321, %v463
      %v498 = vsub.f32 %v322, %v465
      %v499 = vsub.f32 %v323, %v467
      %v500 = vmul.f32 %v468, 1.442695
      %v501 = vpow.pop %v500
      %v502 = vmul.f32 %v469, 1.442695
      %v503 = vpow.pop %v502
      %v504 = vmul.f32 %v470, 1.442695
      %v505 = vpow.pop %v504
      %v506 = vmul.f32 %v471, 1.442695
      %v507 = vpow.pop %v506
      %v508 = vmul.f32 %v472, 1.442695
      %v509 = vpow.pop %v508
      %v510 = vmul.f32 %v473, 1.442695
      %v511 = vpow.pop %v510
      %v512 = vmul.f32 %v474, 1.442695
      %v513 = vpow.pop %v512
      %v514 = vmul.f32 %v475, 1.442695
      %v515 = vpow.pop %v514
      %v516 = vmul.f32 %v476, 1.442695
      %v517 = vpow.pop %v516
      %v518 = vmul.f32 %v477, 1.442695
      %v519 = vpow.pop %v518
      %v520 = vmul.f32 %v478, 1.442695
      %v521 = vpow.pop %v520
      %v522 = vmul.f32 %v479, 1.442695
      %v523 = vpow.pop %v522
      %v524 = vmul.f32 %v480, 1.442695
      %v525 = vpow.pop %v524
      %v526 = vmul.f32 %v481, 1.442695
      %v527 = vpow.pop %v526
      %v528 = vmul.f32 %v482, 1.442695
      %v529 = vpow.pop %v528
      %v530 = vmul.f32 %v483, 1.442695
      %v531 = vpow.pop %v530
      %v532 = vmul.f32 %v484, 1.442695
      %v533 = vpow.pop %v532
      %v534 = vmul.f32 %v485, 1.442695
      %v535 = vpow.pop %v534
      %v536 = vmul.f32 %v486, 1.442695
      %v537 = vpow.pop %v536
      %v538 = vmul.f32 %v487, 1.442695
      %v539 = vpow.pop %v538
      %v540 = vmul.f32 %v488, 1.442695
      %v541 = vpow.pop %v540
      %v542 = vmul.f32 %v489, 1.442695
      %v543 = vpow.pop %v542
      %v544 = vmul.f32 %v490, 1.442695
      %v545 = vpow.pop %v544
      %v546 = vmul.f32 %v491, 1.442695
      %v547 = vpow.pop %v546
      %v548 = vmul.f32 %v492, 1.442695
      %v549 = vpow.pop %v548
      %v550 = vmul.f32 %v493, 1.442695
      %v551 = vpow.pop %v550
      %v552 = vmul.f32 %v494, 1.442695
      %v553 = vpow.pop %v552
      %v554 = vmul.f32 %v495, 1.442695
      %v555 = vpow.pop %v554
      %v556 = vmul.f32 %v496, 1.442695
      %v557 = vpow.pop %v556
      %v558 = vmul.f32 %v497, 1.442695
      %v559 = vpow.pop %v558
      %v560 = vmul.f32 %v498, 1.442695
      %v561 = vpow.pop %v560
      %v562 = vmul.f32 %v499, 1.442695
      %v563 = vpow.pop %v562
      %564 = vmatprep.subr.mxu0 0.0
      %565 = vmatpush1.msra.mxu0 %v388
      %566 = vmatprep.subr.mxu0 0.0
      %567 = vmatpush1.msra.mxu0 %v389
      %568 = vmatprep.subr.mxu0 0.0
      %569 = vmatpush1.msra.mxu0 %v390
      %570 = vmatprep.subr.mxu0 0.0
      %571 = vmatpush1.msra.mxu0 %v391
      %572 = vmatprep.subr.mxu0 0.0
      %573 = vmatpush1.msra.mxu0 %v392
      %574 = vmatprep.subr.mxu0 0.0
      %575 = vmatpush1.msra.mxu0 %v393
      %576 = vmatprep.subr.mxu0 0.0
      %577 = vmatpush1.msra.mxu0 %v394
      %578 = vmatprep.subr.mxu0 0.0
      %579 = vmatpush1.msra.mxu0 %v395
      %580 = vmatprep.subr.mxu0 0.0
      %581 = vmatpush1.msra.mxu0 %v396
      %582 = vmatprep.subr.mxu0 0.0
      %583 = vmatpush1.msra.mxu0 %v397
      %584 = vmatprep.subr.mxu0 0.0
      %585 = vmatpush1.msra.mxu0 %v398
      %586 = vmatprep.subr.mxu0 0.0
      %587 = vmatpush1.msra.mxu0 %v399
      %588 = vmatprep.subr.mxu0 0.0
      %589 = vmatpush1.msra.mxu0 %v400
      %590 = vmatprep.subr.mxu0 0.0
      %591 = vmatpush1.msra.mxu0 %v401
      %592 = vmatprep.subr.mxu0 0.0
      %593 = vmatpush1.msra.mxu0 %v402
      %594 = vmatprep.subr.mxu0 0.0
      %595 = vmatpush1.msra.mxu0 %v403
      %596 = vmatprep.subr.mxu0 0.0
      %597 = vmatpush1.msra.mxu0 0.0
      %598 = vmatprep.subr.mxu0 0.0
      %599 = vmatpush1.msra.mxu0 0.0
      %600 = vmatprep.subr.mxu0 0.0
      %601 = vmatpush1.msra.mxu0 0.0
      %602 = vmatprep.subr.mxu0 0.0
      %603 = vmatpush1.msra.mxu0 0.0
      %604 = vmatprep.subr.mxu0 0.0
      %605 = vmatpush1.msra.mxu0 0.0
      %606 = vmatprep.subr.mxu0 0.0
      %607 = vmatpush1.msra.mxu0 0.0
      %608 = vmatprep.subr.mxu0 0.0
      %609 = vmatpush1.msra.mxu0 0.0
      %610 = vmatprep.subr.mxu0 0.0
      %611 = vmatpush1.msra.mxu0 0.0
      %612 = vmatprep.subr.mxu0 0.0
      %613 = vmatpush1.msra.mxu0 0.0
      %614 = vmatprep.subr.mxu0 0.0
      %615 = vmatpush1.msra.mxu0 0.0
      %616 = vmatprep.subr.mxu0 0.0
      %617 = vmatpush1.msra.mxu0 0.0
      %618 = vmatprep.subr.mxu0 0.0
      %619 = vmatpush1.msra.mxu0 0.0
      %620 = vmatprep.subr.mxu0 0.0
      %621 = vmatpush1.msra.mxu0 0.0
      %622 = vmatprep.subr.mxu0 0.0
      %623 = vmatpush1.msra.mxu0 0.0
      %624 = vmatprep.subr.mxu0 0.0
      %625 = vmatpush1.msra.mxu0 0.0
      %626 = vmatprep.subr.mxu0 0.0
      %627 = vmatpush1.msra.mxu0 0.0
      %628 = vmatprep.mubr.f32.mxu0 0.0
      %629 = vmatmul.mubr.f32.gmra.mrb[0].mxu0 %v501
      %v630 = vpop.f32.mrb[0].mxu0
      %v631 = vadd.f32 0.0, %v630
      %v632 = vpop.f32.mrb[0].mxu0
      %633 = vmatprep.mubr.f32.mxu0 0.0
      %634 = vmatmul.mubr.f32.gmra.mrb[0].mxu0 %v503
      %v635 = vpop.f32.mrb[0].mxu0
      %v636 = vadd.f32 0.0, %v635
      %v637 = vpop.f32.mrb[0].mxu0
      %638 = vmatprep.mubr.f32.mxu0 0.0
      %639 = vmatmul.mubr.f32.gmra.mrb[0].mxu0 %v505
      %v640 = vpop.f32.mrb[0].mxu0
      %v641 = vadd.f32 0.0, %v640
      %v642 = vpop.f32.mrb[0].mxu0
      %643 = vmatprep.mubr.f32.mxu0 0.0
      %644 = vmatmul.mubr.f32.gmra.mrb[0].mxu0 %v507
      %v645 = vpop.f32.mrb[0].mxu0
      %v646 = vadd.f32 0.0, %v645
      %v647 = vpop.f32.mrb[0].mxu0
      %648 = vmatprep.mubr.f32.mxu0 0.0
      %649 = vmatmul.mubr.f32.gmra.mrb[0].mxu0 %v509
      %v650 = vpop.f32.mrb[0].mxu0
      %v651 = vadd.f32 0.0, %v650
      %v652 = vpop.f32.mrb[0].mxu0
      %653 = vmatprep.mubr.f32.mxu0 0.0
      %654 = vmatmul.mubr.f32.gmra.mrb[0].mxu0 %v511
      %v655 = vpop.f32.mrb[0].mxu0
      %v656 = vadd.f32 0.0, %v655
      %v657 = vpop.f32.mrb[0].mxu0
      %658 = vmatprep.mubr.f32.mxu0 0.0
      %659 = vmatmul.mubr.f32.gmra.mrb[0].mxu0 %v513
      %v660 = vpop.f32.mrb[0].mxu0
      %v661 = vadd.f32 0.0, %v660
      %v662 = vpop.f32.mrb[0].mxu0
      %663 = vmatprep.mubr.f32.mxu0 0.0
      %664 = vmatmul.mubr.f32.gmra.mrb[0].mxu0 %v515
      %v665 = vpop.f32.mrb[0].mxu0
      %v666 = vadd.f32 0.0, %v665
      %v667 = vpop.f32.mrb[0].mxu0
      %668 = vmatprep.mubr.f32.mxu0 0.0
      %669 = vmatmul.mubr.f32.gmra.mrb[0].mxu0 %v517
      %v670 = vpop.f32.mrb[0].mxu0
      %v671 = vadd.f32 0.0, %v670
      %v672 = vpop.f32.mrb[0].mxu0
      %673 = vmatprep.mubr.f32.mxu0 0.0
      %674 = vmatmul.mubr.f32.gmra.mrb[0].mxu0 %v519
      %v675 = vpop.f32.mrb[0].mxu0
      %v676 = vadd.f32 0.0, %v675
      %v677 = vpop.f32.mrb[0].mxu0
      %678 = vmatprep.mubr.f32.mxu0 0.0
      %679 = vmatmul.mubr.f32.gmra.mrb[0].mxu0 %v521
      %v680 = vpop.f32.mrb[0].mxu0
      %v681 = vadd.f32 0.0, %v680
      %v682 = vpop.f32.mrb[0].mxu0
      %683 = vmatprep.mubr.f32.mxu0 0.0
      %684 = vmatmul.mubr.f32.gmra.mrb[0].mxu0 %v523
      %v685 = vpop.f32.mrb[0].mxu0
      %v686 = vadd.f32 0.0, %v685
      %v687 = vpop.f32.mrb[0].mxu0
      %688 = vmatprep.mubr.f32.mxu0 0.0
      %689 = vmatmul.mubr.f32.gmra.mrb[0].mxu0 %v525
      %v690 = vpop.f32.mrb[0].mxu0
      %v691 = vadd.f32 0.0, %v690
      %v692 = vpop.f32.mrb[0].mxu0
      %693 = vmatprep.mubr.f32.mxu0 0.0
      %694 = vmatmul.mubr.f32.gmra.mrb[0].mxu0 %v527
      %v695 = vpop.f32.mrb[0].mxu0
      %v696 = vadd.f32 0.0, %v695
      %v697 = vpop.f32.mrb[0].mxu0
      %698 = vmatprep.mubr.f32.mxu0 0.0
      %699 = vmatmul.mubr.f32.gmra.mrb[0].mxu0 %v529
      %v700 = vpop.f32.mrb[0].mxu0
      %v701 = vadd.f32 0.0, %v700
      %v702 = vpop.f32.mrb[0].mxu0
      %703 = vmatprep.mubr.f32.mxu0 0.0
      %704 = vmatmul.mubr.f32.gmra.mrb[0].mxu0 %v531
      %v705 = vpop.f32.mrb[0].mxu0
      %v706 = vadd.f32 0.0, %v705
      %v707 = vpop.f32.mrb[0].mxu0
      %708 = vmatprep.mubr.f32.mxu0 0.0
      %709 = vmatmul.mubr.f32.gmra.mrb[0].mxu0 %v533
      %v710 = vpop.f32.mrb[0].mxu0
      %v711 = vadd.f32 0.0, %v710
      %v712 = vpop.f32.mrb[0].mxu0
      %713 = vmatprep.mubr.f32.mxu0 0.0
      %714 = vmatmul.mubr.f32.gmra.mrb[0].mxu0 %v535
      %v715 = vpop.f32.mrb[0].mxu0
      %v716 = vadd.f32 0.0, %v715
      %v717 = vpop.f32.mrb[0].mxu0
      %718 = vmatprep.mubr.f32.mxu0 0.0
      %719 = vmatmul.mubr.f32.gmra.mrb[0].mxu0 %v537
      %v720 = vpop.f32.mrb[0].mxu0
      %v721 = vadd.f32 0.0, %v720
      %v722 = vpop.f32.mrb[0].mxu0
      %723 = vmatprep.mubr.f32.mxu0 0.0
      %724 = vmatmul.mubr.f32.gmra.mrb[0].mxu0 %v539
      %v725 = vpop.f32.mrb[0].mxu0
      %v726 = vadd.f32 0.0, %v725
      %v727 = vpop.f32.mrb[0].mxu0
      %728 = vmatprep.mubr.f32.mxu0 0.0
      %729 = vmatmul.mubr.f32.gmra.mrb[0].mxu0 %v541
      %v730 = vpop.f32.mrb[0].mxu0
      %v731 = vadd.f32 0.0, %v730
      %v732 = vpop.f32.mrb[0].mxu0
      %733 = vmatprep.mubr.f32.mxu0 0.0
      %734 = vmatmul.mubr.f32.gmra.mrb[0].mxu0 %v543
      %v735 = vpop.f32.mrb[0].mxu0
      %v736 = vadd.f32 0.0, %v735
      %v737 = vpop.f32.mrb[0].mxu0
      %738 = vmatprep.mubr.f32.mxu0 0.0
      %739 = vmatmul.mubr.f32.gmra.mrb[0].mxu0 %v545
      %v740 = vpop.f32.mrb[0].mxu0
      %v741 = vadd.f32 0.0, %v740
      %v742 = vpop.f32.mrb[0].mxu0
      %743 = vmatprep.mubr.f32.mxu0 0.0
      %744 = vmatmul.mubr.f32.gmra.mrb[0].mxu0 %v547
      %v745 = vpop.f32.mrb[0].mxu0
      %v746 = vadd.f32 0.0, %v745
      %v747 = vpop.f32.mrb[0].mxu0
      %748 = vmatprep.mubr.f32.mxu0 0.0
      %749 = vmatmul.mubr.f32.gmra.mrb[0].mxu0 %v549
      %v750 = vpop.f32.mrb[0].mxu0
      %v751 = vadd.f32 0.0, %v750
      %v752 = vpop.f32.mrb[0].mxu0
      %753 = vmatprep.mubr.f32.mxu0 0.0
      %754 = vmatmul.mubr.f32.gmra.mrb[0].mxu0 %v551
      %v755 = vpop.f32.mrb[0].mxu0
      %v756 = vadd.f32 0.0, %v755
      %v757 = vpop.f32.mrb[0].mxu0
      %758 = vmatprep.mubr.f32.mxu0 0.0
      %759 = vmatmul.mubr.f32.gmra.mrb[0].mxu0 %v553
      %v760 = vpop.f32.mrb[0].mxu0
      %v761 = vadd.f32 0.0, %v760
      %v762 = vpop.f32.mrb[0].mxu0
      %763 = vmatprep.mubr.f32.mxu0 0.0
      %764 = vmatmul.mubr.f32.gmra.mrb[0].mxu0 %v555
      %v765 = vpop.f32.mrb[0].mxu0
      %v766 = vadd.f32 0.0, %v765
      %v767 = vpop.f32.mrb[0].mxu0
      %768 = vmatprep.mubr.f32.mxu0 0.0
      %769 = vmatmul.mubr.f32.gmra.mrb[0].mxu0 %v557
      %v770 = vpop.f32.mrb[0].mxu0
      %v771 = vadd.f32 0.0, %v770
      %v772 = vpop.f32.mrb[0].mxu0
      %773 = vmatprep.mubr.f32.mxu0 0.0
      %774 = vmatmul.mubr.f32.gmra.mrb[0].mxu0 %v559
      %v775 = vpop.f32.mrb[0].mxu0
      %v776 = vadd.f32 0.0, %v775
      %v777 = vpop.f32.mrb[0].mxu0
      %778 = vmatprep.mubr.f32.mxu0 0.0
      %779 = vmatmul.mubr.f32.gmra.mrb[0].mxu0 %v561
      %v780 = vpop.f32.mrb[0].mxu0
      %v781 = vadd.f32 0.0, %v780
      %v782 = vpop.f32.mrb[0].mxu0
      %783 = vmatprep.mubr.f32.mxu0 0.0
      %784 = vmatmul.mubr.f32.gmra.mrb[0].mxu0 %v563
      %v785 = vpop.f32.mrb[0].mxu0
      %v786 = vadd.f32 0.0, %v785
      %v787 = vpop.f32.mrb[0].mxu0
      %788 = vdwg.mxu0
      %v789 = vrcp.pop %v631
      %v790 = vrcp.pop %v636
      %v791 = vrcp.pop %v641
      %v792 = vrcp.pop %v646
      %v793 = vrcp.pop %v651
      %v794 = vrcp.pop %v656
      %v795 = vrcp.pop %v661
      %v796 = vrcp.pop %v666
      %v797 = vrcp.pop %v671
      %v798 = vrcp.pop %v676
      %v799 = vrcp.pop %v681
      %v800 = vrcp.pop %v686
      %v801 = vrcp.pop %v691
      %v802 = vrcp.pop %v696
      %v803 = vrcp.pop %v701
      %v804 = vrcp.pop %v706
      %v805 = vrcp.pop %v711
      %v806 = vrcp.pop %v716
      %v807 = vrcp.pop %v721
      %v808 = vrcp.pop %v726
      %v809 = vrcp.pop %v731
      %v810 = vrcp.pop %v736
      %v811 = vrcp.pop %v741
      %v812 = vrcp.pop %v746
      %v813 = vrcp.pop %v751
      %v814 = vrcp.pop %v756
      %v815 = vrcp.pop %v761
      %v816 = vrcp.pop %v766
      %v817 = vrcp.pop %v771
      %v818 = vrcp.pop %v776
      %v819 = vrcp.pop %v781
      %v820 = vrcp.pop %v786
      %v821 = vmul.f32 %v789, 0.17677669
      %v822 = vmul.f32 %v790, 0.17677669
      %v823 = vmul.f32 %v791, 0.17677669
      %v824 = vmul.f32 %v792, 0.17677669
      %v825 = vmul.f32 %v793, 0.17677669
      %v826 = vmul.f32 %v794, 0.17677669
      %v827 = vmul.f32 %v795, 0.17677669
      %v828 = vmul.f32 %v796, 0.17677669
      %v829 = vmul.f32 %v797, 0.17677669
      %v830 = vmul.f32 %v798, 0.17677669
      %v831 = vmul.f32 %v799, 0.17677669
      %v832 = vmul.f32 %v800, 0.17677669
      %v833 = vmul.f32 %v801, 0.17677669
      %v834 = vmul.f32 %v802, 0.17677669
      %v835 = vmul.f32 %v803, 0.17677669
      %v836 = vmul.f32 %v804, 0.17677669
      %v837 = vmul.f32 %v805, 0.17677669
      %v838 = vmul.f32 %v806, 0.17677669
      %v839 = vmul.f32 %v807, 0.17677669
      %v840 = vmul.f32 %v808, 0.17677669
      %v841 = vmul.f32 %v809, 0.17677669
      %v842 = vmul.f32 %v810, 0.17677669
      %v843 = vmul.f32 %v811, 0.17677669
      %v844 = vmul.f32 %v812, 0.17677669
      %v845 = vmul.f32 %v813, 0.17677669
      %v846 = vmul.f32 %v814, 0.17677669
      %v847 = vmul.f32 %v815, 0.17677669
      %v848 = vmul.f32 %v816, 0.17677669
      %v849 = vmul.f32 %v817, 0.17677669
      %v850 = vmul.f32 %v818, 0.17677669
      %v851 = vmul.f32 %v819, 0.17677669
      %v852 = vmul.f32 %v820, 0.17677669
      %v853 = vmul.f32 %v501, %v821
      %v854 = vmul.f32 %v503, %v822
      %v855 = vmul.f32 %v505, %v823
      %v856 = vmul.f32 %v507, %v824
      %v857 = vmul.f32 %v509, %v825
      %v858 = vmul.f32 %v511, %v826
      %v859 = vmul.f32 %v513, %v827
      %v860 = vmul.f32 %v515, %v828
      %v861 = vmul.f32 %v517, %v829
      %v862 = vmul.f32 %v519, %v830
      %v863 = vmul.f32 %v521, %v831
      %v864 = vmul.f32 %v523, %v832
      %v865 = vmul.f32 %v525, %v833
      %v866 = vmul.f32 %v527, %v834
      %v867 = vmul.f32 %v529, %v835
      %v868 = vmul.f32 %v531, %v836
      %v869 = vmul.f32 %v533, %v837
      %v870 = vmul.f32 %v535, %v838
      %v871 = vmul.f32 %v537, %v839
      %v872 = vmul.f32 %v539, %v840
      %v873 = vmul.f32 %v541, %v841
      %v874 = vmul.f32 %v543, %v842
      %v875 = vmul.f32 %v545, %v843
      %v876 = vmul.f32 %v547, %v844
      %v877 = vmul.f32 %v549, %v845
      %v878 = vmul.f32 %v551, %v846
      %v879 = vmul.f32 %v553, %v847
      %v880 = vmul.f32 %v555, %v848
      %v881 = vmul.f32 %v557, %v849
      %v882 = vmul.f32 %v559, %v850
      %v883 = vmul.f32 %v561, %v851
      %v884 = vmul.f32 %v563, %v852
      %v885 = vmax.f32 %v324, %v328
      %v886 = vmax.f32 %v325, %v329
      %v887 = vmax.f32 %v326, %v330
      %v888 = vmax.f32 %v327, %v331
      %v889 = vmax.f32 %v885, %v332
      %v890 = vmax.f32 %v886, %v333
      %v891 = vmax.f32 %v887, %v334
      %v892 = vmax.f32 %v888, %v335
      %v893 = vmax.f32 %v889, %v336
      %v894 = vmax.f32 %v890, %v337
      %v895 = vmax.f32 %v891, %v338
      %v896 = vmax.f32 %v892, %v339
      %v897 = vmax.f32 %v893, %v340
      %v898 = vmax.f32 %v894, %v341
      %v899 = vmax.f32 %v895, %v342
      %v900 = vmax.f32 %v896, %v343
      %v901 = vmax.f32 %v897, %v344
      %v902 = vmax.f32 %v898, %v345
      %v903 = vmax.f32 %v899, %v346
      %v904 = vmax.f32 %v900, %v347
      %v905 = vmax.f32 %v901, %v348
      %v906 = vmax.f32 %v902, %v349
      %v907 = vmax.f32 %v903, %v350
      %v908 = vmax.f32 %v904, %v351
      %v909 = vmax.f32 %v905, %v352
      %v910 = vmax.f32 %v906, %v353
      %v911 = vmax.f32 %v907, %v354
      %v912 = vmax.f32 %v908, %v355
      %v913 = vmax.f32 %v909, %v910
      %v914 = vmax.f32 %v911, %v912
      %v915 = vmax.f32 %v913, %v914
      %v916 = vrot.slane %v915, 4
      %v917 = vmax.f32 %v915, %v916
      %v918 = vrot.slane %v917, 2
      %v919 = vmax.f32 %v917, %v918
      %v920 = vrot.slane %v919, 1
      %v921 = vmax.f32 %v919, %v920
      %v922 = vsub.f32 %v324, %v921
      %v923 = vsub.f32 %v325, %v921
      %v924 = vsub.f32 %v326, %v921
      %v925 = vsub.f32 %v327, %v921
      %v926 = vsub.f32 %v328, %v921
      %v927 = vsub.f32 %v329, %v921
      %v928 = vsub.f32 %v330, %v921
      %v929 = vsub.f32 %v331, %v921
      %v930 = vsub.f32 %v332, %v921
      %v931 = vsub.f32 %v333, %v921
      %v932 = vsub.f32 %v334, %v921
      %v933 = vsub.f32 %v335, %v921
      %v934 = vsub.f32 %v336, %v921
      %v935 = vsub.f32 %v337, %v921
      %v936 = vsub.f32 %v338, %v921
      %v937 = vsub.f32 %v339, %v921
      %v938 = vsub.f32 %v340, %v921
      %v939 = vsub.f32 %v341, %v921
      %v940 = vsub.f32 %v342, %v921
      %v941 = vsub.f32 %v343, %v921
      %v942 = vsub.f32 %v344, %v921
      %v943 = vsub.f32 %v345, %v921
      %v944 = vsub.f32 %v346, %v921
      %v945 = vsub.f32 %v347, %v921
      %v946 = vsub.f32 %v348, %v921
      %v947 = vsub.f32 %v349, %v921
      %v948 = vsub.f32 %v350, %v921
      %v949 = vsub.f32 %v351, %v921
      %v950 = vsub.f32 %v352, %v921
      %v951 = vsub.f32 %v353, %v921
      %v952 = vsub.f32 %v354, %v921
      %v953 = vsub.f32 %v355, %v921
      %v954 = vmul.f32 %v922, 1.442695
      %v955 = vpow.pop %v954
      %v956 = vmul.f32 %v923, 1.442695
      %v957 = vpow.pop %v956
      %v958 = vmul.f32 %v924, 1.442695
      %v959 = vpow.pop %v958
      %v960 = vmul.f32 %v925, 1.442695
      %v961 = vpow.pop %v960
      %v962 = vmul.f32 %v926, 1.442695
      %v963 = vpow.pop %v962
      %v964 = vmul.f32 %v927, 1.442695
      %v965 = vpow.pop %v964
      %v966 = vmul.f32 %v928, 1.442695
      %v967 = vpow.pop %v966
      %v968 = vmul.f32 %v929, 1.442695
      %v969 = vpow.pop %v968
      %v970 = vmul.f32 %v930, 1.442695
      %v971 = vpow.pop %v970
      %v972 = vmul.f32 %v931, 1.442695
      %v973 = vpow.pop %v972
      %v974 = vmul.f32 %v932, 1.442695
      %v975 = vpow.pop %v974
      %v976 = vmul.f32 %v933, 1.442695
      %v977 = vpow.pop %v976
      %v978 = vmul.f32 %v934, 1.442695
      %v979 = vpow.pop %v978
      %v980 = vmul.f32 %v935, 1.442695
      %v981 = vpow.pop %v980
      %v982 = vmul.f32 %v936, 1.442695
      %v983 = vpow.pop %v982
      %v984 = vmul.f32 %v937, 1.442695
      %v985 = vpow.pop %v984
      %v986 = vmul.f32 %v938, 1.442695
      %v987 = vpow.pop %v986
      %v988 = vmul.f32 %v939, 1.442695
      %v989 = vpow.pop %v988
      %v990 = vmul.f32 %v940, 1.442695
      %v991 = vpow.pop %v990
      %v992 = vmul.f32 %v941, 1.442695
      %v993 = vpow.pop %v992
      %v994 = vmul.f32 %v942, 1.442695
      %v995 = vpow.pop %v994
      %v996 = vmul.f32 %v943, 1.442695
      %v997 = vpow.pop %v996
      %v998 = vmul.f32 %v944, 1.442695
      %v999 = vpow.pop %v998
      %v1000 = vmul.f32 %v945, 1.442695
      %v1001 = vpow.pop %v1000
      %v1002 = vmul.f32 %v946, 1.442695
      %v1003 = vpow.pop %v1002
      %v1004 = vmul.f32 %v947, 1.442695
      %v1005 = vpow.pop %v1004
      %v1006 = vmul.f32 %v948, 1.442695
      %v1007 = vpow.pop %v1006
      %v1008 = vmul.f32 %v949, 1.442695
      %v1009 = vpow.pop %v1008
      %v1010 = vmul.f32 %v950, 1.442695
      %v1011 = vpow.pop %v1010
      %v1012 = vmul.f32 %v951, 1.442695
      %v1013 = vpow.pop %v1012
      %v1014 = vmul.f32 %v952, 1.442695
      %v1015 = vpow.pop %v1014
      %v1016 = vmul.f32 %v953, 1.442695
      %v1017 = vpow.pop %v1016
      %v1018 = vadd.f32 %v955, %v957
      %v1019 = vadd.f32 %v1018, %v959
      %v1020 = vadd.f32 %v1019, %v961
      %v1021 = vadd.f32 %v1020, %v963
      %v1022 = vadd.f32 %v1021, %v965
      %v1023 = vadd.f32 %v1022, %v967
      %v1024 = vadd.f32 %v1023, %v969
      %v1025 = vadd.f32 %v1024, %v971
      %v1026 = vadd.f32 %v1025, %v973
      %v1027 = vadd.f32 %v1026, %v975
      %v1028 = vadd.f32 %v1027, %v977
      %v1029 = vadd.f32 %v1028, %v979
      %v1030 = vadd.f32 %v1029, %v981
      %v1031 = vadd.f32 %v1030, %v983
      %v1032 = vadd.f32 %v1031, %v985
      %v1033 = vadd.f32 %v1032, %v987
      %v1034 = vadd.f32 %v1033, %v989
      %v1035 = vadd.f32 %v1034, %v991
      %v1036 = vadd.f32 %v1035, %v993
      %v1037 = vadd.f32 %v1036, %v995
      %v1038 = vadd.f32 %v1037, %v997
      %v1039 = vadd.f32 %v1038, %v999
      %v1040 = vadd.f32 %v1039, %v1001
      %v1041 = vadd.f32 %v1040, %v1003
      %v1042 = vadd.f32 %v1041, %v1005
      %v1043 = vadd.f32 %v1042, %v1007
      %v1044 = vadd.f32 %v1043, %v1009
      %v1045 = vadd.f32 %v1044, %v1011
      %v1046 = vadd.f32 %v1045, %v1013
      %v1047 = vadd.f32 %v1046, %v1015
      %v1048 = vadd.f32 %v1047, %v1017
      %v1049 = vrot.slane %v1048, 4
      %v1050 = vadd.f32 %v1048, %v1049
      %v1051 = vrot.slane %v1050, 2
      %v1052 = vadd.f32 %v1050, %v1051
      %v1053 = vrot.slane %v1052, 1
      %v1054 = vadd.f32 %v1052, %v1053
      %v1055 = vrcp.pop %v1054
      %v1056 = vmul.f32 %v955, %v1055
      %v1057 = vmul.f32 %v957, %v1055
      %v1058 = vmul.f32 %v959, %v1055
      %v1059 = vmul.f32 %v961, %v1055
      %v1060 = vmul.f32 %v963, %v1055
      %v1061 = vmul.f32 %v965, %v1055
      %v1062 = vmul.f32 %v967, %v1055
      %v1063 = vmul.f32 %v969, %v1055
      %v1064 = vmul.f32 %v971, %v1055
      %v1065 = vmul.f32 %v973, %v1055
      %v1066 = vmul.f32 %v975, %v1055
      %v1067 = vmul.f32 %v977, %v1055
      %v1068 = vmul.f32 %v979, %v1055
      %v1069 = vmul.f32 %v981, %v1055
      %v1070 = vmul.f32 %v983, %v1055
      %v1071 = vmul.f32 %v985, %v1055
      %v1072 = vmul.f32 %v987, %v1055
      %v1073 = vmul.f32 %v989, %v1055
      %v1074 = vmul.f32 %v991, %v1055
      %v1075 = vmul.f32 %v993, %v1055
      %v1076 = vmul.f32 %v995, %v1055
      %v1077 = vmul.f32 %v997, %v1055
      %v1078 = vmul.f32 %v999, %v1055
      %v1079 = vmul.f32 %v1001, %v1055
      %v1080 = vmul.f32 %v1003, %v1055
      %v1081 = vmul.f32 %v1005, %v1055
      %v1082 = vmul.f32 %v1007, %v1055
      %v1083 = vmul.f32 %v1009, %v1055
      %v1084 = vmul.f32 %v1011, %v1055
      %v1085 = vmul.f32 %v1013, %v1055
      %v1086 = vmul.f32 %v1015, %v1055
      %v1087 = vmul.f32 %v1017, %v1055
      %1088 = vxpose.xlu0.b32.start [1/16] %v1056, 128
      %1089 = vxpose.xlu0.b32.cont [2/16] %v1057, 128
      %1090 = vxpose.xlu0.b32.cont [3/16] %v1058, 128
      %1091 = vxpose.xlu0.b32.cont [4/16] %v1059, 128
      %1092 = vxpose.xlu0.b32.cont [5/16] %v1060, 128
      %1093 = vxpose.xlu0.b32.cont [6/16] %v1061, 128
      %1094 = vxpose.xlu0.b32.cont [7/16] %v1062, 128
      %1095 = vxpose.xlu0.b32.cont [8/16] %v1063, 128
      %1096 = vxpose.xlu0.b32.cont [9/16] %v1064, 128
      %1097 = vxpose.xlu0.b32.cont [10/16] %v1065, 128
      %1098 = vxpose.xlu0.b32.cont [11/16] %v1066, 128
      %1099 = vxpose.xlu0.b32.cont [12/16] %v1067, 128
      %1100 = vxpose.xlu0.b32.cont [13/16] %v1068, 128
      %1101 = vxpose.xlu0.b32.cont [14/16] %v1069, 128
      %1102 = vxpose.xlu0.b32.cont [15/16] %v1070, 128
      %1103 = vxpose.xlu0.b32.end [16/16] %v1071, 128
      %v1104 = vpop.trf.xlu0
      %v1105 = vpop.trf.xlu0
      %v1106 = vpop.trf.xlu0
      %v1107 = vpop.trf.xlu0
      %v1108 = vpop.trf.xlu0
      %v1109 = vpop.trf.xlu0
      %v1110 = vpop.trf.xlu0
      %v1111 = vpop.trf.xlu0
      %v1112 = vpop.trf.xlu0
      %v1113 = vpop.trf.xlu0
      %v1114 = vpop.trf.xlu0
      %v1115 = vpop.trf.xlu0
      %v1116 = vpop.trf.xlu0
      %v1117 = vpop.trf.xlu0
      %v1118 = vpop.trf.xlu0
      %v1119 = vpop.trf.xlu0
      %1120 = vxpose.xlu0.b32.start [1/16] %v1072, 128
      %1121 = vxpose.xlu0.b32.cont [2/16] %v1073, 128
      %1122 = vxpose.xlu0.b32.cont [3/16] %v1074, 128
      %1123 = vxpose.xlu0.b32.cont [4/16] %v1075, 128
      %1124 = vxpose.xlu0.b32.cont [5/16] %v1076, 128
      %1125 = vxpose.xlu0.b32.cont [6/16] %v1077, 128
      %1126 = vxpose.xlu0.b32.cont [7/16] %v1078, 128
      %1127 = vxpose.xlu0.b32.cont [8/16] %v1079, 128
      %1128 = vxpose.xlu0.b32.cont [9/16] %v1080, 128
      %1129 = vxpose.xlu0.b32.cont [10/16] %v1081, 128
      %1130 = vxpose.xlu0.b32.cont [11/16] %v1082, 128
      %1131 = vxpose.xlu0.b32.cont [12/16] %v1083, 128
      %1132 = vxpose.xlu0.b32.cont [13/16] %v1084, 128
      %1133 = vxpose.xlu0.b32.cont [14/16] %v1085, 128
      %1134 = vxpose.xlu0.b32.cont [15/16] %v1086, 128
      %1135 = vxpose.xlu0.b32.end [16/16] %v1087, 128
      %v1136 = vpop.trf.xlu0
      %v1137 = vpop.trf.xlu0
      %v1138 = vpop.trf.xlu0
      %v1139 = vpop.trf.xlu0
      %v1140 = vpop.trf.xlu0
      %v1141 = vpop.trf.xlu0
      %v1142 = vpop.trf.xlu0
      %v1143 = vpop.trf.xlu0
      %v1144 = vpop.trf.xlu0
      %v1145 = vpop.trf.xlu0
      %v1146 = vpop.trf.xlu0
      %v1147 = vpop.trf.xlu0
      %v1148 = vpop.trf.xlu0
      %v1149 = vpop.trf.xlu0
      %v1150 = vpop.trf.xlu0
      %v1151 = vpop.trf.xlu0
      %1152 = vmatprep.subr.mxu0 0.0
      %1153 = vmatpush1.msra.mxu0 %v356
      %1154 = vmatprep.subr.mxu0 0.0
      %1155 = vmatpush1.msra.mxu0 %v357
      %1156 = vmatprep.subr.mxu0 0.0
      %1157 = vmatpush1.msra.mxu0 %v358
      %1158 = vmatprep.subr.mxu0 0.0
      %1159 = vmatpush1.msra.mxu0 %v359
      %1160 = vmatprep.subr.mxu0 0.0
      %1161 = vmatpush1.msra.mxu0 %v360
      %1162 = vmatprep.subr.mxu0 0.0
      %1163 = vmatpush1.msra.mxu0 %v361
      %1164 = vmatprep.subr.mxu0 0.0
      %1165 = vmatpush1.msra.mxu0 %v362
      %1166 = vmatprep.subr.mxu0 0.0
      %1167 = vmatpush1.msra.mxu0 %v363
      %1168 = vmatprep.subr.mxu0 0.0
      %1169 = vmatpush1.msra.mxu0 %v364
      %1170 = vmatprep.subr.mxu0 0.0
      %1171 = vmatpush1.msra.mxu0 %v365
      %1172 = vmatprep.subr.mxu0 0.0
      %1173 = vmatpush1.msra.mxu0 %v366
      %1174 = vmatprep.subr.mxu0 0.0
      %1175 = vmatpush1.msra.mxu0 %v367
      %1176 = vmatprep.subr.mxu0 0.0
      %1177 = vmatpush1.msra.mxu0 %v368
      %1178 = vmatprep.subr.mxu0 0.0
      %1179 = vmatpush1.msra.mxu0 %v369
      %1180 = vmatprep.subr.mxu0 0.0
      %1181 = vmatpush1.msra.mxu0 %v370
      %1182 = vmatprep.subr.mxu0 0.0
      %1183 = vmatpush1.msra.mxu0 %v371
      %1184 = vmatprep.subr.mxu0 0.0
      %1185 = vmatpush1.msra.mxu0 %v372
      %1186 = vmatprep.subr.mxu0 0.0
      %1187 = vmatpush1.msra.mxu0 %v373
      %1188 = vmatprep.subr.mxu0 0.0
      %1189 = vmatpush1.msra.mxu0 %v374
      %1190 = vmatprep.subr.mxu0 0.0
      %1191 = vmatpush1.msra.mxu0 %v375
      %1192 = vmatprep.subr.mxu0 0.0
      %1193 = vmatpush1.msra.mxu0 %v376
      %1194 = vmatprep.subr.mxu0 0.0
      %1195 = vmatpush1.msra.mxu0 %v377
      %1196 = vmatprep.subr.mxu0 0.0
      %1197 = vmatpush1.msra.mxu0 %v378
      %1198 = vmatprep.subr.mxu0 0.0
      %1199 = vmatpush1.msra.mxu0 %v379
      %1200 = vmatprep.subr.mxu0 0.0
      %1201 = vmatpush1.msra.mxu0 %v380
      %1202 = vmatprep.subr.mxu0 0.0
      %1203 = vmatpush1.msra.mxu0 %v381
      %1204 = vmatprep.subr.mxu0 0.0
      %1205 = vmatpush1.msra.mxu0 %v382
      %1206 = vmatprep.subr.mxu0 0.0
      %1207 = vmatpush1.msra.mxu0 %v383
      %1208 = vmatprep.subr.mxu0 0.0
      %1209 = vmatpush1.msra.mxu0 %v384
      %1210 = vmatprep.subr.mxu0 0.0
      %1211 = vmatpush1.msra.mxu0 %v385
      %1212 = vmatprep.subr.mxu0 0.0
      %1213 = vmatpush1.msra.mxu0 %v386
      %1214 = vmatprep.subr.mxu0 0.0
      %1215 = vmatpush1.msra.mxu0 %v387
      %1216 = vmatprep.mubr.f32.mxu0 %v1136
      %1217 = vmatmul.mubr.f32.gmra.mrb[0].mxu0 %v1104
      %v1218 = vpop.f32.mrb[0].mxu0
      %v1219 = vadd.f32 0.0, %v1218
      %v1220 = vpop.f32.mrb[0].mxu0
      %1221 = vmatprep.mubr.f32.mxu0 %v1137
      %1222 = vmatmul.mubr.f32.gmra.mrb[0].mxu0 %v1105
      %v1223 = vpop.f32.mrb[0].mxu0
      %v1224 = vadd.f32 0.0, %v1223
      %v1225 = vpop.f32.mrb[0].mxu0
      %1226 = vmatprep.mubr.f32.mxu0 %v1138
      %1227 = vmatmul.mubr.f32.gmra.mrb[0].mxu0 %v1106
      %v1228 = vpop.f32.mrb[0].mxu0
      %v1229 = vadd.f32 0.0, %v1228
      %v1230 = vpop.f32.mrb[0].mxu0
      %1231 = vmatprep.mubr.f32.mxu0 %v1139
      %1232 = vmatmul.mubr.f32.gmra.mrb[0].mxu0 %v1107
      %v1233 = vpop.f32.mrb[0].mxu0
      %v1234 = vadd.f32 0.0, %v1233
      %v1235 = vpop.f32.mrb[0].mxu0
      %1236 = vmatprep.mubr.f32.mxu0 %v1140
      %1237 = vmatmul.mubr.f32.gmra.mrb[0].mxu0 %v1108
      %v1238 = vpop.f32.mrb[0].mxu0
      %v1239 = vadd.f32 0.0, %v1238
      %v1240 = vpop.f32.mrb[0].mxu0
      %1241 = vmatprep.mubr.f32.mxu0 %v1141
      %1242 = vmatmul.mubr.f32.gmra.mrb[0].mxu0 %v1109
      %v1243 = vpop.f32.mrb[0].mxu0
      %v1244 = vadd.f32 0.0, %v1243
      %v1245 = vpop.f32.mrb[0].mxu0
      %1246 = vmatprep.mubr.f32.mxu0 %v1142
      %1247 = vmatmul.mubr.f32.gmra.mrb[0].mxu0 %v1110
      %v1248 = vpop.f32.mrb[0].mxu0
      %v1249 = vadd.f32 0.0, %v1248
      %v1250 = vpop.f32.mrb[0].mxu0
      %1251 = vmatprep.mubr.f32.mxu0 %v1143
      %1252 = vmatmul.mubr.f32.gmra.mrb[0].mxu0 %v1111
      %v1253 = vpop.f32.mrb[0].mxu0
      %v1254 = vadd.f32 0.0, %v1253
      %v1255 = vpop.f32.mrb[0].mxu0
      %1256 = vmatprep.mubr.f32.mxu0 %v1144
      %1257 = vmatmul.mubr.f32.gmra.mrb[0].mxu0 %v1112
      %v1258 = vpop.f32.mrb[0].mxu0
      %v1259 = vadd.f32 0.0, %v1258
      %v1260 = vpop.f32.mrb[0].mxu0
      %1261 = vmatprep.mubr.f32.mxu0 %v1145
      %1262 = vmatmul.mubr.f32.gmra.mrb[0].mxu0 %v1113
      %v1263 = vpop.f32.mrb[0].mxu0
      %v1264 = vadd.f32 0.0, %v1263
      %v1265 = vpop.f32.mrb[0].mxu0
      %1266 = vmatprep.mubr.f32.mxu0 %v1146
      %1267 = vmatmul.mubr.f32.gmra.mrb[0].mxu0 %v1114
      %v1268 = vpop.f32.mrb[0].mxu0
      %v1269 = vadd.f32 0.0, %v1268
      %v1270 = vpop.f32.mrb[0].mxu0
      %1271 = vmatprep.mubr.f32.mxu0 %v1147
      %1272 = vmatmul.mubr.f32.gmra.mrb[0].mxu0 %v1115
      %v1273 = vpop.f32.mrb[0].mxu0
      %v1274 = vadd.f32 0.0, %v1273
      %v1275 = vpop.f32.mrb[0].mxu0
      %1276 = vmatprep.mubr.f32.mxu0 %v1148
      %1277 = vmatmul.mubr.f32.gmra.mrb[0].mxu0 %v1116
      %v1278 = vpop.f32.mrb[0].mxu0
      %v1279 = vadd.f32 0.0, %v1278
      %v1280 = vpop.f32.mrb[0].mxu0
      %1281 = vmatprep.mubr.f32.mxu0 %v1149
      %1282 = vmatmul.mubr.f32.gmra.mrb[0].mxu0 %v1117
      %v1283 = vpop.f32.mrb[0].mxu0
      %v1284 = vadd.f32 0.0, %v1283
      %v1285 = vpop.f32.mrb[0].mxu0
      %1286 = vmatprep.mubr.f32.mxu0 %v1150
      %1287 = vmatmul.mubr.f32.gmra.mrb[0].mxu0 %v1118
      %v1288 = vpop.f32.mrb[0].mxu0
      %v1289 = vadd.f32 0.0, %v1288
      %v1290 = vpop.f32.mrb[0].mxu0
      %1291 = vmatprep.mubr.f32.mxu0 %v1151
      %1292 = vmatmul.mubr.f32.gmra.mrb[0].mxu0 %v1119
      %v1293 = vpop.f32.mrb[0].mxu0
      %v1294 = vadd.f32 0.0, %v1293
      %v1295 = vpop.f32.mrb[0].mxu0
      %1296 = vdwg.mxu0
      %v1297 = vmul.f32 %v1219, %v388
      %v1298 = vmul.f32 %v1224, %v389
      %v1299 = vmul.f32 %v1229, %v390
      %v1300 = vmul.f32 %v1234, %v391
      %v1301 = vmul.f32 %v1239, %v392
      %v1302 = vmul.f32 %v1244, %v393
      %v1303 = vmul.f32 %v1249, %v394
      %v1304 = vmul.f32 %v1254, %v395
      %v1305 = vmul.f32 %v1259, %v396
      %v1306 = vmul.f32 %v1264, %v397
      %v1307 = vmul.f32 %v1269, %v398
      %v1308 = vmul.f32 %v1274, %v399
      %v1309 = vmul.f32 %v1279, %v400
      %v1310 = vmul.f32 %v1284, %v401
      %v1311 = vmul.f32 %v1289, %v402
      %v1312 = vmul.f32 %v1294, %v403
      %1313 = vmatprep.subr.mxu0 0.0
      %1314 = vmatpush1.msra.mxu0 %v1297
      %1315 = vmatprep.subr.mxu0 0.0
      %1316 = vmatpush1.msra.mxu0 %v1298
      %1317 = vmatprep.subr.mxu0 0.0
      %1318 = vmatpush1.msra.mxu0 %v1299
      %1319 = vmatprep.subr.mxu0 0.0
      %1320 = vmatpush1.msra.mxu0 %v1300
      %1321 = vmatprep.subr.mxu0 0.0
      %1322 = vmatpush1.msra.mxu0 %v1301
      %1323 = vmatprep.subr.mxu0 0.0
      %1324 = vmatpush1.msra.mxu0 %v1302
      %1325 = vmatprep.subr.mxu0 0.0
      %1326 = vmatpush1.msra.mxu0 %v1303
      %1327 = vmatprep.subr.mxu0 0.0
      %1328 = vmatpush1.msra.mxu0 %v1304
      %1329 = vmatprep.subr.mxu0 0.0
      %1330 = vmatpush1.msra.mxu0 %v1305
      %1331 = vmatprep.subr.mxu0 0.0
      %1332 = vmatpush1.msra.mxu0 %v1306
      %1333 = vmatprep.subr.mxu0 0.0
      %1334 = vmatpush1.msra.mxu0 %v1307
      %1335 = vmatprep.subr.mxu0 0.0
      %1336 = vmatpush1.msra.mxu0 %v1308
      %1337 = vmatprep.subr.mxu0 0.0
      %1338 = vmatpush1.msra.mxu0 %v1309
      %1339 = vmatprep.subr.mxu0 0.0
      %1340 = vmatpush1.msra.mxu0 %v1310
      %1341 = vmatprep.subr.mxu0 0.0
      %1342 = vmatpush1.msra.mxu0 %v1311
      %1343 = vmatprep.subr.mxu0 0.0
      %1344 = vmatpush1.msra.mxu0 %v1312
      %1345 = vmatprep.subr.mxu0 0.0
      %1346 = vmatpush1.msra.mxu0 0.0
      %1347 = vmatprep.subr.mxu0 0.0
      %1348 = vmatpush1.msra.mxu0 0.0
      %1349 = vmatprep.subr.mxu0 0.0
      %1350 = vmatpush1.msra.mxu0 0.0
      %1351 = vmatprep.subr.mxu0 0.0
      %1352 = vmatpush1.msra.mxu0 0.0
      %1353 = vmatprep.subr.mxu0 0.0
      %1354 = vmatpush1.msra.mxu0 0.0
      %1355 = vmatprep.subr.mxu0 0.0
      %1356 = vmatpush1.msra.mxu0 0.0
      %1357 = vmatprep.subr.mxu0 0.0
      %1358 = vmatpush1.msra.mxu0 0.0
      %1359 = vmatprep.subr.mxu0 0.0
      %1360 = vmatpush1.msra.mxu0 0.0
      %1361 = vmatprep.subr.mxu0 0.0
      %1362 = vmatpush1.msra.mxu0 0.0
      %1363 = vmatprep.subr.mxu0 0.0
      %1364 = vmatpush1.msra.mxu0 0.0
      %1365 = vmatprep.subr.mxu0 0.0
      %1366 = vmatpush1.msra.mxu0 0.0
      %1367 = vmatprep.subr.mxu0 0.0
      %1368 = vmatpush1.msra.mxu0 0.0
      %1369 = vmatprep.subr.mxu0 0.0
      %1370 = vmatpush1.msra.mxu0 0.0
      %1371 = vmatprep.subr.mxu0 0.0
      %1372 = vmatpush1.msra.mxu0 0.0
      %1373 = vmatprep.subr.mxu0 0.0
      %1374 = vmatpush1.msra.mxu0 0.0
      %1375 = vmatprep.subr.mxu0 0.0
      %1376 = vmatpush1.msra.mxu0 0.0
      %1377 = vmatprep.mubr.f32.mxu0 0.0
      %1378 = vmatmul.mubr.f32.gmra.mrb[0].mxu0 %v853
      %v1379 = vpop.f32.mrb[0].mxu0
      %v1380 = vadd.f32 0.0, %v1379
      %v1381 = vpop.f32.mrb[0].mxu0
      %1382 = vmatprep.mubr.f32.mxu0 0.0
      %1383 = vmatmul.mubr.f32.gmra.mrb[0].mxu0 %v854
      %v1384 = vpop.f32.mrb[0].mxu0
      %v1385 = vadd.f32 0.0, %v1384
      %v1386 = vpop.f32.mrb[0].mxu0
      %1387 = vmatprep.mubr.f32.mxu0 0.0
      %1388 = vmatmul.mubr.f32.gmra.mrb[0].mxu0 %v855
      %v1389 = vpop.f32.mrb[0].mxu0
      %v1390 = vadd.f32 0.0, %v1389
      %v1391 = vpop.f32.mrb[0].mxu0
      %1392 = vmatprep.mubr.f32.mxu0 0.0
      %1393 = vmatmul.mubr.f32.gmra.mrb[0].mxu0 %v856
      %v1394 = vpop.f32.mrb[0].mxu0
      %v1395 = vadd.f32 0.0, %v1394
      %v1396 = vpop.f32.mrb[0].mxu0
      %1397 = vmatprep.mubr.f32.mxu0 0.0
      %1398 = vmatmul.mubr.f32.gmra.mrb[0].mxu0 %v857
      %v1399 = vpop.f32.mrb[0].mxu0
      %v1400 = vadd.f32 0.0, %v1399
      %v1401 = vpop.f32.mrb[0].mxu0
      %1402 = vmatprep.mubr.f32.mxu0 0.0
      %1403 = vmatmul.mubr.f32.gmra.mrb[0].mxu0 %v858
      %v1404 = vpop.f32.mrb[0].mxu0
      %v1405 = vadd.f32 0.0, %v1404
      %v1406 = vpop.f32.mrb[0].mxu0
      %1407 = vmatprep.mubr.f32.mxu0 0.0
      %1408 = vmatmul.mubr.f32.gmra.mrb[0].mxu0 %v859
      %v1409 = vpop.f32.mrb[0].mxu0
      %v1410 = vadd.f32 0.0, %v1409
      %v1411 = vpop.f32.mrb[0].mxu0
      %1412 = vmatprep.mubr.f32.mxu0 0.0
      %1413 = vmatmul.mubr.f32.gmra.mrb[0].mxu0 %v860
      %v1414 = vpop.f32.mrb[0].mxu0
      %v1415 = vadd.f32 0.0, %v1414
      %v1416 = vpop.f32.mrb[0].mxu0
      %1417 = vmatprep.mubr.f32.mxu0 0.0
      %1418 = vmatmul.mubr.f32.gmra.mrb[0].mxu0 %v861
      %v1419 = vpop.f32.mrb[0].mxu0
      %v1420 = vadd.f32 0.0, %v1419
      %v1421 = vpop.f32.mrb[0].mxu0
      %1422 = vmatprep.mubr.f32.mxu0 0.0
      %1423 = vmatmul.mubr.f32.gmra.mrb[0].mxu0 %v862
      %v1424 = vpop.f32.mrb[0].mxu0
      %v1425 = vadd.f32 0.0, %v1424
      %v1426 = vpop.f32.mrb[0].mxu0
      %1427 = vmatprep.mubr.f32.mxu0 0.0
      %1428 = vmatmul.mubr.f32.gmra.mrb[0].mxu0 %v863
      %v1429 = vpop.f32.mrb[0].mxu0
      %v1430 = vadd.f32 0.0, %v1429
      %v1431 = vpop.f32.mrb[0].mxu0
      %1432 = vmatprep.mubr.f32.mxu0 0.0
      %1433 = vmatmul.mubr.f32.gmra.mrb[0].mxu0 %v864
      %v1434 = vpop.f32.mrb[0].mxu0
      %v1435 = vadd.f32 0.0, %v1434
      %v1436 = vpop.f32.mrb[0].mxu0
      %1437 = vmatprep.mubr.f32.mxu0 0.0
      %1438 = vmatmul.mubr.f32.gmra.mrb[0].mxu0 %v865
      %v1439 = vpop.f32.mrb[0].mxu0
      %v1440 = vadd.f32 0.0, %v1439
      %v1441 = vpop.f32.mrb[0].mxu0
      %1442 = vmatprep.mubr.f32.mxu0 0.0
      %1443 = vmatmul.mubr.f32.gmra.mrb[0].mxu0 %v866
      %v1444 = vpop.f32.mrb[0].mxu0
      %v1445 = vadd.f32 0.0, %v1444
      %v1446 = vpop.f32.mrb[0].mxu0
      %1447 = vmatprep.mubr.f32.mxu0 0.0
      %1448 = vmatmul.mubr.f32.gmra.mrb[0].mxu0 %v867
      %v1449 = vpop.f32.mrb[0].mxu0
      %v1450 = vadd.f32 0.0, %v1449
      %v1451 = vpop.f32.mrb[0].mxu0
      %1452 = vmatprep.mubr.f32.mxu0 0.0
      %1453 = vmatmul.mubr.f32.gmra.mrb[0].mxu0 %v868
      %v1454 = vpop.f32.mrb[0].mxu0
      %v1455 = vadd.f32 0.0, %v1454
      %v1456 = vpop.f32.mrb[0].mxu0
      %1457 = vmatprep.mubr.f32.mxu0 0.0
      %1458 = vmatmul.mubr.f32.gmra.mrb[0].mxu0 %v869
      %v1459 = vpop.f32.mrb[0].mxu0
      %v1460 = vadd.f32 0.0, %v1459
      %v1461 = vpop.f32.mrb[0].mxu0
      %1462 = vmatprep.mubr.f32.mxu0 0.0
      %1463 = vmatmul.mubr.f32.gmra.mrb[0].mxu0 %v870
      %v1464 = vpop.f32.mrb[0].mxu0
      %v1465 = vadd.f32 0.0, %v1464
      %v1466 = vpop.f32.mrb[0].mxu0
      %1467 = vmatprep.mubr.f32.mxu0 0.0
      %1468 = vmatmul.mubr.f32.gmra.mrb[0].mxu0 %v871
      %v1469 = vpop.f32.mrb[0].mxu0
      %v1470 = vadd.f32 0.0, %v1469
      %v1471 = vpop.f32.mrb[0].mxu0
      %1472 = vmatprep.mubr.f32.mxu0 0.0
      %1473 = vmatmul.mubr.f32.gmra.mrb[0].mxu0 %v872
      %v1474 = vpop.f32.mrb[0].mxu0
      %v1475 = vadd.f32 0.0, %v1474
      %v1476 = vpop.f32.mrb[0].mxu0
      %1477 = vmatprep.mubr.f32.mxu0 0.0
      %1478 = vmatmul.mubr.f32.gmra.mrb[0].mxu0 %v873
      %v1479 = vpop.f32.mrb[0].mxu0
      %v1480 = vadd.f32 0.0, %v1479
      %v1481 = vpop.f32.mrb[0].mxu0
      %1482 = vmatprep.mubr.f32.mxu0 0.0
      %1483 = vmatmul.mubr.f32.gmra.mrb[0].mxu0 %v874
      %v1484 = vpop.f32.mrb[0].mxu0
      %v1485 = vadd.f32 0.0, %v1484
      %v1486 = vpop.f32.mrb[0].mxu0
      %1487 = vmatprep.mubr.f32.mxu0 0.0
      %1488 = vmatmul.mubr.f32.gmra.mrb[0].mxu0 %v875
      %v1489 = vpop.f32.mrb[0].mxu0
      %v1490 = vadd.f32 0.0, %v1489
      %v1491 = vpop.f32.mrb[0].mxu0
      %1492 = vmatprep.mubr.f32.mxu0 0.0
      %1493 = vmatmul.mubr.f32.gmra.mrb[0].mxu0 %v876
      %v1494 = vpop.f32.mrb[0].mxu0
      %v1495 = vadd.f32 0.0, %v1494
      %v1496 = vpop.f32.mrb[0].mxu0
      %1497 = vmatprep.mubr.f32.mxu0 0.0
      %1498 = vmatmul.mubr.f32.gmra.mrb[0].mxu0 %v877
      %v1499 = vpop.f32.mrb[0].mxu0
      %v1500 = vadd.f32 0.0, %v1499
      %v1501 = vpop.f32.mrb[0].mxu0
      %1502 = vmatprep.mubr.f32.mxu0 0.0
      %1503 = vmatmul.mubr.f32.gmra.mrb[0].mxu0 %v878
      %v1504 = vpop.f32.mrb[0].mxu0
      %v1505 = vadd.f32 0.0, %v1504
      %v1506 = vpop.f32.mrb[0].mxu0
      %1507 = vmatprep.mubr.f32.mxu0 0.0
      %1508 = vmatmul.mubr.f32.gmra.mrb[0].mxu0 %v879
      %v1509 = vpop.f32.mrb[0].mxu0
      %v1510 = vadd.f32 0.0, %v1509
      %v1511 = vpop.f32.mrb[0].mxu0
      %1512 = vmatprep.mubr.f32.mxu0 0.0
      %1513 = vmatmul.mubr.f32.gmra.mrb[0].mxu0 %v880
      %v1514 = vpop.f32.mrb[0].mxu0
      %v1515 = vadd.f32 0.0, %v1514
      %v1516 = vpop.f32.mrb[0].mxu0
      %1517 = vmatprep.mubr.f32.mxu0 0.0
      %1518 = vmatmul.mubr.f32.gmra.mrb[0].mxu0 %v881
      %v1519 = vpop.f32.mrb[0].mxu0
      %v1520 = vadd.f32 0.0, %v1519
      %v1521 = vpop.f32.mrb[0].mxu0
      %1522 = vmatprep.mubr.f32.mxu0 0.0
      %1523 = vmatmul.mubr.f32.gmra.mrb[0].mxu0 %v882
      %v1524 = vpop.f32.mrb[0].mxu0
      %v1525 = vadd.f32 0.0, %v1524
      %v1526 = vpop.f32.mrb[0].mxu0
      %1527 = vmatprep.mubr.f32.mxu0 0.0
      %1528 = vmatmul.mubr.f32.gmra.mrb[0].mxu0 %v883
      %v1529 = vpop.f32.mrb[0].mxu0
      %v1530 = vadd.f32 0.0, %v1529
      %v1531 = vpop.f32.mrb[0].mxu0
      %1532 = vmatprep.mubr.f32.mxu0 0.0
      %1533 = vmatmul.mubr.f32.gmra.mrb[0].mxu0 %v884
      %v1534 = vpop.f32.mrb[0].mxu0
      %v1535 = vadd.f32 0.0, %v1534
      %v1536 = vpop.f32.mrb[0].mxu0
      %1537 = vdwg.mxu0
      %v1538 = vxor.u32 %v1380, 2147483648
      %v1539 = vxor.u32 %v1385, 2147483648
      %v1540 = vxor.u32 %v1390, 2147483648
      %v1541 = vxor.u32 %v1395, 2147483648
      %v1542 = vxor.u32 %v1400, 2147483648
      %v1543 = vxor.u32 %v1405, 2147483648
      %v1544 = vxor.u32 %v1410, 2147483648
      %v1545 = vxor.u32 %v1415, 2147483648
      %v1546 = vxor.u32 %v1420, 2147483648
      %v1547 = vxor.u32 %v1425, 2147483648
      %v1548 = vxor.u32 %v1430, 2147483648
      %v1549 = vxor.u32 %v1435, 2147483648
      %v1550 = vxor.u32 %v1440, 2147483648
      %v1551 = vxor.u32 %v1445, 2147483648
      %v1552 = vxor.u32 %v1450, 2147483648
      %v1553 = vxor.u32 %v1455, 2147483648
      %v1554 = vxor.u32 %v1460, 2147483648
      %v1555 = vxor.u32 %v1465, 2147483648
      %v1556 = vxor.u32 %v1470, 2147483648
      %v1557 = vxor.u32 %v1475, 2147483648
      %v1558 = vxor.u32 %v1480, 2147483648
      %v1559 = vxor.u32 %v1485, 2147483648
      %v1560 = vxor.u32 %v1490, 2147483648
      %v1561 = vxor.u32 %v1495, 2147483648
      %v1562 = vxor.u32 %v1500, 2147483648
      %v1563 = vxor.u32 %v1505, 2147483648
      %v1564 = vxor.u32 %v1510, 2147483648
      %v1565 = vxor.u32 %v1515, 2147483648
      %v1566 = vxor.u32 %v1520, 2147483648
      %v1567 = vxor.u32 %v1525, 2147483648
      %v1568 = vxor.u32 %v1530, 2147483648
      %v1569 = vxor.u32 %v1535, 2147483648
      %v1570 = vmul.f32 %v1538, 1.442695
      %v1571 = vpow.pop %v1570
      %v1572 = vmul.f32 %v1539, 1.442695
      %v1573 = vpow.pop %v1572
      %v1574 = vmul.f32 %v1540, 1.442695
      %v1575 = vpow.pop %v1574
      %v1576 = vmul.f32 %v1541, 1.442695
      %v1577 = vpow.pop %v1576
      %v1578 = vmul.f32 %v1542, 1.442695
      %v1579 = vpow.pop %v1578
      %v1580 = vmul.f32 %v1543, 1.442695
      %v1581 = vpow.pop %v1580
      %v1582 = vmul.f32 %v1544, 1.442695
      %v1583 = vpow.pop %v1582
      %v1584 = vmul.f32 %v1545, 1.442695
      %v1585 = vpow.pop %v1584
      %v1586 = vmul.f32 %v1546, 1.442695
      %v1587 = vpow.pop %v1586
      %v1588 = vmul.f32 %v1547, 1.442695
      %v1589 = vpow.pop %v1588
      %v1590 = vmul.f32 %v1548, 1.442695
      %v1591 = vpow.pop %v1590
      %v1592 = vmul.f32 %v1549, 1.442695
      %v1593 = vpow.pop %v1592
      %v1594 = vmul.f32 %v1550, 1.442695
      %v1595 = vpow.pop %v1594
      %v1596 = vmul.f32 %v1551, 1.442695
      %v1597 = vpow.pop %v1596
      %v1598 = vmul.f32 %v1552, 1.442695
      %v1599 = vpow.pop %v1598
      %v1600 = vmul.f32 %v1553, 1.442695
      %v1601 = vpow.pop %v1600
      %v1602 = vmul.f32 %v1554, 1.442695
      %v1603 = vpow.pop %v1602
      %v1604 = vmul.f32 %v1555, 1.442695
      %v1605 = vpow.pop %v1604
      %v1606 = vmul.f32 %v1556, 1.442695
      %v1607 = vpow.pop %v1606
      %v1608 = vmul.f32 %v1557, 1.442695
      %v1609 = vpow.pop %v1608
      %v1610 = vmul.f32 %v1558, 1.442695
      %v1611 = vpow.pop %v1610
      %v1612 = vmul.f32 %v1559, 1.442695
      %v1613 = vpow.pop %v1612
      %v1614 = vmul.f32 %v1560, 1.442695
      %v1615 = vpow.pop %v1614
      %v1616 = vmul.f32 %v1561, 1.442695
      %v1617 = vpow.pop %v1616
      %v1618 = vmul.f32 %v1562, 1.442695
      %v1619 = vpow.pop %v1618
      %v1620 = vmul.f32 %v1563, 1.442695
      %v1621 = vpow.pop %v1620
      %v1622 = vmul.f32 %v1564, 1.442695
      %v1623 = vpow.pop %v1622
      %v1624 = vmul.f32 %v1565, 1.442695
      %v1625 = vpow.pop %v1624
      %v1626 = vmul.f32 %v1566, 1.442695
      %v1627 = vpow.pop %v1626
      %v1628 = vmul.f32 %v1567, 1.442695
      %v1629 = vpow.pop %v1628
      %v1630 = vmul.f32 %v1568, 1.442695
      %v1631 = vpow.pop %v1630
      %v1632 = vmul.f32 %v1569, 1.442695
      %v1633 = vpow.pop %v1632
      %v1634 = vadd.f32 %v1571, 1.0
      %v1635 = vadd.f32 %v1573, 1.0
      %v1636 = vadd.f32 %v1575, 1.0
      %v1637 = vadd.f32 %v1577, 1.0
      %v1638 = vadd.f32 %v1579, 1.0
      %v1639 = vadd.f32 %v1581, 1.0
      %v1640 = vadd.f32 %v1583, 1.0
      %v1641 = vadd.f32 %v1585, 1.0
      %v1642 = vadd.f32 %v1587, 1.0
      %v1643 = vadd.f32 %v1589, 1.0
      %v1644 = vadd.f32 %v1591, 1.0
      %v1645 = vadd.f32 %v1593, 1.0
      %v1646 = vadd.f32 %v1595, 1.0
      %v1647 = vadd.f32 %v1597, 1.0
      %v1648 = vadd.f32 %v1599, 1.0
      %v1649 = vadd.f32 %v1601, 1.0
      %v1650 = vadd.f32 %v1603, 1.0
      %v1651 = vadd.f32 %v1605, 1.0
      %v1652 = vadd.f32 %v1607, 1.0
      %v1653 = vadd.f32 %v1609, 1.0
      %v1654 = vadd.f32 %v1611, 1.0
      %v1655 = vadd.f32 %v1613, 1.0
      %v1656 = vadd.f32 %v1615, 1.0
      %v1657 = vadd.f32 %v1617, 1.0
      %v1658 = vadd.f32 %v1619, 1.0
      %v1659 = vadd.f32 %v1621, 1.0
      %v1660 = vadd.f32 %v1623, 1.0
      %v1661 = vadd.f32 %v1625, 1.0
      %v1662 = vadd.f32 %v1627, 1.0
      %v1663 = vadd.f32 %v1629, 1.0
      %v1664 = vadd.f32 %v1631, 1.0
      %v1665 = vadd.f32 %v1633, 1.0
      %v1666 = vrcp.pop %v1634
      %v1667 = vmul.f32 1.0, %v1666
      %v1668 = vrcp.pop %v1635
      %v1669 = vmul.f32 1.0, %v1668
      %v1670 = vrcp.pop %v1636
      %v1671 = vmul.f32 1.0, %v1670
      %v1672 = vrcp.pop %v1637
      %v1673 = vmul.f32 1.0, %v1672
      %v1674 = vrcp.pop %v1638
      %v1675 = vmul.f32 1.0, %v1674
      %v1676 = vrcp.pop %v1639
      %v1677 = vmul.f32 1.0, %v1676
      %v1678 = vrcp.pop %v1640
      %v1679 = vmul.f32 1.0, %v1678
      %v1680 = vrcp.pop %v1641
      %v1681 = vmul.f32 1.0, %v1680
      %v1682 = vrcp.pop %v1642
      %v1683 = vmul.f32 1.0, %v1682
      %v1684 = vrcp.pop %v1643
      %v1685 = vmul.f32 1.0, %v1684
      %v1686 = vrcp.pop %v1644
      %v1687 = vmul.f32 1.0, %v1686
      %v1688 = vrcp.pop %v1645
      %v1689 = vmul.f32 1.0, %v1688
      %v1690 = vrcp.pop %v1646
      %v1691 = vmul.f32 1.0, %v1690
      %v1692 = vrcp.pop %v1647
      %v1693 = vmul.f32 1.0, %v1692
      %v1694 = vrcp.pop %v1648
      %v1695 = vmul.f32 1.0, %v1694
      %v1696 = vrcp.pop %v1649
      %v1697 = vmul.f32 1.0, %v1696
      %v1698 = vrcp.pop %v1650
      %v1699 = vmul.f32 1.0, %v1698
      %v1700 = vrcp.pop %v1651
      %v1701 = vmul.f32 1.0, %v1700
      %v1702 = vrcp.pop %v1652
      %v1703 = vmul.f32 1.0, %v1702
      %v1704 = vrcp.pop %v1653
      %v1705 = vmul.f32 1.0, %v1704
      %v1706 = vrcp.pop %v1654
      %v1707 = vmul.f32 1.0, %v1706
      %v1708 = vrcp.pop %v1655
      %v1709 = vmul.f32 1.0, %v1708
      %v1710 = vrcp.pop %v1656
      %v1711 = vmul.f32 1.0, %v1710
      %v1712 = vrcp.pop %v1657
      %v1713 = vmul.f32 1.0, %v1712
      %v1714 = vrcp.pop %v1658
      %v1715 = vmul.f32 1.0, %v1714
      %v1716 = vrcp.pop %v1659
      %v1717 = vmul.f32 1.0, %v1716
      %v1718 = vrcp.pop %v1660
      %v1719 = vmul.f32 1.0, %v1718
      %v1720 = vrcp.pop %v1661
      %v1721 = vmul.f32 1.0, %v1720
      %v1722 = vrcp.pop %v1662
      %v1723 = vmul.f32 1.0, %v1722
      %v1724 = vrcp.pop %v1663
      %v1725 = vmul.f32 1.0, %v1724
      %v1726 = vrcp.pop %v1664
      %v1727 = vmul.f32 1.0, %v1726
      %v1728 = vrcp.pop %v1665
      %v1729 = vmul.f32 1.0, %v1728
      %v1730 = vmul.f32 %v1380, %v1667
      %v1731 = vmul.f32 %v1385, %v1669
      %v1732 = vmul.f32 %v1390, %v1671
      %v1733 = vmul.f32 %v1395, %v1673
      %v1734 = vmul.f32 %v1400, %v1675
      %v1735 = vmul.f32 %v1405, %v1677
      %v1736 = vmul.f32 %v1410, %v1679
      %v1737 = vmul.f32 %v1415, %v1681
      %v1738 = vmul.f32 %v1420, %v1683
      %v1739 = vmul.f32 %v1425, %v1685
      %v1740 = vmul.f32 %v1430, %v1687
      %v1741 = vmul.f32 %v1435, %v1689
      %v1742 = vmul.f32 %v1440, %v1691
      %v1743 = vmul.f32 %v1445, %v1693
      %v1744 = vmul.f32 %v1450, %v1695
      %v1745 = vmul.f32 %v1455, %v1697
      %v1746 = vmul.f32 %v1460, %v1699
      %v1747 = vmul.f32 %v1465, %v1701
      %v1748 = vmul.f32 %v1470, %v1703
      %v1749 = vmul.f32 %v1475, %v1705
      %v1750 = vmul.f32 %v1480, %v1707
      %v1751 = vmul.f32 %v1485, %v1709
      %v1752 = vmul.f32 %v1490, %v1711
      %v1753 = vmul.f32 %v1495, %v1713
      %v1754 = vmul.f32 %v1500, %v1715
      %v1755 = vmul.f32 %v1505, %v1717
      %v1756 = vmul.f32 %v1510, %v1719
      %v1757 = vmul.f32 %v1515, %v1721
      %v1758 = vmul.f32 %v1520, %v1723
      %v1759 = vmul.f32 %v1525, %v1725
      %v1760 = vmul.f32 %v1530, %v1727
      %v1761 = vmul.f32 %v1535, %v1729
      %v1762 = vld [vmem:[%s4] sm:$0xff]
      %v1763 = vld [vmem:[%s4 + $0x8] sm:$0xff]
      %v1764 = vld [vmem:[%s4 + $0x10] sm:$0xff]
      %v1765 = vld [vmem:[%s4 + $0x18] sm:$0xff]
      %v1766 = vld [vmem:[%s4 + $0x20] sm:$0xff]
      %v1767 = vld [vmem:[%s4 + $0x28] sm:$0xff]
      %v1768 = vld [vmem:[%s4 + $0x30] sm:$0xff]
      %v1769 = vld [vmem:[%s4 + $0x38] sm:$0xff]
      %v1770 = vld [vmem:[%s4 + $0x40] sm:$0xff]
      %v1771 = vld [vmem:[%s4 + $0x48] sm:$0xff]
      %v1772 = vld [vmem:[%s4 + $0x50] sm:$0xff]
      %v1773 = vld [vmem:[%s4 + $0x58] sm:$0xff]
      %v1774 = vld [vmem:[%s4 + $0x60] sm:$0xff]
      %v1775 = vld [vmem:[%s4 + $0x68] sm:$0xff]
      %v1776 = vld [vmem:[%s4 + $0x70] sm:$0xff]
      %v1777 = vld [vmem:[%s4 + $0x78] sm:$0xff]
      %1778 = vmatprep.subr.mxu0 0.0
      %1779 = vmatpush1.msra.mxu0 %v1762
      %1780 = vmatprep.subr.mxu0 0.0
      %1781 = vmatpush1.msra.mxu0 %v1763
      %1782 = vmatprep.subr.mxu0 0.0
      %1783 = vmatpush1.msra.mxu0 %v1764
      %1784 = vmatprep.subr.mxu0 0.0
      %1785 = vmatpush1.msra.mxu0 %v1765
      %1786 = vmatprep.subr.mxu0 0.0
      %1787 = vmatpush1.msra.mxu0 %v1766
      %1788 = vmatprep.subr.mxu0 0.0
      %1789 = vmatpush1.msra.mxu0 %v1767
      %1790 = vmatprep.subr.mxu0 0.0
      %1791 = vmatpush1.msra.mxu0 %v1768
      %1792 = vmatprep.subr.mxu0 0.0
      %1793 = vmatpush1.msra.mxu0 %v1769
      %1794 = vmatprep.subr.mxu0 0.0
      %1795 = vmatpush1.msra.mxu0 %v1770
      %1796 = vmatprep.subr.mxu0 0.0
      %1797 = vmatpush1.msra.mxu0 %v1771
      %1798 = vmatprep.subr.mxu0 0.0
      %1799 = vmatpush1.msra.mxu0 %v1772
      %1800 = vmatprep.subr.mxu0 0.0
      %1801 = vmatpush1.msra.mxu0 %v1773
      %1802 = vmatprep.subr.mxu0 0.0
      %1803 = vmatpush1.msra.mxu0 %v1774
      %1804 = vmatprep.subr.mxu0 0.0
      %1805 = vmatpush1.msra.mxu0 %v1775
      %1806 = vmatprep.subr.mxu0 0.0
      %1807 = vmatpush1.msra.mxu0 %v1776
      %1808 = vmatprep.subr.mxu0 0.0
      %1809 = vmatpush1.msra.mxu0 %v1777
      %1810 = vmatprep.subr.mxu0 0.0
      %1811 = vmatpush1.msra.mxu0 0.0
      %1812 = vmatprep.subr.mxu0 0.0
      %1813 = vmatpush1.msra.mxu0 0.0
      %1814 = vmatprep.subr.mxu0 0.0
      %1815 = vmatpush1.msra.mxu0 0.0
      %1816 = vmatprep.subr.mxu0 0.0
      %1817 = vmatpush1.msra.mxu0 0.0
      %1818 = vmatprep.subr.mxu0 0.0
      %1819 = vmatpush1.msra.mxu0 0.0
      %1820 = vmatprep.subr.mxu0 0.0
      %1821 = vmatpush1.msra.mxu0 0.0
      %1822 = vmatprep.subr.mxu0 0.0
      %1823 = vmatpush1.msra.mxu0 0.0
      %1824 = vmatprep.subr.mxu0 0.0
      %1825 = vmatpush1.msra.mxu0 0.0
      %1826 = vmatprep.subr.mxu0 0.0
      %1827 = vmatpush1.msra.mxu0 0.0
      %1828 = vmatprep.subr.mxu0 0.0
      %1829 = vmatpush1.msra.mxu0 0.0
      %1830 = vmatprep.subr.mxu0 0.0
      %1831 = vmatpush1.msra.mxu0 0.0
      %1832 = vmatprep.subr.mxu0 0.0
      %1833 = vmatpush1.msra.mxu0 0.0
      %1834 = vmatprep.subr.mxu0 0.0
      %1835 = vmatpush1.msra.mxu0 0.0
      %1836 = vmatprep.subr.mxu0 0.0
      %1837 = vmatpush1.msra.mxu0 0.0
      %1838 = vmatprep.subr.mxu0 0.0
      %1839 = vmatpush1.msra.mxu0 0.0
      %1840 = vmatprep.subr.mxu0 0.0
      %1841 = vmatpush1.msra.mxu0 0.0
      %1842 = vmatprep.mubr.f32.mxu0 0.0
      %1843 = vmatmul.mubr.f32.gmra.mrb[0].mxu0 %v1730
      %v1844 = vpop.f32.mrb[0].mxu0
      %v1845 = vadd.f32 0.0, %v1844
      %v1846 = vpop.f32.mrb[0].mxu0
      %1847 = vmatprep.mubr.f32.mxu0 0.0
      %1848 = vmatmul.mubr.f32.gmra.mrb[0].mxu0 %v1731
      %v1849 = vpop.f32.mrb[0].mxu0
      %v1850 = vadd.f32 0.0, %v1849
      %v1851 = vpop.f32.mrb[0].mxu0
      %1852 = vmatprep.mubr.f32.mxu0 0.0
      %1853 = vmatmul.mubr.f32.gmra.mrb[0].mxu0 %v1732
      %v1854 = vpop.f32.mrb[0].mxu0
      %v1855 = vadd.f32 0.0, %v1854
      %v1856 = vpop.f32.mrb[0].mxu0
      %1857 = vmatprep.mubr.f32.mxu0 0.0
      %1858 = vmatmul.mubr.f32.gmra.mrb[0].mxu0 %v1733
      %v1859 = vpop.f32.mrb[0].mxu0
      %v1860 = vadd.f32 0.0, %v1859
      %v1861 = vpop.f32.mrb[0].mxu0
      %1862 = vmatprep.mubr.f32.mxu0 0.0
      %1863 = vmatmul.mubr.f32.gmra.mrb[0].mxu0 %v1734
      %v1864 = vpop.f32.mrb[0].mxu0
      %v1865 = vadd.f32 0.0, %v1864
      %v1866 = vpop.f32.mrb[0].mxu0
      %1867 = vmatprep.mubr.f32.mxu0 0.0
      %1868 = vmatmul.mubr.f32.gmra.mrb[0].mxu0 %v1735
      %v1869 = vpop.f32.mrb[0].mxu0
      %v1870 = vadd.f32 0.0, %v1869
      %v1871 = vpop.f32.mrb[0].mxu0
      %1872 = vmatprep.mubr.f32.mxu0 0.0
      %1873 = vmatmul.mubr.f32.gmra.mrb[0].mxu0 %v1736
      %v1874 = vpop.f32.mrb[0].mxu0
      %v1875 = vadd.f32 0.0, %v1874
      %v1876 = vpop.f32.mrb[0].mxu0
      %1877 = vmatprep.mubr.f32.mxu0 0.0
      %1878 = vmatmul.mubr.f32.gmra.mrb[0].mxu0 %v1737
      %v1879 = vpop.f32.mrb[0].mxu0
      %v1880 = vadd.f32 0.0, %v1879
      %v1881 = vpop.f32.mrb[0].mxu0
      %1882 = vmatprep.mubr.f32.mxu0 0.0
      %1883 = vmatmul.mubr.f32.gmra.mrb[0].mxu0 %v1738
      %v1884 = vpop.f32.mrb[0].mxu0
      %v1885 = vadd.f32 0.0, %v1884
      %v1886 = vpop.f32.mrb[0].mxu0
      %1887 = vmatprep.mubr.f32.mxu0 0.0
      %1888 = vmatmul.mubr.f32.gmra.mrb[0].mxu0 %v1739
      %v1889 = vpop.f32.mrb[0].mxu0
      %v1890 = vadd.f32 0.0, %v1889
      %v1891 = vpop.f32.mrb[0].mxu0
      %1892 = vmatprep.mubr.f32.mxu0 0.0
      %1893 = vmatmul.mubr.f32.gmra.mrb[0].mxu0 %v1740
      %v1894 = vpop.f32.mrb[0].mxu0
      %v1895 = vadd.f32 0.0, %v1894
      %v1896 = vpop.f32.mrb[0].mxu0
      %1897 = vmatprep.mubr.f32.mxu0 0.0
      %1898 = vmatmul.mubr.f32.gmra.mrb[0].mxu0 %v1741
      %v1899 = vpop.f32.mrb[0].mxu0
      %v1900 = vadd.f32 0.0, %v1899
      %v1901 = vpop.f32.mrb[0].mxu0
      %1902 = vmatprep.mubr.f32.mxu0 0.0
      %1903 = vmatmul.mubr.f32.gmra.mrb[0].mxu0 %v1742
      %v1904 = vpop.f32.mrb[0].mxu0
      %v1905 = vadd.f32 0.0, %v1904
      %v1906 = vpop.f32.mrb[0].mxu0
      %1907 = vmatprep.mubr.f32.mxu0 0.0
      %1908 = vmatmul.mubr.f32.gmra.mrb[0].mxu0 %v1743
      %v1909 = vpop.f32.mrb[0].mxu0
      %v1910 = vadd.f32 0.0, %v1909
      %v1911 = vpop.f32.mrb[0].mxu0
      %1912 = vmatprep.mubr.f32.mxu0 0.0
      %1913 = vmatmul.mubr.f32.gmra.mrb[0].mxu0 %v1744
      %v1914 = vpop.f32.mrb[0].mxu0
      %v1915 = vadd.f32 0.0, %v1914
      %v1916 = vpop.f32.mrb[0].mxu0
      %1917 = vmatprep.mubr.f32.mxu0 0.0
      %1918 = vmatmul.mubr.f32.gmra.mrb[0].mxu0 %v1745
      %v1919 = vpop.f32.mrb[0].mxu0
      %v1920 = vadd.f32 0.0, %v1919
      %v1921 = vpop.f32.mrb[0].mxu0
      %1922 = vmatprep.mubr.f32.mxu0 0.0
      %1923 = vmatmul.mubr.f32.gmra.mrb[0].mxu0 %v1746
      %v1924 = vpop.f32.mrb[0].mxu0
      %v1925 = vadd.f32 0.0, %v1924
      %v1926 = vpop.f32.mrb[0].mxu0
      %1927 = vmatprep.mubr.f32.mxu0 0.0
      %1928 = vmatmul.mubr.f32.gmra.mrb[0].mxu0 %v1747
      %v1929 = vpop.f32.mrb[0].mxu0
      %v1930 = vadd.f32 0.0, %v1929
      %v1931 = vpop.f32.mrb[0].mxu0
      %1932 = vmatprep.mubr.f32.mxu0 0.0
      %1933 = vmatmul.mubr.f32.gmra.mrb[0].mxu0 %v1748
      %v1934 = vpop.f32.mrb[0].mxu0
      %v1935 = vadd.f32 0.0, %v1934
      %v1936 = vpop.f32.mrb[0].mxu0
      %1937 = vmatprep.mubr.f32.mxu0 0.0
      %1938 = vmatmul.mubr.f32.gmra.mrb[0].mxu0 %v1749
      %v1939 = vpop.f32.mrb[0].mxu0
      %v1940 = vadd.f32 0.0, %v1939
      %v1941 = vpop.f32.mrb[0].mxu0
      %1942 = vmatprep.mubr.f32.mxu0 0.0
      %1943 = vmatmul.mubr.f32.gmra.mrb[0].mxu0 %v1750
      %v1944 = vpop.f32.mrb[0].mxu0
      %v1945 = vadd.f32 0.0, %v1944
      %v1946 = vpop.f32.mrb[0].mxu0
      %1947 = vmatprep.mubr.f32.mxu0 0.0
      %1948 = vmatmul.mubr.f32.gmra.mrb[0].mxu0 %v1751
      %v1949 = vpop.f32.mrb[0].mxu0
      %v1950 = vadd.f32 0.0, %v1949
      %v1951 = vpop.f32.mrb[0].mxu0
      %1952 = vmatprep.mubr.f32.mxu0 0.0
      %1953 = vmatmul.mubr.f32.gmra.mrb[0].mxu0 %v1752
      %v1954 = vpop.f32.mrb[0].mxu0
      %v1955 = vadd.f32 0.0, %v1954
      %v1956 = vpop.f32.mrb[0].mxu0
      %1957 = vmatprep.mubr.f32.mxu0 0.0
      %1958 = vmatmul.mubr.f32.gmra.mrb[0].mxu0 %v1753
      %v1959 = vpop.f32.mrb[0].mxu0
      %v1960 = vadd.f32 0.0, %v1959
      %v1961 = vpop.f32.mrb[0].mxu0
      %1962 = vmatprep.mubr.f32.mxu0 0.0
      %1963 = vmatmul.mubr.f32.gmra.mrb[0].mxu0 %v1754
      %v1964 = vpop.f32.mrb[0].mxu0
      %v1965 = vadd.f32 0.0, %v1964
      %v1966 = vpop.f32.mrb[0].mxu0
      %1967 = vmatprep.mubr.f32.mxu0 0.0
      %1968 = vmatmul.mubr.f32.gmra.mrb[0].mxu0 %v1755
      %v1969 = vpop.f32.mrb[0].mxu0
      %v1970 = vadd.f32 0.0, %v1969
      %v1971 = vpop.f32.mrb[0].mxu0
      %1972 = vmatprep.mubr.f32.mxu0 0.0
      %1973 = vmatmul.mubr.f32.gmra.mrb[0].mxu0 %v1756
      %v1974 = vpop.f32.mrb[0].mxu0
      %v1975 = vadd.f32 0.0, %v1974
      %v1976 = vpop.f32.mrb[0].mxu0
      %1977 = vmatprep.mubr.f32.mxu0 0.0
      %1978 = vmatmul.mubr.f32.gmra.mrb[0].mxu0 %v1757
      %v1979 = vpop.f32.mrb[0].mxu0
      %v1980 = vadd.f32 0.0, %v1979
      %v1981 = vpop.f32.mrb[0].mxu0
      %1982 = vmatprep.mubr.f32.mxu0 0.0
      %1983 = vmatmul.mubr.f32.gmra.mrb[0].mxu0 %v1758
      %v1984 = vpop.f32.mrb[0].mxu0
      %v1985 = vadd.f32 0.0, %v1984
      %v1986 = vpop.f32.mrb[0].mxu0
      %1987 = vmatprep.mubr.f32.mxu0 0.0
      %1988 = vmatmul.mubr.f32.gmra.mrb[0].mxu0 %v1759
      %v1989 = vpop.f32.mrb[0].mxu0
      %v1990 = vadd.f32 0.0, %v1989
      %v1991 = vpop.f32.mrb[0].mxu0
      %1992 = vmatprep.mubr.f32.mxu0 0.0
      %1993 = vmatmul.mubr.f32.gmra.mrb[0].mxu0 %v1760
      %v1994 = vpop.f32.mrb[0].mxu0
      %v1995 = vadd.f32 0.0, %v1994
      %v1996 = vpop.f32.mrb[0].mxu0
      %1997 = vmatprep.mubr.f32.mxu0 0.0
      %1998 = vmatmul.mubr.f32.gmra.mrb[0].mxu0 %v1761
      %v1999 = vpop.f32.mrb[0].mxu0
      %v2000 = vadd.f32 0.0, %v1999
      %v2001 = vpop.f32.mrb[0].mxu0
      %2002 = vdwg.mxu0
      %vm2003 = vcmask 261120
      %v2004 = vsel %vm2003, %v1845, 0.0
      %2005 = vadd.xlane.f32.xlu0 %v2004
      %v2006 = vpop.xlane.xlu0 %2005
      %v2007 = vsel %vm2003, %v1850, 0.0
      %2008 = vadd.xlane.f32.xlu0 %v2007
      %v2009 = vpop.xlane.xlu0 %2008
      %v2010 = vsel %vm2003, %v1855, 0.0
      %2011 = vadd.xlane.f32.xlu0 %v2010
      %v2012 = vpop.xlane.xlu0 %2011
      %v2013 = vsel %vm2003, %v1860, 0.0
      %2014 = vadd.xlane.f32.xlu0 %v2013
      %v2015 = vpop.xlane.xlu0 %2014
      %v2016 = vsel %vm2003, %v1865, 0.0
      %2017 = vadd.xlane.f32.xlu0 %v2016
      %v2018 = vpop.xlane.xlu0 %2017
      %v2019 = vsel %vm2003, %v1870, 0.0
      %2020 = vadd.xlane.f32.xlu0 %v2019
      %v2021 = vpop.xlane.xlu0 %2020
      %v2022 = vsel %vm2003, %v1875, 0.0
      %2023 = vadd.xlane.f32.xlu0 %v2022
      %v2024 = vpop.xlane.xlu0 %2023
      %v2025 = vsel %vm2003, %v1880, 0.0
      %2026 = vadd.xlane.f32.xlu0 %v2025
      %v2027 = vpop.xlane.xlu0 %2026
      %v2028 = vsel %vm2003, %v1885, 0.0
      %2029 = vadd.xlane.f32.xlu0 %v2028
      %v2030 = vpop.xlane.xlu0 %2029
      %v2031 = vsel %vm2003, %v1890, 0.0
      %2032 = vadd.xlane.f32.xlu0 %v2031
      %v2033 = vpop.xlane.xlu0 %2032
      %v2034 = vsel %vm2003, %v1895, 0.0
      %2035 = vadd.xlane.f32.xlu0 %v2034
      %v2036 = vpop.xlane.xlu0 %2035
      %v2037 = vsel %vm2003, %v1900, 0.0
      %2038 = vadd.xlane.f32.xlu0 %v2037
      %v2039 = vpop.xlane.xlu0 %2038
      %v2040 = vsel %vm2003, %v1905, 0.0
      %2041 = vadd.xlane.f32.xlu0 %v2040
      %v2042 = vpop.xlane.xlu0 %2041
      %v2043 = vsel %vm2003, %v1910, 0.0
      %2044 = vadd.xlane.f32.xlu0 %v2043
      %v2045 = vpop.xlane.xlu0 %2044
      %v2046 = vsel %vm2003, %v1915, 0.0
      %2047 = vadd.xlane.f32.xlu0 %v2046
      %v2048 = vpop.xlane.xlu0 %2047
      %v2049 = vsel %vm2003, %v1920, 0.0
      %2050 = vadd.xlane.f32.xlu0 %v2049
      %v2051 = vpop.xlane.xlu0 %2050
      %v2052 = vsel %vm2003, %v1925, 0.0
      %2053 = vadd.xlane.f32.xlu0 %v2052
      %v2054 = vpop.xlane.xlu0 %2053
      %v2055 = vsel %vm2003, %v1930, 0.0
      %2056 = vadd.xlane.f32.xlu0 %v2055
      %v2057 = vpop.xlane.xlu0 %2056
      %v2058 = vsel %vm2003, %v1935, 0.0
      %2059 = vadd.xlane.f32.xlu0 %v2058
      %v2060 = vpop.xlane.xlu0 %2059
      %v2061 = vsel %vm2003, %v1940, 0.0
      %2062 = vadd.xlane.f32.xlu0 %v2061
      %v2063 = vpop.xlane.xlu0 %2062
      %v2064 = vsel %vm2003, %v1945, 0.0
      %2065 = vadd.xlane.f32.xlu0 %v2064
      %v2066 = vpop.xlane.xlu0 %2065
      %v2067 = vsel %vm2003, %v1950, 0.0
      %2068 = vadd.xlane.f32.xlu0 %v2067
      %v2069 = vpop.xlane.xlu0 %2068
      %v2070 = vsel %vm2003, %v1955, 0.0
      %2071 = vadd.xlane.f32.xlu0 %v2070
      %v2072 = vpop.xlane.xlu0 %2071
      %v2073 = vsel %vm2003, %v1960, 0.0
      %2074 = vadd.xlane.f32.xlu0 %v2073
      %v2075 = vpop.xlane.xlu0 %2074
      %v2076 = vsel %vm2003, %v1965, 0.0
      %2077 = vadd.xlane.f32.xlu0 %v2076
      %v2078 = vpop.xlane.xlu0 %2077
      %v2079 = vsel %vm2003, %v1970, 0.0
      %2080 = vadd.xlane.f32.xlu0 %v2079
      %v2081 = vpop.xlane.xlu0 %2080
      %v2082 = vsel %vm2003, %v1975, 0.0
      %2083 = vadd.xlane.f32.xlu0 %v2082
      %v2084 = vpop.xlane.xlu0 %2083
      %v2085 = vsel %vm2003, %v1980, 0.0
      %2086 = vadd.xlane.f32.xlu0 %v2085
      %v2087 = vpop.xlane.xlu0 %2086
      %v2088 = vsel %vm2003, %v1985, 0.0
      %2089 = vadd.xlane.f32.xlu0 %v2088
      %v2090 = vpop.xlane.xlu0 %2089
      %v2091 = vsel %vm2003, %v1990, 0.0
      %2092 = vadd.xlane.f32.xlu0 %v2091
      %v2093 = vpop.xlane.xlu0 %2092
      %v2094 = vsel %vm2003, %v1995, 0.0
      %2095 = vadd.xlane.f32.xlu0 %v2094
      %v2096 = vpop.xlane.xlu0 %2095
      %v2097 = vsel %vm2003, %v2000, 0.0
      %2098 = vadd.xlane.f32.xlu0 %v2097
      %v2099 = vpop.xlane.xlu0 %2098
      %v2100 = vrcp.pop 32.0
      %v2101 = vmul.f32 %v2006, %v2100
      %v2102 = vmul.f32 %v2009, %v2100
      %v2103 = vmul.f32 %v2012, %v2100
      %v2104 = vmul.f32 %v2015, %v2100
      %v2105 = vmul.f32 %v2018, %v2100
      %v2106 = vmul.f32 %v2021, %v2100
      %v2107 = vmul.f32 %v2024, %v2100
      %v2108 = vmul.f32 %v2027, %v2100
      %v2109 = vmul.f32 %v2030, %v2100
      %v2110 = vmul.f32 %v2033, %v2100
      %v2111 = vmul.f32 %v2036, %v2100
      %v2112 = vmul.f32 %v2039, %v2100
      %v2113 = vmul.f32 %v2042, %v2100
      %v2114 = vmul.f32 %v2045, %v2100
      %v2115 = vmul.f32 %v2048, %v2100
      %v2116 = vmul.f32 %v2051, %v2100
      %v2117 = vmul.f32 %v2054, %v2100
      %v2118 = vmul.f32 %v2057, %v2100
      %v2119 = vmul.f32 %v2060, %v2100
      %v2120 = vmul.f32 %v2063, %v2100
      %v2121 = vmul.f32 %v2066, %v2100
      %v2122 = vmul.f32 %v2069, %v2100
      %v2123 = vmul.f32 %v2072, %v2100
      %v2124 = vmul.f32 %v2075, %v2100
      %v2125 = vmul.f32 %v2078, %v2100
      %v2126 = vmul.f32 %v2081, %v2100
      %v2127 = vmul.f32 %v2084, %v2100
      %v2128 = vmul.f32 %v2087, %v2100
      %v2129 = vmul.f32 %v2090, %v2100
      %v2130 = vmul.f32 %v2093, %v2100
      %v2131 = vmul.f32 %v2096, %v2100
      %v2132 = vmul.f32 %v2099, %v2100
      %v2133 = vsub.f32 %v1845, %v2101
      %v2134 = vsub.f32 %v1850, %v2102
      %v2135 = vsub.f32 %v1855, %v2103
      %v2136 = vsub.f32 %v1860, %v2104
      %v2137 = vsub.f32 %v1865, %v2105
      %v2138 = vsub.f32 %v1870, %v2106
      %v2139 = vsub.f32 %v1875, %v2107
      %v2140 = vsub.f32 %v1880, %v2108
      %v2141 = vsub.f32 %v1885, %v2109
      %v2142 = vsub.f32 %v1890, %v2110
      %v2143 = vsub.f32 %v1895, %v2111
      %v2144 = vsub.f32 %v1900, %v2112
      %v2145 = vsub.f32 %v1905, %v2113
      %v2146 = vsub.f32 %v1910, %v2114
      %v2147 = vsub.f32 %v1915, %v2115
      %v2148 = vsub.f32 %v1920, %v2116
      %v2149 = vsub.f32 %v1925, %v2117
      %v2150 = vsub.f32 %v1930, %v2118
      %v2151 = vsub.f32 %v1935, %v2119
      %v2152 = vsub.f32 %v1940, %v2120
      %v2153 = vsub.f32 %v1945, %v2121
      %v2154 = vsub.f32 %v1950, %v2122
      %v2155 = vsub.f32 %v1955, %v2123
      %v2156 = vsub.f32 %v1960, %v2124
      %v2157 = vsub.f32 %v1965, %v2125
      %v2158 = vsub.f32 %v1970, %v2126
      %v2159 = vsub.f32 %v1975, %v2127
      %v2160 = vsub.f32 %v1980, %v2128
      %v2161 = vsub.f32 %v1985, %v2129
      %v2162 = vsub.f32 %v1990, %v2130
      %v2163 = vsub.f32 %v1995, %v2131
      %v2164 = vsub.f32 %v2000, %v2132
      %v2165 = vmul.f32 %v2133, %v2133
      %v2166 = vmul.f32 %v2134, %v2134
      %v2167 = vmul.f32 %v2135, %v2135
      %v2168 = vmul.f32 %v2136, %v2136
      %v2169 = vmul.f32 %v2137, %v2137
      %v2170 = vmul.f32 %v2138, %v2138
      %v2171 = vmul.f32 %v2139, %v2139
      %v2172 = vmul.f32 %v2140, %v2140
      %v2173 = vmul.f32 %v2141, %v2141
      %v2174 = vmul.f32 %v2142, %v2142
      %v2175 = vmul.f32 %v2143, %v2143
      %v2176 = vmul.f32 %v2144, %v2144
      %v2177 = vmul.f32 %v2145, %v2145
      %v2178 = vmul.f32 %v2146, %v2146
      %v2179 = vmul.f32 %v2147, %v2147
      %v2180 = vmul.f32 %v2148, %v2148
      %v2181 = vmul.f32 %v2149, %v2149
      %v2182 = vmul.f32 %v2150, %v2150
      %v2183 = vmul.f32 %v2151, %v2151
      %v2184 = vmul.f32 %v2152, %v2152
      %v2185 = vmul.f32 %v2153, %v2153
      %v2186 = vmul.f32 %v2154, %v2154
      %v2187 = vmul.f32 %v2155, %v2155
      %v2188 = vmul.f32 %v2156, %v2156
      %v2189 = vmul.f32 %v2157, %v2157
      %v2190 = vmul.f32 %v2158, %v2158
      %v2191 = vmul.f32 %v2159, %v2159
      %v2192 = vmul.f32 %v2160, %v2160
      %v2193 = vmul.f32 %v2161, %v2161
      %v2194 = vmul.f32 %v2162, %v2162
      %v2195 = vmul.f32 %v2163, %v2163
      %v2196 = vmul.f32 %v2164, %v2164
      %v2197 = vsel %vm2003, %v2165, 0.0
      %2198 = vadd.xlane.f32.xlu0 %v2197
      %v2199 = vpop.xlane.xlu0 %2198
      %v2200 = vsel %vm2003, %v2166, 0.0
      %2201 = vadd.xlane.f32.xlu0 %v2200
      %v2202 = vpop.xlane.xlu0 %2201
      %v2203 = vsel %vm2003, %v2167, 0.0
      %2204 = vadd.xlane.f32.xlu0 %v2203
      %v2205 = vpop.xlane.xlu0 %2204
      %v2206 = vsel %vm2003, %v2168, 0.0
      %2207 = vadd.xlane.f32.xlu0 %v2206
      %v2208 = vpop.xlane.xlu0 %2207
      %v2209 = vsel %vm2003, %v2169, 0.0
      %2210 = vadd.xlane.f32.xlu0 %v2209
      %v2211 = vpop.xlane.xlu0 %2210
      %v2212 = vsel %vm2003, %v2170, 0.0
      %2213 = vadd.xlane.f32.xlu0 %v2212
      %v2214 = vpop.xlane.xlu0 %2213
      %v2215 = vsel %vm2003, %v2171, 0.0
      %2216 = vadd.xlane.f32.xlu0 %v2215
      %v2217 = vpop.xlane.xlu0 %2216
      %v2218 = vsel %vm2003, %v2172, 0.0
      %2219 = vadd.xlane.f32.xlu0 %v2218
      %v2220 = vpop.xlane.xlu0 %2219
      %v2221 = vsel %vm2003, %v2173, 0.0
      %2222 = vadd.xlane.f32.xlu0 %v2221
      %v2223 = vpop.xlane.xlu0 %2222
      %v2224 = vsel %vm2003, %v2174, 0.0
      %2225 = vadd.xlane.f32.xlu0 %v2224
      %v2226 = vpop.xlane.xlu0 %2225
      %v2227 = vsel %vm2003, %v2175, 0.0
      %2228 = vadd.xlane.f32.xlu0 %v2227
      %v2229 = vpop.xlane.xlu0 %2228
      %v2230 = vsel %vm2003, %v2176, 0.0
      %2231 = vadd.xlane.f32.xlu0 %v2230
      %v2232 = vpop.xlane.xlu0 %2231
      %v2233 = vsel %vm2003, %v2177, 0.0
      %2234 = vadd.xlane.f32.xlu0 %v2233
      %v2235 = vpop.xlane.xlu0 %2234
      %v2236 = vsel %vm2003, %v2178, 0.0
      %2237 = vadd.xlane.f32.xlu0 %v2236
      %v2238 = vpop.xlane.xlu0 %2237
      %v2239 = vsel %vm2003, %v2179, 0.0
      %2240 = vadd.xlane.f32.xlu0 %v2239
      %v2241 = vpop.xlane.xlu0 %2240
      %v2242 = vsel %vm2003, %v2180, 0.0
      %2243 = vadd.xlane.f32.xlu0 %v2242
      %v2244 = vpop.xlane.xlu0 %2243
      %v2245 = vsel %vm2003, %v2181, 0.0
      %2246 = vadd.xlane.f32.xlu0 %v2245
      %v2247 = vpop.xlane.xlu0 %2246
      %v2248 = vsel %vm2003, %v2182, 0.0
      %2249 = vadd.xlane.f32.xlu0 %v2248
      %v2250 = vpop.xlane.xlu0 %2249
      %v2251 = vsel %vm2003, %v2183, 0.0
      %2252 = vadd.xlane.f32.xlu0 %v2251
      %v2253 = vpop.xlane.xlu0 %2252
      %v2254 = vsel %vm2003, %v2184, 0.0
      %2255 = vadd.xlane.f32.xlu0 %v2254
      %v2256 = vpop.xlane.xlu0 %2255
      %v2257 = vsel %vm2003, %v2185, 0.0
      %2258 = vadd.xlane.f32.xlu0 %v2257
      %v2259 = vpop.xlane.xlu0 %2258
      %v2260 = vsel %vm2003, %v2186, 0.0
      %2261 = vadd.xlane.f32.xlu0 %v2260
      %v2262 = vpop.xlane.xlu0 %2261
      %v2263 = vsel %vm2003, %v2187, 0.0
      %2264 = vadd.xlane.f32.xlu0 %v2263
      %v2265 = vpop.xlane.xlu0 %2264
      %v2266 = vsel %vm2003, %v2188, 0.0
      %2267 = vadd.xlane.f32.xlu0 %v2266
      %v2268 = vpop.xlane.xlu0 %2267
      %v2269 = vsel %vm2003, %v2189, 0.0
      %2270 = vadd.xlane.f32.xlu0 %v2269
      %v2271 = vpop.xlane.xlu0 %2270
      %v2272 = vsel %vm2003, %v2190, 0.0
      %2273 = vadd.xlane.f32.xlu0 %v2272
      %v2274 = vpop.xlane.xlu0 %2273
      %v2275 = vsel %vm2003, %v2191, 0.0
      %2276 = vadd.xlane.f32.xlu0 %v2275
      %v2277 = vpop.xlane.xlu0 %2276
      %v2278 = vsel %vm2003, %v2192, 0.0
      %2279 = vadd.xlane.f32.xlu0 %v2278
      %v2280 = vpop.xlane.xlu0 %2279
      %v2281 = vsel %vm2003, %v2193, 0.0
      %2282 = vadd.xlane.f32.xlu0 %v2281
      %v2283 = vpop.xlane.xlu0 %2282
      %v2284 = vsel %vm2003, %v2194, 0.0
      %2285 = vadd.xlane.f32.xlu0 %v2284
      %v2286 = vpop.xlane.xlu0 %2285
      %v2287 = vsel %vm2003, %v2195, 0.0
      %2288 = vadd.xlane.f32.xlu0 %v2287
      %v2289 = vpop.xlane.xlu0 %2288
      %v2290 = vsel %vm2003, %v2196, 0.0
      %2291 = vadd.xlane.f32.xlu0 %v2290
      %v2292 = vpop.xlane.xlu0 %2291
      %v2293 = vmul.f32 %v2199, %v2100
      %v2294 = vmul.f32 %v2202, %v2100
      %v2295 = vmul.f32 %v2205, %v2100
      %v2296 = vmul.f32 %v2208, %v2100
      %v2297 = vmul.f32 %v2211, %v2100
      %v2298 = vmul.f32 %v2214, %v2100
      %v2299 = vmul.f32 %v2217, %v2100
      %v2300 = vmul.f32 %v2220, %v2100
      %v2301 = vmul.f32 %v2223, %v2100
      %v2302 = vmul.f32 %v2226, %v2100
      %v2303 = vmul.f32 %v2229, %v2100
      %v2304 = vmul.f32 %v2232, %v2100
      %v2305 = vmul.f32 %v2235, %v2100
      %v2306 = vmul.f32 %v2238, %v2100
      %v2307 = vmul.f32 %v2241, %v2100
      %v2308 = vmul.f32 %v2244, %v2100
      %v2309 = vmul.f32 %v2247, %v2100
      %v2310 = vmul.f32 %v2250, %v2100
      %v2311 = vmul.f32 %v2253, %v2100
      %v2312 = vmul.f32 %v2256, %v2100
      %v2313 = vmul.f32 %v2259, %v2100
      %v2314 = vmul.f32 %v2262, %v2100
      %v2315 = vmul.f32 %v2265, %v2100
      %v2316 = vmul.f32 %v2268, %v2100
      %v2317 = vmul.f32 %v2271, %v2100
      %v2318 = vmul.f32 %v2274, %v2100
      %v2319 = vmul.f32 %v2277, %v2100
      %v2320 = vmul.f32 %v2280, %v2100
      %v2321 = vmul.f32 %v2283, %v2100
      %v2322 = vmul.f32 %v2286, %v2100
      %v2323 = vmul.f32 %v2289, %v2100
      %v2324 = vmul.f32 %v2292, %v2100
      %v2325 = vadd.f32 %v2293, 1e-05
      %v2326 = vadd.f32 %v2294, 1e-05
      %v2327 = vadd.f32 %v2295, 1e-05
      %v2328 = vadd.f32 %v2296, 1e-05
      %v2329 = vadd.f32 %v2297, 1e-05
      %v2330 = vadd.f32 %v2298, 1e-05
      %v2331 = vadd.f32 %v2299, 1e-05
      %v2332 = vadd.f32 %v2300, 1e-05
      %v2333 = vadd.f32 %v2301, 1e-05
      %v2334 = vadd.f32 %v2302, 1e-05
      %v2335 = vadd.f32 %v2303, 1e-05
      %v2336 = vadd.f32 %v2304, 1e-05
      %v2337 = vadd.f32 %v2305, 1e-05
      %v2338 = vadd.f32 %v2306, 1e-05
      %v2339 = vadd.f32 %v2307, 1e-05
      %v2340 = vadd.f32 %v2308, 1e-05
      %v2341 = vadd.f32 %v2309, 1e-05
      %v2342 = vadd.f32 %v2310, 1e-05
      %v2343 = vadd.f32 %v2311, 1e-05
      %v2344 = vadd.f32 %v2312, 1e-05
      %v2345 = vadd.f32 %v2313, 1e-05
      %v2346 = vadd.f32 %v2314, 1e-05
      %v2347 = vadd.f32 %v2315, 1e-05
      %v2348 = vadd.f32 %v2316, 1e-05
      %v2349 = vadd.f32 %v2317, 1e-05
      %v2350 = vadd.f32 %v2318, 1e-05
      %v2351 = vadd.f32 %v2319, 1e-05
      %v2352 = vadd.f32 %v2320, 1e-05
      %v2353 = vadd.f32 %v2321, 1e-05
      %v2354 = vadd.f32 %v2322, 1e-05
      %v2355 = vadd.f32 %v2323, 1e-05
      %v2356 = vadd.f32 %v2324, 1e-05
      %v2357 = vrsqrt.pop %v2325
      %v2358 = vrsqrt.pop %v2326
      %v2359 = vrsqrt.pop %v2327
      %v2360 = vrsqrt.pop %v2328
      %v2361 = vrsqrt.pop %v2329
      %v2362 = vrsqrt.pop %v2330
      %v2363 = vrsqrt.pop %v2331
      %v2364 = vrsqrt.pop %v2332
      %v2365 = vrsqrt.pop %v2333
      %v2366 = vrsqrt.pop %v2334
      %v2367 = vrsqrt.pop %v2335
      %v2368 = vrsqrt.pop %v2336
      %v2369 = vrsqrt.pop %v2337
      %v2370 = vrsqrt.pop %v2338
      %v2371 = vrsqrt.pop %v2339
      %v2372 = vrsqrt.pop %v2340
      %v2373 = vrsqrt.pop %v2341
      %v2374 = vrsqrt.pop %v2342
      %v2375 = vrsqrt.pop %v2343
      %v2376 = vrsqrt.pop %v2344
      %v2377 = vrsqrt.pop %v2345
      %v2378 = vrsqrt.pop %v2346
      %v2379 = vrsqrt.pop %v2347
      %v2380 = vrsqrt.pop %v2348
      %v2381 = vrsqrt.pop %v2349
      %v2382 = vrsqrt.pop %v2350
      %v2383 = vrsqrt.pop %v2351
      %v2384 = vrsqrt.pop %v2352
      %v2385 = vrsqrt.pop %v2353
      %v2386 = vrsqrt.pop %v2354
      %v2387 = vrsqrt.pop %v2355
      %v2388 = vrsqrt.pop %v2356
      %v2389 = vmul.f32 %v2133, %v2357
      %v2390 = vmul.f32 %v2134, %v2358
      %v2391 = vmul.f32 %v2135, %v2359
      %v2392 = vmul.f32 %v2136, %v2360
      %v2393 = vmul.f32 %v2137, %v2361
      %v2394 = vmul.f32 %v2138, %v2362
      %v2395 = vmul.f32 %v2139, %v2363
      %v2396 = vmul.f32 %v2140, %v2364
      %v2397 = vmul.f32 %v2141, %v2365
      %v2398 = vmul.f32 %v2142, %v2366
      %v2399 = vmul.f32 %v2143, %v2367
      %v2400 = vmul.f32 %v2144, %v2368
      %v2401 = vmul.f32 %v2145, %v2369
      %v2402 = vmul.f32 %v2146, %v2370
      %v2403 = vmul.f32 %v2147, %v2371
      %v2404 = vmul.f32 %v2148, %v2372
      %v2405 = vmul.f32 %v2149, %v2373
      %v2406 = vmul.f32 %v2150, %v2374
      %v2407 = vmul.f32 %v2151, %v2375
      %v2408 = vmul.f32 %v2152, %v2376
      %v2409 = vmul.f32 %v2153, %v2377
      %v2410 = vmul.f32 %v2154, %v2378
      %v2411 = vmul.f32 %v2155, %v2379
      %v2412 = vmul.f32 %v2156, %v2380
      %v2413 = vmul.f32 %v2157, %v2381
      %v2414 = vmul.f32 %v2158, %v2382
      %v2415 = vmul.f32 %v2159, %v2383
      %v2416 = vmul.f32 %v2160, %v2384
      %v2417 = vmul.f32 %v2161, %v2385
      %v2418 = vmul.f32 %v2162, %v2386
      %v2419 = vmul.f32 %v2163, %v2387
      %v2420 = vmul.f32 %v2164, %v2388
      %v2421 = vld [vmem:[%s5] sm:$0x1]
      %v2423 = vlaneseq
      %v2424 = vshrl.u32 %v2423, 7
      %v2425 = vsub.s32 0, %v2424
      %v2426 = vrot.slane %v2421, %v2425
      %v2428 = vmul.f32 %v2389, %v2426
      %v2429 = vmul.f32 %v2390, %v2426
      %v2430 = vmul.f32 %v2391, %v2426
      %v2431 = vmul.f32 %v2392, %v2426
      %v2432 = vmul.f32 %v2393, %v2426
      %v2433 = vmul.f32 %v2394, %v2426
      %v2434 = vmul.f32 %v2395, %v2426
      %v2435 = vmul.f32 %v2396, %v2426
      %v2436 = vmul.f32 %v2397, %v2426
      %v2437 = vmul.f32 %v2398, %v2426
      %v2438 = vmul.f32 %v2399, %v2426
      %v2439 = vmul.f32 %v2400, %v2426
      %v2440 = vmul.f32 %v2401, %v2426
      %v2441 = vmul.f32 %v2402, %v2426
      %v2442 = vmul.f32 %v2403, %v2426
      %v2443 = vmul.f32 %v2404, %v2426
      %v2444 = vmul.f32 %v2405, %v2426
      %v2445 = vmul.f32 %v2406, %v2426
      %v2446 = vmul.f32 %v2407, %v2426
      %v2447 = vmul.f32 %v2408, %v2426
      %v2448 = vmul.f32 %v2409, %v2426
      %v2449 = vmul.f32 %v2410, %v2426
      %v2450 = vmul.f32 %v2411, %v2426
      %v2451 = vmul.f32 %v2412, %v2426
      %v2452 = vmul.f32 %v2413, %v2426
      %v2453 = vmul.f32 %v2414, %v2426
      %v2454 = vmul.f32 %v2415, %v2426
      %v2455 = vmul.f32 %v2416, %v2426
      %v2456 = vmul.f32 %v2417, %v2426
      %v2457 = vmul.f32 %v2418, %v2426
      %v2458 = vmul.f32 %v2419, %v2426
      %v2459 = vmul.f32 %v2420, %v2426
      %2460 = vxpose.xlu0.b32.start [1/16] %v2428, 128
      %2461 = vxpose.xlu0.b32.cont [2/16] %v2429, 128
      %2462 = vxpose.xlu0.b32.cont [3/16] %v2430, 128
      %2463 = vxpose.xlu0.b32.cont [4/16] %v2431, 128
      %2464 = vxpose.xlu0.b32.cont [5/16] %v2432, 128
      %2465 = vxpose.xlu0.b32.cont [6/16] %v2433, 128
      %2466 = vxpose.xlu0.b32.cont [7/16] %v2434, 128
      %2467 = vxpose.xlu0.b32.cont [8/16] %v2435, 128
      %2468 = vxpose.xlu0.b32.cont [9/16] %v2436, 128
      %2469 = vxpose.xlu0.b32.cont [10/16] %v2437, 128
      %2470 = vxpose.xlu0.b32.cont [11/16] %v2438, 128
      %2471 = vxpose.xlu0.b32.cont [12/16] %v2439, 128
      %2472 = vxpose.xlu0.b32.cont [13/16] %v2440, 128
      %2473 = vxpose.xlu0.b32.cont [14/16] %v2441, 128
      %2474 = vxpose.xlu0.b32.cont [15/16] %v2442, 128
      %2475 = vxpose.xlu0.b32.end [16/16] %v2443, 128
      %v2476 = vpop.trf.xlu0
      %v2477 = vpop.trf.xlu0
      %v2478 = vpop.trf.xlu0
      %v2479 = vpop.trf.xlu0
      %v2480 = vpop.trf.xlu0
      %v2481 = vpop.trf.xlu0
      %v2482 = vpop.trf.xlu0
      %v2483 = vpop.trf.xlu0
      %v2484 = vpop.trf.xlu0
      %v2485 = vpop.trf.xlu0
      %v2486 = vpop.trf.xlu0
      %v2487 = vpop.trf.xlu0
      %v2488 = vpop.trf.xlu0
      %v2489 = vpop.trf.xlu0
      %v2490 = vpop.trf.xlu0
      %v2491 = vpop.trf.xlu0
      %2492 = vxpose.xlu0.b32.start [1/16] %v2444, 128
      %2493 = vxpose.xlu0.b32.cont [2/16] %v2445, 128
      %2494 = vxpose.xlu0.b32.cont [3/16] %v2446, 128
      %2495 = vxpose.xlu0.b32.cont [4/16] %v2447, 128
      %2496 = vxpose.xlu0.b32.cont [5/16] %v2448, 128
      %2497 = vxpose.xlu0.b32.cont [6/16] %v2449, 128
      %2498 = vxpose.xlu0.b32.cont [7/16] %v2450, 128
      %2499 = vxpose.xlu0.b32.cont [8/16] %v2451, 128
      %2500 = vxpose.xlu0.b32.cont [9/16] %v2452, 128
      %2501 = vxpose.xlu0.b32.cont [10/16] %v2453, 128
      %2502 = vxpose.xlu0.b32.cont [11/16] %v2454, 128
      %2503 = vxpose.xlu0.b32.cont [12/16] %v2455, 128
      %2504 = vxpose.xlu0.b32.cont [13/16] %v2456, 128
      %2505 = vxpose.xlu0.b32.cont [14/16] %v2457, 128
      %2506 = vxpose.xlu0.b32.cont [15/16] %v2458, 128
      %2507 = vxpose.xlu0.b32.end [16/16] %v2459, 128
      %v2508 = vpop.trf.xlu0
      %v2509 = vpop.trf.xlu0
      %v2510 = vpop.trf.xlu0
      %v2511 = vpop.trf.xlu0
      %v2512 = vpop.trf.xlu0
      %v2513 = vpop.trf.xlu0
      %v2514 = vpop.trf.xlu0
      %v2515 = vpop.trf.xlu0
      %v2516 = vpop.trf.xlu0
      %v2517 = vpop.trf.xlu0
      %v2518 = vpop.trf.xlu0
      %v2519 = vpop.trf.xlu0
      %v2520 = vpop.trf.xlu0
      %v2521 = vpop.trf.xlu0
      %v2522 = vpop.trf.xlu0
      %v2523 = vpop.trf.xlu0
      %2524 = vst [vmem:[%s291] sm:$0xff] %v2476
      %2525 = vst [vmem:[%s291 + $0x8] sm:$0xff] %v2508
      %2526 = vst [vmem:[%s291 + $0x10] sm:$0xff] %v2477
      %2527 = vst [vmem:[%s291 + $0x18] sm:$0xff] %v2509
      %2528 = vst [vmem:[%s291 + $0x20] sm:$0xff] %v2478
      %2529 = vst [vmem:[%s291 + $0x28] sm:$0xff] %v2510
      %2530 = vst [vmem:[%s291 + $0x30] sm:$0xff] %v2479
      %2531 = vst [vmem:[%s291 + $0x38] sm:$0xff] %v2511
      %p2532 = scmp.lt.s32.totalorder %s17, 1
      %s2533 = scalar_select %p2532, %s17, 1
      %s2534 = smul.addr %s2533, 8
      %s2535 = smul.addr %s2534, 8
      %s2536 = scalar_lea.vmem %s6, %s2535
      // Predicated region
      $region45: #{linear_attention_forward.3} parent=43 // pred_check
        %p2537 = pneg %p176
      $region46: #{linear_attention_forward.3} parent=43 // pred_check_branch
        %2539 = sbr.rel (%p2537) target = $region48
      $region47: #{linear_attention_forward.3} parent=43 // pred_region
        _
      $region48: #{linear_attention_forward.3} parent=43 // pred_fallthru
        _
    $region44: #{linear_attention_forward.3} parent=5 // pred_fallthru
      _
    %p2540 = scmp.le.s32.totalorder 2, %s12
    // Predicated region
    $region49: #{linear_attention_forward.3} parent=5 // pred_check
      %p2541 = pneg %p2540
    $region50: #{linear_attention_forward.3} parent=5 // pred_check_branch
      %2543 = sbr.rel (%p2541) target = $region52
    $region51: #{linear_attention_forward.3} parent=5 // pred_region
      %s2544 = ssub.s32 %s12, 2
      // Predicated region
      $region53: #{linear_attention_forward.3} parent=51 // pred_check
        %p2545 = pneg %p182
      $region54: #{linear_attention_forward.3} parent=51 // pred_check_branch
        %2547 = sbr.rel (%p2545) target = $region56
      $region55: #{linear_attention_forward.3} parent=51 // pred_region
        %p2548 = scmp.lt.s32.totalorder %s18, 1
        %s2549 = scalar_select %p2548, %s18, 1
        %s2550 = smul.addr %s2549, 8
        %s2551 = smul.addr %s2550, 8
        %s2552 = scalar_lea.vmem %s6, %s2551
      $region56: #{linear_attention_forward.3} parent=51 // pred_fallthru
        _
    $region52: #{linear_attention_forward.3} parent=5 // pred_fallthru
      _
  $region6: #{linear_attention_forward.3} parent=0 // loop_footer
    %s16 = sadd.s32 1, %s12
  $region7: #{linear_attention_forward.3} parent=0 // loop_footer_branch
    %11 = sbr.rel target = $region3
  $region8: #{linear_attention_forward.3} parent=0 // loop_exit
    _

</llo_original>
